<compile_context>
chip_gen: v5e
topology: v5e:2x2
jax: 0.10.0
libtpu: 0.0.40
codegen_flags: <defaults>
</compile_context>

<pallas_src>
import numpy as np
import jax
import jax.numpy as jnp
from jax import lax
from jax.experimental import pallas as pl
from jax.experimental.pallas import tpu as pltpu


def _round_up(x, m):
    return ((x + m - 1) // m) * m


def _retain_kernel(seq_ref, demo_ref,
                   w_emb_ref, b_emb_ref,
                   w_gi_ref, b_gi_ref,
                   w_hh_ref, b_hhn_ref,
                   w_alpha_ref, b_alpha_ref,
                   w_beta_ref, b_beta_ref,
                   w1_ctx_ref, w1_demo_ref, b1_ref,
                   w2_ref, b2_ref,
                   head_ref, context_ref,
                   emb_ref, gi_ref):
    T, BT, C = seq_ref.shape
    H = w_beta_ref.shape[0]
    H2 = 2 * H
    HP = context_ref.shape[1]
    cdt = w_gi_ref.dtype                        # matmul operand dtype (f32 or bf16)

    # ---- big batched matmuls: embedding + fused GRU input projections ----
    seq = seq_ref[...].reshape(T * BT, C)       # t-major rows (contiguous merge)
    emb = (jnp.dot(seq, w_emb_ref[...],
                   preferred_element_type=jnp.float32)
           + b_emb_ref[...]).astype(cdt)        # (T*BT, H)
    emb_ref[...] = emb                          # stash in VMEM scratch
    gi_ref[...] = (jnp.dot(emb, w_gi_ref[...],
                           preferred_element_type=jnp.float32)
                   + b_gi_ref[...])             # (T*BT, 6H) f32, gate-reordered

    # ---- serial recurrence: both GRUs + online-softmax attention ----
    def step(t, carry):
        h, m, denom, acc = carry                # h: (BT, 2H) = [h_a | h_b]
        row = pl.multiple_of(t * BT, BT)
        gi_t = gi_ref[pl.ds(row, BT), :]                        # (BT, 6H)
        emb_t = emb_ref[pl.ds(row, BT), :].astype(jnp.float32)  # (BT, H)

        # single block-diagonal hidden matmul for both GRU cells
        gh = jnp.dot(h.astype(cdt), w_hh_ref[...],
                     preferred_element_type=jnp.float32)        # (BT, 6H)
        # gate layout: [r_a, r_b, z_a, z_b, n_a, n_b] (r/z b_hh pre-folded)
        rz = jax.nn.sigmoid(gi_t[:, :2 * H2] + gh[:, :2 * H2])  # (BT, 4H)
        r = rz[:, :H2]
        z = rz[:, H2:]
        n = jnp.tanh(gi_t[:, 2 * H2:] + r * (gh[:, 2 * H2:] + b_hhn_ref[...]))
        h = (1.0 - z) * n + z * h

        h_a = h[:, :H]
        h_b = h[:, H:]
        # alpha score: VPU multiply + lane reduce (no N=1 MXU matmul)
        e_t = (jnp.sum(h_a * w_alpha_ref[...], axis=-1, keepdims=True)
               + b_alpha_ref[...])                              # (BT, 1)
        beta_t = jnp.tanh(jnp.dot(h_b.astype(cdt), w_beta_ref[...],
                                  preferred_element_type=jnp.float32)
                          + b_beta_ref[...])                    # (BT, H)
        w_t = emb_t * beta_t

        # online softmax over the time axis
        m_new = jnp.maximum(m, e_t)
        scale = jnp.exp(m - m_new)
        p = jnp.exp(e_t - m_new)
        denom = denom * scale + p
        acc = acc * scale + p * w_t
        return h, m_new, denom, acc

    init = (jnp.zeros((BT, H2), jnp.float32),
            jnp.full((BT, 1), -jnp.inf, jnp.float32),
            jnp.zeros((BT, 1), jnp.float32),
            jnp.zeros((BT, H), jnp.float32))
    _, _, denom, acc = lax.fori_loop(0, T, step, init, unroll=(T <= 16))

    context = acc / denom                        # (BT, H) f32

    # ---- fused classifier + death/LOS head (lane-dense output) ----
    demo = demo_ref[...]
    h1 = (jnp.dot(context.astype(cdt), w1_ctx_ref[...],
                  preferred_element_type=jnp.float32)
          + jnp.dot(demo, w1_demo_ref[...],
                    preferred_element_type=jnp.float32)
          + b1_ref[...])                         # (BT, 2H)
    h1 = jnp.maximum(h1, 0.0)
    out = (jnp.dot(h1.astype(cdt), w2_ref[...],
                   preferred_element_type=jnp.float32)
           + b2_ref[...])                        # (BT, CP)  [:C]=logits, [C]=dl
    head_ref[...] = out

    if HP > H:
        context = jnp.concatenate(
            [context, jnp.zeros((BT, HP - H), jnp.float32)], axis=1)
    context_ref[...] = context


def _pack_retain_weights(params, compute_dtype):
    """Fuse / reorder / pad weights once on the host side."""
    H = params["w_beta"].shape[0]
    C = params["wc2"].shape[1]
    f32 = jnp.float32

    wa_ih, wb_ih = params["wa_ih"], params["wb_ih"]
    wa_hh, wb_hh = params["wa_hh"], params["wb_hh"]
    ba_ih, bb_ih = params["ba_ih"], params["bb_ih"]
    ba_hh, bb_hh = params["ba_hh"], params["bb_hh"]

    # fused input projection, gate-reordered columns [r_a,r_b,z_a,z_b,n_a,n_b]
    w_gi = jnp.concatenate([wa_ih[:, :H], wb_ih[:, :H],
                            wa_ih[:, H:2 * H], wb_ih[:, H:2 * H],
                            wa_ih[:, 2 * H:], wb_ih[:, 2 * H:]], axis=1)
    b_gi = jnp.concatenate([ba_ih[:, :H] + ba_hh[:, :H],
                            bb_ih[:, :H] + bb_hh[:, :H],
                            ba_ih[:, H:2 * H] + ba_hh[:, H:2 * H],
                            bb_ih[:, H:2 * H] + bb_hh[:, H:2 * H],
                            ba_ih[:, 2 * H:], bb_ih[:, 2 * H:]], axis=1)
    b_hhn = jnp.concatenate([ba_hh[:, 2 * H:], bb_hh[:, 2 * H:]], axis=1)  # (1,2H)

    # block-diagonal hidden-to-hidden weight (2H, 6H), same gate ordering
    Z = jnp.zeros((H, H), f32)
    w_hh = jnp.concatenate([
        jnp.concatenate([wa_hh[:, :H], Z, wa_hh[:, H:2 * H], Z,
                         wa_hh[:, 2 * H:], Z], axis=1),
        jnp.concatenate([Z, wb_hh[:, :H], Z, wb_hh[:, H:2 * H],
                         Z, wb_hh[:, 2 * H:]], axis=1),
    ], axis=0)

    w_alpha_row = jnp.transpose(params["w_alpha"])               # (1, H)

    # fused classifier + death/LOS head, output padded to a lane-dense width
    w1_ctx = jnp.concatenate([params["wc1_ctx"], params["wd1_ctx"]], axis=1)
    w1_demo = jnp.concatenate([params["wc1_demo"], params["wd1_demo"]], axis=1)
    b1 = jnp.concatenate([params["b_c1"], params["b_d1"]], axis=1)
    CP = _round_up(C + 1, 128)
    w2 = jnp.zeros((2 * H, CP), f32)
    w2 = w2.at[:H, :C].set(params["wc2"]).at[H:, C:C + 1].set(params["wd2"])
    b2 = jnp.zeros((1, CP), f32)
    b2 = b2.at[:, :C].set(params["b_c2"]).at[:, C:C + 1].set(params["b_d2"])

    cdt = compute_dtype
    weights = [
        params["w_emb"].astype(cdt), params["b_emb"],
        w_gi.astype(cdt), b_gi,
        w_hh.astype(cdt), b_hhn,
        w_alpha_row, params["b_alpha"],
        params["w_beta"].astype(cdt), params["b_beta"],
        w1_ctx.astype(cdt), w1_demo.astype(cdt), b1,
        w2.astype(cdt), b2,
    ]
    return weights, CP


def retain_forward(seq, demo, params, *, batch_tile=None, use_bf16=False):
    """seq: (B, T, C) multi-hot visits; demo: (B, D).

    Returns (logits (B,C), context (B,H), dl_prob (B,1))."""
    B, T, C = seq.shape
    D = demo.shape[1]
    H = params["w_beta"].shape[0]
    cdt = jnp.bfloat16 if use_bf16 else jnp.float32
    isz = jnp.dtype(cdt).itemsize

    weights, CP = _pack_retain_weights(params, cdt)
    HP = _round_up(H, 128)
    weight_bytes = sum(int(np.prod(w.shape)) * jnp.dtype(w.dtype).itemsize
                       for w in weights)

    # ---- VMEM budget / tile sizing (v7x has 64 MiB; v5e/v6e 128 MiB) ----
    try:
        vmem_cap = int(pltpu.get_tpu_info().vmem_capacity_bytes)
    except Exception:
        vmem_cap = 64 * 1024 * 1024
    budget = int(vmem_cap * 0.5)
    vmem_limit = int(vmem_cap * 0.8)

    def tile_bytes(bt):
        return (2 * T * bt * C * isz            # seq tile, double-buffered
                + 2 * bt * D * isz              # demo tile
                + T * bt * H * isz              # emb scratch
                + T * bt * 6 * H * 4            # gi scratch (f32)
                + 2 * bt * (CP + HP) * 4)       # outputs, double-buffered

    if batch_tile is None:
        BT = min(128, _round_up(B, 8))
        while BT > 8 and weight_bytes + tile_bytes(BT) > budget:
            BT -= 8
        # keep >=2 grid steps when possible so v7x's 2 TensorCores both work
        if _round_up(B, BT) // BT < 2 and BT > 8:
            BT = max(8, _round_up((B + 1) // 2, 8))
    else:
        BT = batch_tile
    B_pad = _round_up(B, BT)

    # ---- input staging: cast early (smaller transpose/pad/DMA), t-major ----
    seq_t = jnp.transpose(seq.astype(cdt), (1, 0, 2))            # (T, B, C)
    demo_p = demo.astype(cdt)
    if B_pad != B:
        seq_t = jnp.pad(seq_t, ((0, 0), (0, B_pad - B), (0, 0)))
        demo_p = jnp.pad(demo_p, ((0, B_pad - B), (0, 0)))

    out_shapes = (jax.ShapeDtypeStruct((B_pad, CP), jnp.float32),
                  jax.ShapeDtypeStruct((B_pad, HP), jnp.float32))

    flops = B_pad * (2 * T * C * H + 2 * T * H * 6 * H
                     + T * (2 * 2 * H * 6 * H + 2 * H * H)
                     + 2 * (H * 2 * H + D * 2 * H + 2 * H * CP))
    transc = B_pad * T * (7 * H + 2)
    bytes_accessed = (isz * (seq_t.size + demo_p.size) + weight_bytes
                      + 4 * B_pad * (CP + HP))

    def build_call(single_buffer_weights):
        def weight_spec(arr):
            nd = arr.ndim
            if single_buffer_weights:
                # constant index_map -> single buffer halves weight VMEM
                return pl.BlockSpec(arr.shape, lambda b, _n=nd: (0,) * _n,
                                    pipeline_mode=pl.Buffered(1))
            return pl.BlockSpec(arr.shape, lambda b, _n=nd: (0,) * _n)

        in_specs = [
            pl.BlockSpec((T, BT, C), lambda b: (0, b, 0)),   # batch tile of sequences
            pl.BlockSpec((BT, D), lambda b: (b, 0)),         # demographics tile
        ] + [weight_spec(w) for w in weights]
        out_specs = [
            pl.BlockSpec((BT, CP), lambda b: (b, 0)),        # fused logits | dl (lane-dense)
            pl.BlockSpec((BT, HP), lambda b: (b, 0)),        # context (lane-padded)
        ]
        return pl.pallas_call(
            _retain_kernel,
            out_shape=out_shapes,
            grid_spec=pltpu.PrefetchScalarGridSpec(
                num_scalar_prefetch=0,
                grid=(B_pad // BT,),
                in_specs=in_specs,
                out_specs=out_specs,
                scratch_shapes=[pltpu.VMEM((T * BT, H), cdt),          # emb
                                pltpu.VMEM((T * BT, 6 * H), jnp.float32)]),  # gi
            compiler_params=pltpu.CompilerParams(
                dimension_semantics=("parallel",),
                vmem_limit_bytes=vmem_limit),
            cost_estimate=pl.CostEstimate(
                flops=int(flops), transcendentals=int(transc),
                bytes_accessed=int(bytes_accessed)),
        )

    head = context = None
    last_err = None
    for single_buf in (True, False):   # fall back if Buffered(1) is unsupported
        try:
            head, context = build_call(single_buf)(seq_t, demo_p, *weights)
            break
        except Exception as e:         # noqa: BLE001 - retry with default buffering
            last_err = e
    if head is None:
        raise last_err

    logits = head[:B, :C]
    dl_prob = jax.nn.sigmoid(head[:B, C:C + 1])
    return logits, context[:B, :H], dl_prob


def _reference_forward(seq, demo, p):
    """Pure-JAX reference mirroring the PyTorch forward (eval, no dropout)."""
    def gru(emb, w_ih, w_hh, b_ih, b_hh):
        H = w_hh.shape[0]
        gi = emb @ w_ih + b_ih
        h = jnp.zeros((1, H), jnp.float32)
        outs = []
        for t in range(emb.shape[0]):
            gh = h @ w_hh + b_hh
            gi_t = gi[t:t + 1]
            r = jax.nn.sigmoid(gi_t[:, :H] + gh[:, :H])
            z = jax.nn.sigmoid(gi_t[:, H:2 * H] + gh[:, H:2 * H])
            n = jnp.tanh(gi_t[:, 2 * H:] + r * gh[:, 2 * H:])
            h = (1.0 - z) * n + z * h
            outs.append(h)
        return jnp.concatenate(outs, 0)

    logits_all, ctx_all, dl_all = [], [], []
    for b in range(seq.shape[0]):
        emb = seq[b] @ p["w_emb"] + p["b_emb"]
        a_out = gru(emb, p["wa_ih"], p["wa_hh"], p["ba_ih"], p["ba_hh"])
        b_out = gru(emb, p["wb_ih"], p["wb_hh"], p["bb_ih"], p["bb_hh"])
        e_a = a_out @ p["w_alpha"] + p["b_alpha"]
        alpha = jax.nn.softmax(e_a, axis=0)
        beta = jnp.tanh(b_out @ p["w_beta"] + p["b_beta"])
        ctx = jnp.sum(emb * beta * alpha, axis=0, keepdims=True)
        demo_b = demo[b:b + 1]
        h1 = jax.nn.relu(ctx @ p["wc1_ctx"] + demo_b @ p["wc1_demo"] + p["b_c1"])
        logits = h1 @ p["wc2"] + p["b_c2"]
        h2 = jax.nn.relu(ctx @ p["wd1_ctx"] + demo_b @ p["wd1_demo"] + p["b_d1"])
        dl = jax.nn.sigmoid(h2 @ p["wd2"] + p["b_d2"])
        logits_all.append(logits); ctx_all.append(ctx); dl_all.append(dl)
    return (jnp.concatenate(logits_all, 0),
            jnp.concatenate(ctx_all, 0),
            jnp.concatenate(dl_all, 0))


def _init_params(key, num_codes, hidden, demo_dim):
    ks = jax.random.split(key, 24)
    u = lambda k, shape, fan_in: jax.random.uniform(
        k, shape, jnp.float32, -1.0 / np.sqrt(fan_in), 1.0 / np.sqrt(fan_in))
    H, C, D = hidden, num_codes, demo_dim
    return {
        # code_embedding (stored transposed: (in, out))
        "w_emb": u(ks[0], (C, H), C), "b_emb": u(ks[1], (1, H), C),
        # alpha GRU (gate order r,z,n along the 3H axis)
        "wa_ih": u(ks[2], (H, 3 * H), H), "wa_hh": u(ks[3], (H, 3 * H), H),
        "ba_ih": u(ks[4], (1, 3 * H), H), "ba_hh": u(ks[5], (1, 3 * H), H),
        # beta GRU
        "wb_ih": u(ks[6], (H, 3 * H), H), "wb_hh": u(ks[7], (H, 3 * H), H),
        "bb_ih": u(ks[8], (1, 3 * H), H), "bb_hh": u(ks[9], (1, 3 * H), H),
        # attention_alpha / attention_beta
        "w_alpha": u(ks[10], (H, 1), H), "b_alpha": u(ks[11], (1, 1), H),
        "w_beta": u(ks[12], (H, H), H), "b_beta": u(ks[13], (1, H), H),
        # classifier: Linear(H+D -> H) split into ctx / demo parts, then Linear(H -> C)
        "wc1_ctx": u(ks[14], (H, H), H + D), "wc1_demo": u(ks[15], (D, H), H + D),
        "b_c1": u(ks[16], (1, H), H + D),
        "wc2": u(ks[17], (H, C), H), "b_c2": u(ks[18], (1, C), H),
        # death_los_classifier: Linear(H+D -> H) then Linear(H -> 1)
        "wd1_ctx": u(ks[19], (H, H), H + D), "wd1_demo": u(ks[20], (D, H), H + D),
        "b_d1": u(ks[21], (1, H), H + D),
        "wd2": u(ks[22], (H, 1), H), "b_d2": u(ks[23], (1, 1), H),
    }


if __name__ == "__main__":
    B, T = 2, 8               # batch of sequences, visits per sequence
    NUM_CODES = 64
    HIDDEN = 32
    DEMO_DIM = 8

    key = jax.random.PRNGKey(0)
    k_seq, k_demo, k_param = jax.random.split(key, 3)

    # multi-hot visit codes (as process_sequence would produce) + demographics
    seq = (jax.random.uniform(k_seq, (B, T, NUM_CODES)) < 0.1).astype(jnp.float32)
    demo = jax.random.normal(k_demo, (B, DEMO_DIM), jnp.float32)
    params = _init_params(k_param, NUM_CODES, HIDDEN, DEMO_DIM)

    # strict f32 path vs pure-JAX reference
    logits, context, dl_prob = jax.block_until_ready(
        retain_forward(seq, demo, params, use_bf16=False))
    ref_logits, ref_context, ref_dl = _reference_forward(seq, demo, params)
    np.testing.assert_allclose(np.asarray(logits), np.asarray(ref_logits),
                               rtol=1e-4, atol=1e-4)
    np.testing.assert_allclose(np.asarray(context), np.asarray(ref_context),
                               rtol=1e-4, atol=1e-4)
    np.testing.assert_allclose(np.asarray(dl_prob), np.asarray(ref_dl),
                               rtol=1e-4, atol=1e-4)

    # bf16 MXU-operand path (perf mode for v6e/v7x): loose-tolerance smoke check
    logits_bf, context_bf, dl_bf = jax.block_until_ready(
        retain_forward(seq, demo, params, use_bf16=True))
    np.testing.assert_allclose(np.asarray(logits_bf), np.asarray(ref_logits),
                               rtol=1e-1, atol=1e-1)
    np.testing.assert_allclose(np.asarray(dl_bf), np.asarray(ref_dl),
                               rtol=1e-1, atol=1e-1)

    print("KERNEL_OK")
</pallas_src>

<mosaic_0001>
module attributes {stable_mosaic.version = 11 : i64} {
  func.func @_retain_kernel(%arg0: i32, %arg1: memref<8x8x64xf32, #tpu.memory_space<vmem>>, %arg2: memref<8x8xf32, #tpu.memory_space<vmem>>, %arg3: memref<64x32xf32, #tpu.memory_space<vmem>>, %arg4: memref<1x32xf32, #tpu.memory_space<vmem>>, %arg5: memref<32x192xf32, #tpu.memory_space<vmem>>, %arg6: memref<1x192xf32, #tpu.memory_space<vmem>>, %arg7: memref<64x192xf32, #tpu.memory_space<vmem>>, %arg8: memref<1x64xf32, #tpu.memory_space<vmem>>, %arg9: memref<1x32xf32, #tpu.memory_space<vmem>>, %arg10: memref<1x1xf32, #tpu.memory_space<vmem>>, %arg11: memref<32x32xf32, #tpu.memory_space<vmem>>, %arg12: memref<1x32xf32, #tpu.memory_space<vmem>>, %arg13: memref<32x64xf32, #tpu.memory_space<vmem>>, %arg14: memref<8x64xf32, #tpu.memory_space<vmem>>, %arg15: memref<1x64xf32, #tpu.memory_space<vmem>>, %arg16: memref<64x128xf32, #tpu.memory_space<vmem>>, %arg17: memref<1x128xf32, #tpu.memory_space<vmem>>, %arg18: memref<8x128xf32, #tpu.memory_space<vmem>>, %arg19: memref<8x128xf32, #tpu.memory_space<vmem>>, %arg20: memref<64x32xf32, #tpu.memory_space<vmem>>, %arg21: memref<64x192xf32, #tpu.memory_space<vmem>>) attributes {dimension_semantics = [#tpu.dimension_semantics<parallel>], iteration_bounds = array<i64: 1>, scalar_prefetch = 0 : i64, scratch_operands = 2 : i64, tpu.core_type = #tpu.core_type<tc>, window_params = [{transform_indices = @transform_0, window_bounds = array<i64: 8, 8, 64>}, {transform_indices = @transform_1, window_bounds = array<i64: 8, 8>}, {pipeline_mode = #tpu.pipeline_mode<synchronous>, transform_indices = @transform_2, window_bounds = array<i64: 64, 32>}, {pipeline_mode = #tpu.pipeline_mode<synchronous>, transform_indices = @transform_3, window_bounds = array<i64: 1, 32>}, {pipeline_mode = #tpu.pipeline_mode<synchronous>, transform_indices = @transform_4, window_bounds = array<i64: 32, 192>}, {pipeline_mode = #tpu.pipeline_mode<synchronous>, transform_indices = @transform_5, window_bounds = array<i64: 1, 192>}, {pipeline_mode = #tpu.pipeline_mode<synchronous>, transform_indices = @transform_6, window_bounds = array<i64: 64, 192>}, {pipeline_mode = #tpu.pipeline_mode<synchronous>, transform_indices = @transform_7, window_bounds = array<i64: 1, 64>}, {pipeline_mode = #tpu.pipeline_mode<synchronous>, transform_indices = @transform_8, window_bounds = array<i64: 1, 32>}, {pipeline_mode = #tpu.pipeline_mode<synchronous>, transform_indices = @transform_9, window_bounds = array<i64: 1, 1>}, {pipeline_mode = #tpu.pipeline_mode<synchronous>, transform_indices = @transform_10, window_bounds = array<i64: 32, 32>}, {pipeline_mode = #tpu.pipeline_mode<synchronous>, transform_indices = @transform_11, window_bounds = array<i64: 1, 32>}, {pipeline_mode = #tpu.pipeline_mode<synchronous>, transform_indices = @transform_12, window_bounds = array<i64: 32, 64>}, {pipeline_mode = #tpu.pipeline_mode<synchronous>, transform_indices = @transform_13, window_bounds = array<i64: 8, 64>}, {pipeline_mode = #tpu.pipeline_mode<synchronous>, transform_indices = @transform_14, window_bounds = array<i64: 1, 64>}, {pipeline_mode = #tpu.pipeline_mode<synchronous>, transform_indices = @transform_15, window_bounds = array<i64: 64, 128>}, {pipeline_mode = #tpu.pipeline_mode<synchronous>, transform_indices = @transform_16, window_bounds = array<i64: 1, 128>}, {transform_indices = @transform_17, window_bounds = array<i64: 8, 128>}, {transform_indices = @transform_18, window_bounds = array<i64: 8, 128>}]} {
    %c0 = arith.constant 0 : index
    %c0_0 = arith.constant 0 : index
    %c0_1 = arith.constant 0 : index
    %0 = vector.load %arg1[%c0, %c0_0, %c0_1] : memref<8x8x64xf32, #tpu.memory_space<vmem>>, vector<8x8x64xf32>
    %1 = vector.shape_cast %0 : vector<8x8x64xf32> to vector<64x64xf32>
    %c0_2 = arith.constant 0 : index
    %c0_3 = arith.constant 0 : index
    %2 = vector.load %arg3[%c0_2, %c0_3] : memref<64x32xf32, #tpu.memory_space<vmem>>, vector<64x32xf32>
    %cst = arith.constant dense<0.000000e+00> : vector<64x32xf32>
    %3 = tpu.matmul %1, %2, %cst {dimension_numbers = #tpu.dot_dimension_numbers<[1], [0], [0], [1], [0, 0, 1, 1], [], []>} : vector<64x64xf32>, vector<64x32xf32>, vector<64x32xf32> -> vector<64x32xf32>
    %c0_4 = arith.constant 0 : index
    %c0_5 = arith.constant 0 : index
    %4 = vector.load %arg4[%c0_4, %c0_5] : memref<1x32xf32, #tpu.memory_space<vmem>>, vector<1x32xf32>
    %5 = vector.broadcast %4 : vector<1x32xf32> to vector<64x32xf32>
    %6 = arith.addf %3, %5 : vector<64x32xf32>
    %c0_6 = arith.constant 0 : index
    %c0_7 = arith.constant 0 : index
    %7 = vector.load %arg20[%c0_6, %c0_7] : memref<64x32xf32, #tpu.memory_space<vmem>>, vector<64x32xf32>
    tpu.vector_store %arg20[%c0_6, %c0_7], %6 {strides = array<i32>} : memref<64x32xf32, #tpu.memory_space<vmem>>, vector<64x32xf32>,
    %c0_8 = arith.constant 0 : index
    %c0_9 = arith.constant 0 : index
    %8 = vector.load %arg5[%c0_8, %c0_9] : memref<32x192xf32, #tpu.memory_space<vmem>>, vector<32x192xf32>
    %cst_10 = arith.constant dense<0.000000e+00> : vector<64x192xf32>
    %9 = tpu.matmul %6, %8, %cst_10 {dimension_numbers = #tpu.dot_dimension_numbers<[1], [0], [0], [1], [0, 0, 1, 1], [], []>} : vector<64x32xf32>, vector<32x192xf32>, vector<64x192xf32> -> vector<64x192xf32>
    %c0_11 = arith.constant 0 : index
    %c0_12 = arith.constant 0 : index
    %10 = vector.load %arg6[%c0_11, %c0_12] : memref<1x192xf32, #tpu.memory_space<vmem>>, vector<1x192xf32>
    %11 = vector.broadcast %10 : vector<1x192xf32> to vector<64x192xf32>
    %12 = arith.addf %9, %11 : vector<64x192xf32>
    %c0_13 = arith.constant 0 : index
    %c0_14 = arith.constant 0 : index
    %13 = vector.load %arg21[%c0_13, %c0_14] : memref<64x192xf32, #tpu.memory_space<vmem>>, vector<64x192xf32>
    tpu.vector_store %arg21[%c0_13, %c0_14], %12 {strides = array<i32>} : memref<64x192xf32, #tpu.memory_space<vmem>>, vector<64x192xf32>,
    %cst_15 = arith.constant 0.000000e+00 : f32
    %14 = vector.broadcast %cst_15 : f32 to vector<8x64xf32>
    %cst_16 = arith.constant 0xFF800000 : f32
    %15 = vector.broadcast %cst_16 : f32 to vector<8x1xf32>
    %cst_17 = arith.constant 0.000000e+00 : f32
    %16 = vector.broadcast %cst_17 : f32 to vector<8x1xf32>
    %cst_18 = arith.constant 0.000000e+00 : f32
    %17 = vector.broadcast %cst_18 : f32 to vector<8x32xf32>
    %c0_i32 = arith.constant 0 : i32
    %c8_i32 = arith.constant 8 : i32
    %18 = arith.muli %c0_i32, %c8_i32 : i32
    %19 = tpu.assume_multiple %18, 8 : i32
    %20 = arith.index_cast %19 : i32 to index
    %c0_19 = arith.constant 0 : index
    %21 = vector.load %arg21[%20, %c0_19] : memref<64x192xf32, #tpu.memory_space<vmem>>, vector<8x192xf32>
    %22 = arith.index_cast %19 : i32 to index
    %c0_20 = arith.constant 0 : index
    %23 = vector.load %arg20[%22, %c0_20] : memref<64x32xf32, #tpu.memory_space<vmem>>, vector<8x32xf32>
    %c0_21 = arith.constant 0 : index
    %c0_22 = arith.constant 0 : index
    %24 = vector.load %arg7[%c0_21, %c0_22] : memref<64x192xf32, #tpu.memory_space<vmem>>, vector<64x192xf32>
    %cst_23 = arith.constant dense<0.000000e+00> : vector<8x192xf32>
    %25 = tpu.matmul %14, %24, %cst_23 {dimension_numbers = #tpu.dot_dimension_numbers<[1], [0], [0], [1], [0, 0, 1, 1], [], []>} : vector<8x64xf32>, vector<64x192xf32>, vector<8x192xf32> -> vector<8x192xf32>
    %26 = vector.extract_strided_slice %21 {offsets = [0, 0], sizes = [8, 128], strides = [1, 1]} : vector<8x192xf32> to vector<8x128xf32>
    %27 = vector.extract_strided_slice %25 {offsets = [0, 0], sizes = [8, 128], strides = [1, 1]} : vector<8x192xf32> to vector<8x128xf32>
    %28 = arith.addf %26, %27 : vector<8x128xf32>
    %29 = arith.negf %28 : vector<8x128xf32>
    %30 = math.exp %29 : vector<8x128xf32>
    %cst_24 = arith.constant 1.000000e+00 : f32
    %31 = vector.broadcast %cst_24 : f32 to vector<8x128xf32>
    %32 = arith.addf %31, %30 : vector<8x128xf32>
    %33 = arith.divf %31, %32 : vector<8x128xf32>
    %34 = vector.extract_strided_slice %33 {offsets = [0, 0], sizes = [8, 64], strides = [1, 1]} : vector<8x128xf32> to vector<8x64xf32>
    %35 = vector.extract_strided_slice %33 {offsets = [0, 64], sizes = [8, 64], strides = [1, 1]} : vector<8x128xf32> to vector<8x64xf32>
    %36 = vector.extract_strided_slice %21 {offsets = [0, 128], sizes = [8, 64], strides = [1, 1]} : vector<8x192xf32> to vector<8x64xf32>
    %37 = vector.extract_strided_slice %25 {offsets = [0, 128], sizes = [8, 64], strides = [1, 1]} : vector<8x192xf32> to vector<8x64xf32>
    %c0_25 = arith.constant 0 : index
    %c0_26 = arith.constant 0 : index
    %38 = vector.load %arg8[%c0_25, %c0_26] : memref<1x64xf32, #tpu.memory_space<vmem>>, vector<1x64xf32>
    %39 = vector.broadcast %38 : vector<1x64xf32> to vector<8x64xf32>
    %40 = arith.addf %37, %39 : vector<8x64xf32>
    %41 = arith.mulf %34, %40 : vector<8x64xf32>
    %42 = arith.addf %36, %41 : vector<8x64xf32>
    %43 = math.tanh %42 : vector<8x64xf32>
    %cst_27 = arith.constant 1.000000e+00 : f32
    %44 = vector.broadcast %cst_27 : f32 to vector<8x64xf32>
    %45 = arith.subf %44, %35 : vector<8x64xf32>
    %46 = arith.mulf %45, %43 : vector<8x64xf32>
    %47 = arith.mulf %35, %14 : vector<8x64xf32>
    %48 = arith.addf %46, %47 : vector<8x64xf32>
    %49 = vector.extract_strided_slice %48 {offsets = [0, 0], sizes = [8, 32], strides = [1, 1]} : vector<8x64xf32> to vector<8x32xf32>
    %50 = vector.extract_strided_slice %48 {offsets = [0, 32], sizes = [8, 32], strides = [1, 1]} : vector<8x64xf32> to vector<8x32xf32>
    %c0_28 = arith.constant 0 : index
    %c0_29 = arith.constant 0 : index
    %51 = vector.load %arg9[%c0_28, %c0_29] : memref<1x32xf32, #tpu.memory_space<vmem>>, vector<1x32xf32>
    %52 = vector.broadcast %51 : vector<1x32xf32> to vector<8x32xf32>
    %53 = arith.mulf %49, %52 : vector<8x32xf32>
    %cst_30 = arith.constant dense<0.000000e+00> : vector<8xf32>
    %54 = vector.multi_reduction <add>, %53, %cst_30 [1] : vector<8x32xf32> to vector<8xf32>
    %55 = vector.shape_cast %54 : vector<8xf32> to vector<8x1xf32>
    %c0_31 = arith.constant 0 : index
    %c0_32 = arith.constant 0 : index
    %56 = vector.load %arg10[%c0_31, %c0_32] : memref<1x1xf32, #tpu.memory_space<vmem>>, vector<1x1xf32>
    %57 = vector.broadcast %56 : vector<1x1xf32> to vector<8x1xf32>
    %58 = arith.addf %55, %57 : vector<8x1xf32>
    %c0_33 = arith.constant 0 : index
    %c0_34 = arith.constant 0 : index
    %59 = vector.load %arg11[%c0_33, %c0_34] : memref<32x32xf32, #tpu.memory_space<vmem>>, vector<32x32xf32>
    %cst_35 = arith.constant dense<0.000000e+00> : vector<8x32xf32>
    %60 = tpu.matmul %50, %59, %cst_35 {dimension_numbers = #tpu.dot_dimension_numbers<[1], [0], [0], [1], [0, 0, 1, 1], [], []>} : vector<8x32xf32>, vector<32x32xf32>, vector<8x32xf32> -> vector<8x32xf32>
    %c0_36 = arith.constant 0 : index
    %c0_37 = arith.constant 0 : index
    %61 = vector.load %arg12[%c0_36, %c0_37] : memref<1x32xf32, #tpu.memory_space<vmem>>, vector<1x32xf32>
    %62 = vector.broadcast %61 : vector<1x32xf32> to vector<8x32xf32>
    %63 = arith.addf %60, %62 : vector<8x32xf32>
    %64 = math.tanh %63 : vector<8x32xf32>
    %65 = arith.mulf %23, %64 : vector<8x32xf32>
    %66 = arith.maximumf %15, %58 : vector<8x1xf32>
    %67 = arith.subf %15, %66 : vector<8x1xf32>
    %68 = math.exp %67 : vector<8x1xf32>
    %69 = arith.subf %58, %66 : vector<8x1xf32>
    %70 = math.exp %69 : vector<8x1xf32>
    %71 = arith.mulf %16, %68 : vector<8x1xf32>
    %72 = arith.addf %71, %70 : vector<8x1xf32>
    %73 = vector.broadcast %68 : vector<8x1xf32> to vector<8x32xf32>
    %74 = arith.mulf %17, %73 : vector<8x32xf32>
    %75 = vector.broadcast %70 : vector<8x1xf32> to vector<8x32xf32>
    %76 = arith.mulf %75, %65 : vector<8x32xf32>
    %77 = arith.addf %74, %76 : vector<8x32xf32>
    %c1_i32 = arith.constant 1 : i32
    %c8_i32_38 = arith.constant 8 : i32
    %78 = arith.muli %c1_i32, %c8_i32_38 : i32
    %79 = tpu.assume_multiple %78, 8 : i32
    %80 = arith.index_cast %79 : i32 to index
    %c0_39 = arith.constant 0 : index
    %81 = vector.load %arg21[%80, %c0_39] : memref<64x192xf32, #tpu.memory_space<vmem>>, vector<8x192xf32>
    %82 = arith.index_cast %79 : i32 to index
    %c0_40 = arith.constant 0 : index
    %83 = vector.load %arg20[%82, %c0_40] : memref<64x32xf32, #tpu.memory_space<vmem>>, vector<8x32xf32>
    %c0_41 = arith.constant 0 : index
    %c0_42 = arith.constant 0 : index
    %84 = vector.load %arg7[%c0_41, %c0_42] : memref<64x192xf32, #tpu.memory_space<vmem>>, vector<64x192xf32>
    %cst_43 = arith.constant dense<0.000000e+00> : vector<8x192xf32>
    %85 = tpu.matmul %48, %84, %cst_43 {dimension_numbers = #tpu.dot_dimension_numbers<[1], [0], [0], [1], [0, 0, 1, 1], [], []>} : vector<8x64xf32>, vector<64x192xf32>, vector<8x192xf32> -> vector<8x192xf32>
    %86 = vector.extract_strided_slice %81 {offsets = [0, 0], sizes = [8, 128], strides = [1, 1]} : vector<8x192xf32> to vector<8x128xf32>
    %87 = vector.extract_strided_slice %85 {offsets = [0, 0], sizes = [8, 128], strides = [1, 1]} : vector<8x192xf32> to vector<8x128xf32>
    %88 = arith.addf %86, %87 : vector<8x128xf32>
    %89 = arith.negf %88 : vector<8x128xf32>
    %90 = math.exp %89 : vector<8x128xf32>
    %cst_44 = arith.constant 1.000000e+00 : f32
    %91 = vector.broadcast %cst_44 : f32 to vector<8x128xf32>
    %92 = arith.addf %91, %90 : vector<8x128xf32>
    %93 = arith.divf %91, %92 : vector<8x128xf32>
    %94 = vector.extract_strided_slice %93 {offsets = [0, 0], sizes = [8, 64], strides = [1, 1]} : vector<8x128xf32> to vector<8x64xf32>
    %95 = vector.extract_strided_slice %93 {offsets = [0, 64], sizes = [8, 64], strides = [1, 1]} : vector<8x128xf32> to vector<8x64xf32>
    %96 = vector.extract_strided_slice %81 {offsets = [0, 128], sizes = [8, 64], strides = [1, 1]} : vector<8x192xf32> to vector<8x64xf32>
    %97 = vector.extract_strided_slice %85 {offsets = [0, 128], sizes = [8, 64], strides = [1, 1]} : vector<8x192xf32> to vector<8x64xf32>
    %c0_45 = arith.constant 0 : index
    %c0_46 = arith.constant 0 : index
    %98 = vector.load %arg8[%c0_45, %c0_46] : memref<1x64xf32, #tpu.memory_space<vmem>>, vector<1x64xf32>
    %99 = vector.broadcast %98 : vector<1x64xf32> to vector<8x64xf32>
    %100 = arith.addf %97, %99 : vector<8x64xf32>
    %101 = arith.mulf %94, %100 : vector<8x64xf32>
    %102 = arith.addf %96, %101 : vector<8x64xf32>
    %103 = math.tanh %102 : vector<8x64xf32>
    %cst_47 = arith.constant 1.000000e+00 : f32
    %104 = vector.broadcast %cst_47 : f32 to vector<8x64xf32>
    %105 = arith.subf %104, %95 : vector<8x64xf32>
    %106 = arith.mulf %105, %103 : vector<8x64xf32>
    %107 = arith.mulf %95, %48 : vector<8x64xf32>
    %108 = arith.addf %106, %107 : vector<8x64xf32>
    %109 = vector.extract_strided_slice %108 {offsets = [0, 0], sizes = [8, 32], strides = [1, 1]} : vector<8x64xf32> to vector<8x32xf32>
    %110 = vector.extract_strided_slice %108 {offsets = [0, 32], sizes = [8, 32], strides = [1, 1]} : vector<8x64xf32> to vector<8x32xf32>
    %c0_48 = arith.constant 0 : index
    %c0_49 = arith.constant 0 : index
    %111 = vector.load %arg9[%c0_48, %c0_49] : memref<1x32xf32, #tpu.memory_space<vmem>>, vector<1x32xf32>
    %112 = vector.broadcast %111 : vector<1x32xf32> to vector<8x32xf32>
    %113 = arith.mulf %109, %112 : vector<8x32xf32>
    %cst_50 = arith.constant dense<0.000000e+00> : vector<8xf32>
    %114 = vector.multi_reduction <add>, %113, %cst_50 [1] : vector<8x32xf32> to vector<8xf32>
    %115 = vector.shape_cast %114 : vector<8xf32> to vector<8x1xf32>
    %c0_51 = arith.constant 0 : index
    %c0_52 = arith.constant 0 : index
    %116 = vector.load %arg10[%c0_51, %c0_52] : memref<1x1xf32, #tpu.memory_space<vmem>>, vector<1x1xf32>
    %117 = vector.broadcast %116 : vector<1x1xf32> to vector<8x1xf32>
    %118 = arith.addf %115, %117 : vector<8x1xf32>
    %c0_53 = arith.constant 0 : index
    %c0_54 = arith.constant 0 : index
    %119 = vector.load %arg11[%c0_53, %c0_54] : memref<32x32xf32, #tpu.memory_space<vmem>>, vector<32x32xf32>
    %cst_55 = arith.constant dense<0.000000e+00> : vector<8x32xf32>
    %120 = tpu.matmul %110, %119, %cst_55 {dimension_numbers = #tpu.dot_dimension_numbers<[1], [0], [0], [1], [0, 0, 1, 1], [], []>} : vector<8x32xf32>, vector<32x32xf32>, vector<8x32xf32> -> vector<8x32xf32>
    %c0_56 = arith.constant 0 : index
    %c0_57 = arith.constant 0 : index
    %121 = vector.load %arg12[%c0_56, %c0_57] : memref<1x32xf32, #tpu.memory_space<vmem>>, vector<1x32xf32>
    %122 = vector.broadcast %121 : vector<1x32xf32> to vector<8x32xf32>
    %123 = arith.addf %120, %122 : vector<8x32xf32>
    %124 = math.tanh %123 : vector<8x32xf32>
    %125 = arith.mulf %83, %124 : vector<8x32xf32>
    %126 = arith.maximumf %66, %118 : vector<8x1xf32>
    %127 = arith.subf %66, %126 : vector<8x1xf32>
    %128 = math.exp %127 : vector<8x1xf32>
    %129 = arith.subf %118, %126 : vector<8x1xf32>
    %130 = math.exp %129 : vector<8x1xf32>
    %131 = arith.mulf %72, %128 : vector<8x1xf32>
    %132 = arith.addf %131, %130 : vector<8x1xf32>
    %133 = vector.broadcast %128 : vector<8x1xf32> to vector<8x32xf32>
    %134 = arith.mulf %77, %133 : vector<8x32xf32>
    %135 = vector.broadcast %130 : vector<8x1xf32> to vector<8x32xf32>
    %136 = arith.mulf %135, %125 : vector<8x32xf32>
    %137 = arith.addf %134, %136 : vector<8x32xf32>
    %c2_i32 = arith.constant 2 : i32
    %c8_i32_58 = arith.constant 8 : i32
    %138 = arith.muli %c2_i32, %c8_i32_58 : i32
    %139 = tpu.assume_multiple %138, 8 : i32
    %140 = arith.index_cast %139 : i32 to index
    %c0_59 = arith.constant 0 : index
    %141 = vector.load %arg21[%140, %c0_59] : memref<64x192xf32, #tpu.memory_space<vmem>>, vector<8x192xf32>
    %142 = arith.index_cast %139 : i32 to index
    %c0_60 = arith.constant 0 : index
    %143 = vector.load %arg20[%142, %c0_60] : memref<64x32xf32, #tpu.memory_space<vmem>>, vector<8x32xf32>
    %c0_61 = arith.constant 0 : index
    %c0_62 = arith.constant 0 : index
    %144 = vector.load %arg7[%c0_61, %c0_62] : memref<64x192xf32, #tpu.memory_space<vmem>>, vector<64x192xf32>
    %cst_63 = arith.constant dense<0.000000e+00> : vector<8x192xf32>
    %145 = tpu.matmul %108, %144, %cst_63 {dimension_numbers = #tpu.dot_dimension_numbers<[1], [0], [0], [1], [0, 0, 1, 1], [], []>} : vector<8x64xf32>, vector<64x192xf32>, vector<8x192xf32> -> vector<8x192xf32>
    %146 = vector.extract_strided_slice %141 {offsets = [0, 0], sizes = [8, 128], strides = [1, 1]} : vector<8x192xf32> to vector<8x128xf32>
    %147 = vector.extract_strided_slice %145 {offsets = [0, 0], sizes = [8, 128], strides = [1, 1]} : vector<8x192xf32> to vector<8x128xf32>
    %148 = arith.addf %146, %147 : vector<8x128xf32>
    %149 = arith.negf %148 : vector<8x128xf32>
    %150 = math.exp %149 : vector<8x128xf32>
    %cst_64 = arith.constant 1.000000e+00 : f32
    %151 = vector.broadcast %cst_64 : f32 to vector<8x128xf32>
    %152 = arith.addf %151, %150 : vector<8x128xf32>
    %153 = arith.divf %151, %152 : vector<8x128xf32>
    %154 = vector.extract_strided_slice %153 {offsets = [0, 0], sizes = [8, 64], strides = [1, 1]} : vector<8x128xf32> to vector<8x64xf32>
    %155 = vector.extract_strided_slice %153 {offsets = [0, 64], sizes = [8, 64], strides = [1, 1]} : vector<8x128xf32> to vector<8x64xf32>
    %156 = vector.extract_strided_slice %141 {offsets = [0, 128], sizes = [8, 64], strides = [1, 1]} : vector<8x192xf32> to vector<8x64xf32>
    %157 = vector.extract_strided_slice %145 {offsets = [0, 128], sizes = [8, 64], strides = [1, 1]} : vector<8x192xf32> to vector<8x64xf32>
    %c0_65 = arith.constant 0 : index
    %c0_66 = arith.constant 0 : index
    %158 = vector.load %arg8[%c0_65, %c0_66] : memref<1x64xf32, #tpu.memory_space<vmem>>, vector<1x64xf32>
    %159 = vector.broadcast %158 : vector<1x64xf32> to vector<8x64xf32>
    %160 = arith.addf %157, %159 : vector<8x64xf32>
    %161 = arith.mulf %154, %160 : vector<8x64xf32>
    %162 = arith.addf %156, %161 : vector<8x64xf32>
    %163 = math.tanh %162 : vector<8x64xf32>
    %cst_67 = arith.constant 1.000000e+00 : f32
    %164 = vector.broadcast %cst_67 : f32 to vector<8x64xf32>
    %165 = arith.subf %164, %155 : vector<8x64xf32>
    %166 = arith.mulf %165, %163 : vector<8x64xf32>
    %167 = arith.mulf %155, %108 : vector<8x64xf32>
    %168 = arith.addf %166, %167 : vector<8x64xf32>
    %169 = vector.extract_strided_slice %168 {offsets = [0, 0], sizes = [8, 32], strides = [1, 1]} : vector<8x64xf32> to vector<8x32xf32>
    %170 = vector.extract_strided_slice %168 {offsets = [0, 32], sizes = [8, 32], strides = [1, 1]} : vector<8x64xf32> to vector<8x32xf32>
    %c0_68 = arith.constant 0 : index
    %c0_69 = arith.constant 0 : index
    %171 = vector.load %arg9[%c0_68, %c0_69] : memref<1x32xf32, #tpu.memory_space<vmem>>, vector<1x32xf32>
    %172 = vector.broadcast %171 : vector<1x32xf32> to vector<8x32xf32>
    %173 = arith.mulf %169, %172 : vector<8x32xf32>
    %cst_70 = arith.constant dense<0.000000e+00> : vector<8xf32>
    %174 = vector.multi_reduction <add>, %173, %cst_70 [1] : vector<8x32xf32> to vector<8xf32>
    %175 = vector.shape_cast %174 : vector<8xf32> to vector<8x1xf32>
    %c0_71 = arith.constant 0 : index
    %c0_72 = arith.constant 0 : index
    %176 = vector.load %arg10[%c0_71, %c0_72] : memref<1x1xf32, #tpu.memory_space<vmem>>, vector<1x1xf32>
    %177 = vector.broadcast %176 : vector<1x1xf32> to vector<8x1xf32>
    %178 = arith.addf %175, %177 : vector<8x1xf32>
    %c0_73 = arith.constant 0 : index
    %c0_74 = arith.constant 0 : index
    %179 = vector.load %arg11[%c0_73, %c0_74] : memref<32x32xf32, #tpu.memory_space<vmem>>, vector<32x32xf32>
    %cst_75 = arith.constant dense<0.000000e+00> : vector<8x32xf32>
    %180 = tpu.matmul %170, %179, %cst_75 {dimension_numbers = #tpu.dot_dimension_numbers<[1], [0], [0], [1], [0, 0, 1, 1], [], []>} : vector<8x32xf32>, vector<32x32xf32>, vector<8x32xf32> -> vector<8x32xf32>
    %c0_76 = arith.constant 0 : index
    %c0_77 = arith.constant 0 : index
    %181 = vector.load %arg12[%c0_76, %c0_77] : memref<1x32xf32, #tpu.memory_space<vmem>>, vector<1x32xf32>
    %182 = vector.broadcast %181 : vector<1x32xf32> to vector<8x32xf32>
    %183 = arith.addf %180, %182 : vector<8x32xf32>
    %184 = math.tanh %183 : vector<8x32xf32>
    %185 = arith.mulf %143, %184 : vector<8x32xf32>
    %186 = arith.maximumf %126, %178 : vector<8x1xf32>
    %187 = arith.subf %126, %186 : vector<8x1xf32>
    %188 = math.exp %187 : vector<8x1xf32>
    %189 = arith.subf %178, %186 : vector<8x1xf32>
    %190 = math.exp %189 : vector<8x1xf32>
    %191 = arith.mulf %132, %188 : vector<8x1xf32>
    %192 = arith.addf %191, %190 : vector<8x1xf32>
    %193 = vector.broadcast %188 : vector<8x1xf32> to vector<8x32xf32>
    %194 = arith.mulf %137, %193 : vector<8x32xf32>
    %195 = vector.broadcast %190 : vector<8x1xf32> to vector<8x32xf32>
    %196 = arith.mulf %195, %185 : vector<8x32xf32>
    %197 = arith.addf %194, %196 : vector<8x32xf32>
    %c3_i32 = arith.constant 3 : i32
    %c8_i32_78 = arith.constant 8 : i32
    %198 = arith.muli %c3_i32, %c8_i32_78 : i32
    %199 = tpu.assume_multiple %198, 8 : i32
    %200 = arith.index_cast %199 : i32 to index
    %c0_79 = arith.constant 0 : index
    %201 = vector.load %arg21[%200, %c0_79] : memref<64x192xf32, #tpu.memory_space<vmem>>, vector<8x192xf32>
    %202 = arith.index_cast %199 : i32 to index
    %c0_80 = arith.constant 0 : index
    %203 = vector.load %arg20[%202, %c0_80] : memref<64x32xf32, #tpu.memory_space<vmem>>, vector<8x32xf32>
    %c0_81 = arith.constant 0 : index
    %c0_82 = arith.constant 0 : index
    %204 = vector.load %arg7[%c0_81, %c0_82] : memref<64x192xf32, #tpu.memory_space<vmem>>, vector<64x192xf32>
    %cst_83 = arith.constant dense<0.000000e+00> : vector<8x192xf32>
    %205 = tpu.matmul %168, %204, %cst_83 {dimension_numbers = #tpu.dot_dimension_numbers<[1], [0], [0], [1], [0, 0, 1, 1], [], []>} : vector<8x64xf32>, vector<64x192xf32>, vector<8x192xf32> -> vector<8x192xf32>
    %206 = vector.extract_strided_slice %201 {offsets = [0, 0], sizes = [8, 128], strides = [1, 1]} : vector<8x192xf32> to vector<8x128xf32>
    %207 = vector.extract_strided_slice %205 {offsets = [0, 0], sizes = [8, 128], strides = [1, 1]} : vector<8x192xf32> to vector<8x128xf32>
    %208 = arith.addf %206, %207 : vector<8x128xf32>
    %209 = arith.negf %208 : vector<8x128xf32>
    %210 = math.exp %209 : vector<8x128xf32>
    %cst_84 = arith.constant 1.000000e+00 : f32
    %211 = vector.broadcast %cst_84 : f32 to vector<8x128xf32>
    %212 = arith.addf %211, %210 : vector<8x128xf32>
    %213 = arith.divf %211, %212 : vector<8x128xf32>
    %214 = vector.extract_strided_slice %213 {offsets = [0, 0], sizes = [8, 64], strides = [1, 1]} : vector<8x128xf32> to vector<8x64xf32>
    %215 = vector.extract_strided_slice %213 {offsets = [0, 64], sizes = [8, 64], strides = [1, 1]} : vector<8x128xf32> to vector<8x64xf32>
    %216 = vector.extract_strided_slice %201 {offsets = [0, 128], sizes = [8, 64], strides = [1, 1]} : vector<8x192xf32> to vector<8x64xf32>
    %217 = vector.extract_strided_slice %205 {offsets = [0, 128], sizes = [8, 64], strides = [1, 1]} : vector<8x192xf32> to vector<8x64xf32>
    %c0_85 = arith.constant 0 : index
    %c0_86 = arith.constant 0 : index
    %218 = vector.load %arg8[%c0_85, %c0_86] : memref<1x64xf32, #tpu.memory_space<vmem>>, vector<1x64xf32>
    %219 = vector.broadcast %218 : vector<1x64xf32> to vector<8x64xf32>
    %220 = arith.addf %217, %219 : vector<8x64xf32>
    %221 = arith.mulf %214, %220 : vector<8x64xf32>
    %222 = arith.addf %216, %221 : vector<8x64xf32>
    %223 = math.tanh %222 : vector<8x64xf32>
    %cst_87 = arith.constant 1.000000e+00 : f32
    %224 = vector.broadcast %cst_87 : f32 to vector<8x64xf32>
    %225 = arith.subf %224, %215 : vector<8x64xf32>
    %226 = arith.mulf %225, %223 : vector<8x64xf32>
    %227 = arith.mulf %215, %168 : vector<8x64xf32>
    %228 = arith.addf %226, %227 : vector<8x64xf32>
    %229 = vector.extract_strided_slice %228 {offsets = [0, 0], sizes = [8, 32], strides = [1, 1]} : vector<8x64xf32> to vector<8x32xf32>
    %230 = vector.extract_strided_slice %228 {offsets = [0, 32], sizes = [8, 32], strides = [1, 1]} : vector<8x64xf32> to vector<8x32xf32>
    %c0_88 = arith.constant 0 : index
    %c0_89 = arith.constant 0 : index
    %231 = vector.load %arg9[%c0_88, %c0_89] : memref<1x32xf32, #tpu.memory_space<vmem>>, vector<1x32xf32>
    %232 = vector.broadcast %231 : vector<1x32xf32> to vector<8x32xf32>
    %233 = arith.mulf %229, %232 : vector<8x32xf32>
    %cst_90 = arith.constant dense<0.000000e+00> : vector<8xf32>
    %234 = vector.multi_reduction <add>, %233, %cst_90 [1] : vector<8x32xf32> to vector<8xf32>
    %235 = vector.shape_cast %234 : vector<8xf32> to vector<8x1xf32>
    %c0_91 = arith.constant 0 : index
    %c0_92 = arith.constant 0 : index
    %236 = vector.load %arg10[%c0_91, %c0_92] : memref<1x1xf32, #tpu.memory_space<vmem>>, vector<1x1xf32>
    %237 = vector.broadcast %236 : vector<1x1xf32> to vector<8x1xf32>
    %238 = arith.addf %235, %237 : vector<8x1xf32>
    %c0_93 = arith.constant 0 : index
    %c0_94 = arith.constant 0 : index
    %239 = vector.load %arg11[%c0_93, %c0_94] : memref<32x32xf32, #tpu.memory_space<vmem>>, vector<32x32xf32>
    %cst_95 = arith.constant dense<0.000000e+00> : vector<8x32xf32>
    %240 = tpu.matmul %230, %239, %cst_95 {dimension_numbers = #tpu.dot_dimension_numbers<[1], [0], [0], [1], [0, 0, 1, 1], [], []>} : vector<8x32xf32>, vector<32x32xf32>, vector<8x32xf32> -> vector<8x32xf32>
    %c0_96 = arith.constant 0 : index
    %c0_97 = arith.constant 0 : index
    %241 = vector.load %arg12[%c0_96, %c0_97] : memref<1x32xf32, #tpu.memory_space<vmem>>, vector<1x32xf32>
    %242 = vector.broadcast %241 : vector<1x32xf32> to vector<8x32xf32>
    %243 = arith.addf %240, %242 : vector<8x32xf32>
    %244 = math.tanh %243 : vector<8x32xf32>
    %245 = arith.mulf %203, %244 : vector<8x32xf32>
    %246 = arith.maximumf %186, %238 : vector<8x1xf32>
    %247 = arith.subf %186, %246 : vector<8x1xf32>
    %248 = math.exp %247 : vector<8x1xf32>
    %249 = arith.subf %238, %246 : vector<8x1xf32>
    %250 = math.exp %249 : vector<8x1xf32>
    %251 = arith.mulf %192, %248 : vector<8x1xf32>
    %252 = arith.addf %251, %250 : vector<8x1xf32>
    %253 = vector.broadcast %248 : vector<8x1xf32> to vector<8x32xf32>
    %254 = arith.mulf %197, %253 : vector<8x32xf32>
    %255 = vector.broadcast %250 : vector<8x1xf32> to vector<8x32xf32>
    %256 = arith.mulf %255, %245 : vector<8x32xf32>
    %257 = arith.addf %254, %256 : vector<8x32xf32>
    %c4_i32 = arith.constant 4 : i32
    %c8_i32_98 = arith.constant 8 : i32
    %258 = arith.muli %c4_i32, %c8_i32_98 : i32
    %259 = tpu.assume_multiple %258, 8 : i32
    %260 = arith.index_cast %259 : i32 to index
    %c0_99 = arith.constant 0 : index
    %261 = vector.load %arg21[%260, %c0_99] : memref<64x192xf32, #tpu.memory_space<vmem>>, vector<8x192xf32>
    %262 = arith.index_cast %259 : i32 to index
    %c0_100 = arith.constant 0 : index
    %263 = vector.load %arg20[%262, %c0_100] : memref<64x32xf32, #tpu.memory_space<vmem>>, vector<8x32xf32>
    %c0_101 = arith.constant 0 : index
    %c0_102 = arith.constant 0 : index
    %264 = vector.load %arg7[%c0_101, %c0_102] : memref<64x192xf32, #tpu.memory_space<vmem>>, vector<64x192xf32>
    %cst_103 = arith.constant dense<0.000000e+00> : vector<8x192xf32>
    %265 = tpu.matmul %228, %264, %cst_103 {dimension_numbers = #tpu.dot_dimension_numbers<[1], [0], [0], [1], [0, 0, 1, 1], [], []>} : vector<8x64xf32>, vector<64x192xf32>, vector<8x192xf32> -> vector<8x192xf32>
    %266 = vector.extract_strided_slice %261 {offsets = [0, 0], sizes = [8, 128], strides = [1, 1]} : vector<8x192xf32> to vector<8x128xf32>
    %267 = vector.extract_strided_slice %265 {offsets = [0, 0], sizes = [8, 128], strides = [1, 1]} : vector<8x192xf32> to vector<8x128xf32>
    %268 = arith.addf %266, %267 : vector<8x128xf32>
    %269 = arith.negf %268 : vector<8x128xf32>
    %270 = math.exp %269 : vector<8x128xf32>
    %cst_104 = arith.constant 1.000000e+00 : f32
    %271 = vector.broadcast %cst_104 : f32 to vector<8x128xf32>
    %272 = arith.addf %271, %270 : vector<8x128xf32>
    %273 = arith.divf %271, %272 : vector<8x128xf32>
    %274 = vector.extract_strided_slice %273 {offsets = [0, 0], sizes = [8, 64], strides = [1, 1]} : vector<8x128xf32> to vector<8x64xf32>
    %275 = vector.extract_strided_slice %273 {offsets = [0, 64], sizes = [8, 64], strides = [1, 1]} : vector<8x128xf32> to vector<8x64xf32>
    %276 = vector.extract_strided_slice %261 {offsets = [0, 128], sizes = [8, 64], strides = [1, 1]} : vector<8x192xf32> to vector<8x64xf32>
    %277 = vector.extract_strided_slice %265 {offsets = [0, 128], sizes = [8, 64], strides = [1, 1]} : vector<8x192xf32> to vector<8x64xf32>
    %c0_105 = arith.constant 0 : index
    %c0_106 = arith.constant 0 : index
    %278 = vector.load %arg8[%c0_105, %c0_106] : memref<1x64xf32, #tpu.memory_space<vmem>>, vector<1x64xf32>
    %279 = vector.broadcast %278 : vector<1x64xf32> to vector<8x64xf32>
    %280 = arith.addf %277, %279 : vector<8x64xf32>
    %281 = arith.mulf %274, %280 : vector<8x64xf32>
    %282 = arith.addf %276, %281 : vector<8x64xf32>
    %283 = math.tanh %282 : vector<8x64xf32>
    %cst_107 = arith.constant 1.000000e+00 : f32
    %284 = vector.broadcast %cst_107 : f32 to vector<8x64xf32>
    %285 = arith.subf %284, %275 : vector<8x64xf32>
    %286 = arith.mulf %285, %283 : vector<8x64xf32>
    %287 = arith.mulf %275, %228 : vector<8x64xf32>
    %288 = arith.addf %286, %287 : vector<8x64xf32>
    %289 = vector.extract_strided_slice %288 {offsets = [0, 0], sizes = [8, 32], strides = [1, 1]} : vector<8x64xf32> to vector<8x32xf32>
    %290 = vector.extract_strided_slice %288 {offsets = [0, 32], sizes = [8, 32], strides = [1, 1]} : vector<8x64xf32> to vector<8x32xf32>
    %c0_108 = arith.constant 0 : index
    %c0_109 = arith.constant 0 : index
    %291 = vector.load %arg9[%c0_108, %c0_109] : memref<1x32xf32, #tpu.memory_space<vmem>>, vector<1x32xf32>
    %292 = vector.broadcast %291 : vector<1x32xf32> to vector<8x32xf32>
    %293 = arith.mulf %289, %292 : vector<8x32xf32>
    %cst_110 = arith.constant dense<0.000000e+00> : vector<8xf32>
    %294 = vector.multi_reduction <add>, %293, %cst_110 [1] : vector<8x32xf32> to vector<8xf32>
    %295 = vector.shape_cast %294 : vector<8xf32> to vector<8x1xf32>
    %c0_111 = arith.constant 0 : index
    %c0_112 = arith.constant 0 : index
    %296 = vector.load %arg10[%c0_111, %c0_112] : memref<1x1xf32, #tpu.memory_space<vmem>>, vector<1x1xf32>
    %297 = vector.broadcast %296 : vector<1x1xf32> to vector<8x1xf32>
    %298 = arith.addf %295, %297 : vector<8x1xf32>
    %c0_113 = arith.constant 0 : index
    %c0_114 = arith.constant 0 : index
    %299 = vector.load %arg11[%c0_113, %c0_114] : memref<32x32xf32, #tpu.memory_space<vmem>>, vector<32x32xf32>
    %cst_115 = arith.constant dense<0.000000e+00> : vector<8x32xf32>
    %300 = tpu.matmul %290, %299, %cst_115 {dimension_numbers = #tpu.dot_dimension_numbers<[1], [0], [0], [1], [0, 0, 1, 1], [], []>} : vector<8x32xf32>, vector<32x32xf32>, vector<8x32xf32> -> vector<8x32xf32>
    %c0_116 = arith.constant 0 : index
    %c0_117 = arith.constant 0 : index
    %301 = vector.load %arg12[%c0_116, %c0_117] : memref<1x32xf32, #tpu.memory_space<vmem>>, vector<1x32xf32>
    %302 = vector.broadcast %301 : vector<1x32xf32> to vector<8x32xf32>
    %303 = arith.addf %300, %302 : vector<8x32xf32>
    %304 = math.tanh %303 : vector<8x32xf32>
    %305 = arith.mulf %263, %304 : vector<8x32xf32>
    %306 = arith.maximumf %246, %298 : vector<8x1xf32>
    %307 = arith.subf %246, %306 : vector<8x1xf32>
    %308 = math.exp %307 : vector<8x1xf32>
    %309 = arith.subf %298, %306 : vector<8x1xf32>
    %310 = math.exp %309 : vector<8x1xf32>
    %311 = arith.mulf %252, %308 : vector<8x1xf32>
    %312 = arith.addf %311, %310 : vector<8x1xf32>
    %313 = vector.broadcast %308 : vector<8x1xf32> to vector<8x32xf32>
    %314 = arith.mulf %257, %313 : vector<8x32xf32>
    %315 = vector.broadcast %310 : vector<8x1xf32> to vector<8x32xf32>
    %316 = arith.mulf %315, %305 : vector<8x32xf32>
    %317 = arith.addf %314, %316 : vector<8x32xf32>
    %c5_i32 = arith.constant 5 : i32
    %c8_i32_118 = arith.constant 8 : i32
    %318 = arith.muli %c5_i32, %c8_i32_118 : i32
    %319 = tpu.assume_multiple %318, 8 : i32
    %320 = arith.index_cast %319 : i32 to index
    %c0_119 = arith.constant 0 : index
    %321 = vector.load %arg21[%320, %c0_119] : memref<64x192xf32, #tpu.memory_space<vmem>>, vector<8x192xf32>
    %322 = arith.index_cast %319 : i32 to index
    %c0_120 = arith.constant 0 : index
    %323 = vector.load %arg20[%322, %c0_120] : memref<64x32xf32, #tpu.memory_space<vmem>>, vector<8x32xf32>
    %c0_121 = arith.constant 0 : index
    %c0_122 = arith.constant 0 : index
    %324 = vector.load %arg7[%c0_121, %c0_122] : memref<64x192xf32, #tpu.memory_space<vmem>>, vector<64x192xf32>
    %cst_123 = arith.constant dense<0.000000e+00> : vector<8x192xf32>
    %325 = tpu.matmul %288, %324, %cst_123 {dimension_numbers = #tpu.dot_dimension_numbers<[1], [0], [0], [1], [0, 0, 1, 1], [], []>} : vector<8x64xf32>, vector<64x192xf32>, vector<8x192xf32> -> vector<8x192xf32>
    %326 = vector.extract_strided_slice %321 {offsets = [0, 0], sizes = [8, 128], strides = [1, 1]} : vector<8x192xf32> to vector<8x128xf32>
    %327 = vector.extract_strided_slice %325 {offsets = [0, 0], sizes = [8, 128], strides = [1, 1]} : vector<8x192xf32> to vector<8x128xf32>
    %328 = arith.addf %326, %327 : vector<8x128xf32>
    %329 = arith.negf %328 : vector<8x128xf32>
    %330 = math.exp %329 : vector<8x128xf32>
    %cst_124 = arith.constant 1.000000e+00 : f32
    %331 = vector.broadcast %cst_124 : f32 to vector<8x128xf32>
    %332 = arith.addf %331, %330 : vector<8x128xf32>
    %333 = arith.divf %331, %332 : vector<8x128xf32>
    %334 = vector.extract_strided_slice %333 {offsets = [0, 0], sizes = [8, 64], strides = [1, 1]} : vector<8x128xf32> to vector<8x64xf32>
    %335 = vector.extract_strided_slice %333 {offsets = [0, 64], sizes = [8, 64], strides = [1, 1]} : vector<8x128xf32> to vector<8x64xf32>
    %336 = vector.extract_strided_slice %321 {offsets = [0, 128], sizes = [8, 64], strides = [1, 1]} : vector<8x192xf32> to vector<8x64xf32>
    %337 = vector.extract_strided_slice %325 {offsets = [0, 128], sizes = [8, 64], strides = [1, 1]} : vector<8x192xf32> to vector<8x64xf32>
    %c0_125 = arith.constant 0 : index
    %c0_126 = arith.constant 0 : index
    %338 = vector.load %arg8[%c0_125, %c0_126] : memref<1x64xf32, #tpu.memory_space<vmem>>, vector<1x64xf32>
    %339 = vector.broadcast %338 : vector<1x64xf32> to vector<8x64xf32>
    %340 = arith.addf %337, %339 : vector<8x64xf32>
    %341 = arith.mulf %334, %340 : vector<8x64xf32>
    %342 = arith.addf %336, %341 : vector<8x64xf32>
    %343 = math.tanh %342 : vector<8x64xf32>
    %cst_127 = arith.constant 1.000000e+00 : f32
    %344 = vector.broadcast %cst_127 : f32 to vector<8x64xf32>
    %345 = arith.subf %344, %335 : vector<8x64xf32>
    %346 = arith.mulf %345, %343 : vector<8x64xf32>
    %347 = arith.mulf %335, %288 : vector<8x64xf32>
    %348 = arith.addf %346, %347 : vector<8x64xf32>
    %349 = vector.extract_strided_slice %348 {offsets = [0, 0], sizes = [8, 32], strides = [1, 1]} : vector<8x64xf32> to vector<8x32xf32>
    %350 = vector.extract_strided_slice %348 {offsets = [0, 32], sizes = [8, 32], strides = [1, 1]} : vector<8x64xf32> to vector<8x32xf32>
    %c0_128 = arith.constant 0 : index
    %c0_129 = arith.constant 0 : index
    %351 = vector.load %arg9[%c0_128, %c0_129] : memref<1x32xf32, #tpu.memory_space<vmem>>, vector<1x32xf32>
    %352 = vector.broadcast %351 : vector<1x32xf32> to vector<8x32xf32>
    %353 = arith.mulf %349, %352 : vector<8x32xf32>
    %cst_130 = arith.constant dense<0.000000e+00> : vector<8xf32>
    %354 = vector.multi_reduction <add>, %353, %cst_130 [1] : vector<8x32xf32> to vector<8xf32>
    %355 = vector.shape_cast %354 : vector<8xf32> to vector<8x1xf32>
    %c0_131 = arith.constant 0 : index
    %c0_132 = arith.constant 0 : index
    %356 = vector.load %arg10[%c0_131, %c0_132] : memref<1x1xf32, #tpu.memory_space<vmem>>, vector<1x1xf32>
    %357 = vector.broadcast %356 : vector<1x1xf32> to vector<8x1xf32>
    %358 = arith.addf %355, %357 : vector<8x1xf32>
    %c0_133 = arith.constant 0 : index
    %c0_134 = arith.constant 0 : index
    %359 = vector.load %arg11[%c0_133, %c0_134] : memref<32x32xf32, #tpu.memory_space<vmem>>, vector<32x32xf32>
    %cst_135 = arith.constant dense<0.000000e+00> : vector<8x32xf32>
    %360 = tpu.matmul %350, %359, %cst_135 {dimension_numbers = #tpu.dot_dimension_numbers<[1], [0], [0], [1], [0, 0, 1, 1], [], []>} : vector<8x32xf32>, vector<32x32xf32>, vector<8x32xf32> -> vector<8x32xf32>
    %c0_136 = arith.constant 0 : index
    %c0_137 = arith.constant 0 : index
    %361 = vector.load %arg12[%c0_136, %c0_137] : memref<1x32xf32, #tpu.memory_space<vmem>>, vector<1x32xf32>
    %362 = vector.broadcast %361 : vector<1x32xf32> to vector<8x32xf32>
    %363 = arith.addf %360, %362 : vector<8x32xf32>
    %364 = math.tanh %363 : vector<8x32xf32>
    %365 = arith.mulf %323, %364 : vector<8x32xf32>
    %366 = arith.maximumf %306, %358 : vector<8x1xf32>
    %367 = arith.subf %306, %366 : vector<8x1xf32>
    %368 = math.exp %367 : vector<8x1xf32>
    %369 = arith.subf %358, %366 : vector<8x1xf32>
    %370 = math.exp %369 : vector<8x1xf32>
    %371 = arith.mulf %312, %368 : vector<8x1xf32>
    %372 = arith.addf %371, %370 : vector<8x1xf32>
    %373 = vector.broadcast %368 : vector<8x1xf32> to vector<8x32xf32>
    %374 = arith.mulf %317, %373 : vector<8x32xf32>
    %375 = vector.broadcast %370 : vector<8x1xf32> to vector<8x32xf32>
    %376 = arith.mulf %375, %365 : vector<8x32xf32>
    %377 = arith.addf %374, %376 : vector<8x32xf32>
    %c6_i32 = arith.constant 6 : i32
    %c8_i32_138 = arith.constant 8 : i32
    %378 = arith.muli %c6_i32, %c8_i32_138 : i32
    %379 = tpu.assume_multiple %378, 8 : i32
    %380 = arith.index_cast %379 : i32 to index
    %c0_139 = arith.constant 0 : index
    %381 = vector.load %arg21[%380, %c0_139] : memref<64x192xf32, #tpu.memory_space<vmem>>, vector<8x192xf32>
    %382 = arith.index_cast %379 : i32 to index
    %c0_140 = arith.constant 0 : index
    %383 = vector.load %arg20[%382, %c0_140] : memref<64x32xf32, #tpu.memory_space<vmem>>, vector<8x32xf32>
    %c0_141 = arith.constant 0 : index
    %c0_142 = arith.constant 0 : index
    %384 = vector.load %arg7[%c0_141, %c0_142] : memref<64x192xf32, #tpu.memory_space<vmem>>, vector<64x192xf32>
    %cst_143 = arith.constant dense<0.000000e+00> : vector<8x192xf32>
    %385 = tpu.matmul %348, %384, %cst_143 {dimension_numbers = #tpu.dot_dimension_numbers<[1], [0], [0], [1], [0, 0, 1, 1], [], []>} : vector<8x64xf32>, vector<64x192xf32>, vector<8x192xf32> -> vector<8x192xf32>
    %386 = vector.extract_strided_slice %381 {offsets = [0, 0], sizes = [8, 128], strides = [1, 1]} : vector<8x192xf32> to vector<8x128xf32>
    %387 = vector.extract_strided_slice %385 {offsets = [0, 0], sizes = [8, 128], strides = [1, 1]} : vector<8x192xf32> to vector<8x128xf32>
    %388 = arith.addf %386, %387 : vector<8x128xf32>
    %389 = arith.negf %388 : vector<8x128xf32>
    %390 = math.exp %389 : vector<8x128xf32>
    %cst_144 = arith.constant 1.000000e+00 : f32
    %391 = vector.broadcast %cst_144 : f32 to vector<8x128xf32>
    %392 = arith.addf %391, %390 : vector<8x128xf32>
    %393 = arith.divf %391, %392 : vector<8x128xf32>
    %394 = vector.extract_strided_slice %393 {offsets = [0, 0], sizes = [8, 64], strides = [1, 1]} : vector<8x128xf32> to vector<8x64xf32>
    %395 = vector.extract_strided_slice %393 {offsets = [0, 64], sizes = [8, 64], strides = [1, 1]} : vector<8x128xf32> to vector<8x64xf32>
    %396 = vector.extract_strided_slice %381 {offsets = [0, 128], sizes = [8, 64], strides = [1, 1]} : vector<8x192xf32> to vector<8x64xf32>
    %397 = vector.extract_strided_slice %385 {offsets = [0, 128], sizes = [8, 64], strides = [1, 1]} : vector<8x192xf32> to vector<8x64xf32>
    %c0_145 = arith.constant 0 : index
    %c0_146 = arith.constant 0 : index
    %398 = vector.load %arg8[%c0_145, %c0_146] : memref<1x64xf32, #tpu.memory_space<vmem>>, vector<1x64xf32>
    %399 = vector.broadcast %398 : vector<1x64xf32> to vector<8x64xf32>
    %400 = arith.addf %397, %399 : vector<8x64xf32>
    %401 = arith.mulf %394, %400 : vector<8x64xf32>
    %402 = arith.addf %396, %401 : vector<8x64xf32>
    %403 = math.tanh %402 : vector<8x64xf32>
    %cst_147 = arith.constant 1.000000e+00 : f32
    %404 = vector.broadcast %cst_147 : f32 to vector<8x64xf32>
    %405 = arith.subf %404, %395 : vector<8x64xf32>
    %406 = arith.mulf %405, %403 : vector<8x64xf32>
    %407 = arith.mulf %395, %348 : vector<8x64xf32>
    %408 = arith.addf %406, %407 : vector<8x64xf32>
    %409 = vector.extract_strided_slice %408 {offsets = [0, 0], sizes = [8, 32], strides = [1, 1]} : vector<8x64xf32> to vector<8x32xf32>
    %410 = vector.extract_strided_slice %408 {offsets = [0, 32], sizes = [8, 32], strides = [1, 1]} : vector<8x64xf32> to vector<8x32xf32>
    %c0_148 = arith.constant 0 : index
    %c0_149 = arith.constant 0 : index
    %411 = vector.load %arg9[%c0_148, %c0_149] : memref<1x32xf32, #tpu.memory_space<vmem>>, vector<1x32xf32>
    %412 = vector.broadcast %411 : vector<1x32xf32> to vector<8x32xf32>
    %413 = arith.mulf %409, %412 : vector<8x32xf32>
    %cst_150 = arith.constant dense<0.000000e+00> : vector<8xf32>
    %414 = vector.multi_reduction <add>, %413, %cst_150 [1] : vector<8x32xf32> to vector<8xf32>
    %415 = vector.shape_cast %414 : vector<8xf32> to vector<8x1xf32>
    %c0_151 = arith.constant 0 : index
    %c0_152 = arith.constant 0 : index
    %416 = vector.load %arg10[%c0_151, %c0_152] : memref<1x1xf32, #tpu.memory_space<vmem>>, vector<1x1xf32>
    %417 = vector.broadcast %416 : vector<1x1xf32> to vector<8x1xf32>
    %418 = arith.addf %415, %417 : vector<8x1xf32>
    %c0_153 = arith.constant 0 : index
    %c0_154 = arith.constant 0 : index
    %419 = vector.load %arg11[%c0_153, %c0_154] : memref<32x32xf32, #tpu.memory_space<vmem>>, vector<32x32xf32>
    %cst_155 = arith.constant dense<0.000000e+00> : vector<8x32xf32>
    %420 = tpu.matmul %410, %419, %cst_155 {dimension_numbers = #tpu.dot_dimension_numbers<[1], [0], [0], [1], [0, 0, 1, 1], [], []>} : vector<8x32xf32>, vector<32x32xf32>, vector<8x32xf32> -> vector<8x32xf32>
    %c0_156 = arith.constant 0 : index
    %c0_157 = arith.constant 0 : index
    %421 = vector.load %arg12[%c0_156, %c0_157] : memref<1x32xf32, #tpu.memory_space<vmem>>, vector<1x32xf32>
    %422 = vector.broadcast %421 : vector<1x32xf32> to vector<8x32xf32>
    %423 = arith.addf %420, %422 : vector<8x32xf32>
    %424 = math.tanh %423 : vector<8x32xf32>
    %425 = arith.mulf %383, %424 : vector<8x32xf32>
    %426 = arith.maximumf %366, %418 : vector<8x1xf32>
    %427 = arith.subf %366, %426 : vector<8x1xf32>
    %428 = math.exp %427 : vector<8x1xf32>
    %429 = arith.subf %418, %426 : vector<8x1xf32>
    %430 = math.exp %429 : vector<8x1xf32>
    %431 = arith.mulf %372, %428 : vector<8x1xf32>
    %432 = arith.addf %431, %430 : vector<8x1xf32>
    %433 = vector.broadcast %428 : vector<8x1xf32> to vector<8x32xf32>
    %434 = arith.mulf %377, %433 : vector<8x32xf32>
    %435 = vector.broadcast %430 : vector<8x1xf32> to vector<8x32xf32>
    %436 = arith.mulf %435, %425 : vector<8x32xf32>
    %437 = arith.addf %434, %436 : vector<8x32xf32>
    %c7_i32 = arith.constant 7 : i32
    %c8_i32_158 = arith.constant 8 : i32
    %438 = arith.muli %c7_i32, %c8_i32_158 : i32
    %439 = tpu.assume_multiple %438, 8 : i32
    %440 = arith.index_cast %439 : i32 to index
    %c0_159 = arith.constant 0 : index
    %441 = vector.load %arg21[%440, %c0_159] : memref<64x192xf32, #tpu.memory_space<vmem>>, vector<8x192xf32>
    %442 = arith.index_cast %439 : i32 to index
    %c0_160 = arith.constant 0 : index
    %443 = vector.load %arg20[%442, %c0_160] : memref<64x32xf32, #tpu.memory_space<vmem>>, vector<8x32xf32>
    %c0_161 = arith.constant 0 : index
    %c0_162 = arith.constant 0 : index
    %444 = vector.load %arg7[%c0_161, %c0_162] : memref<64x192xf32, #tpu.memory_space<vmem>>, vector<64x192xf32>
    %cst_163 = arith.constant dense<0.000000e+00> : vector<8x192xf32>
    %445 = tpu.matmul %408, %444, %cst_163 {dimension_numbers = #tpu.dot_dimension_numbers<[1], [0], [0], [1], [0, 0, 1, 1], [], []>} : vector<8x64xf32>, vector<64x192xf32>, vector<8x192xf32> -> vector<8x192xf32>
    %446 = vector.extract_strided_slice %441 {offsets = [0, 0], sizes = [8, 128], strides = [1, 1]} : vector<8x192xf32> to vector<8x128xf32>
    %447 = vector.extract_strided_slice %445 {offsets = [0, 0], sizes = [8, 128], strides = [1, 1]} : vector<8x192xf32> to vector<8x128xf32>
    %448 = arith.addf %446, %447 : vector<8x128xf32>
    %449 = arith.negf %448 : vector<8x128xf32>
    %450 = math.exp %449 : vector<8x128xf32>
    %cst_164 = arith.constant 1.000000e+00 : f32
    %451 = vector.broadcast %cst_164 : f32 to vector<8x128xf32>
    %452 = arith.addf %451, %450 : vector<8x128xf32>
    %453 = arith.divf %451, %452 : vector<8x128xf32>
    %454 = vector.extract_strided_slice %453 {offsets = [0, 0], sizes = [8, 64], strides = [1, 1]} : vector<8x128xf32> to vector<8x64xf32>
    %455 = vector.extract_strided_slice %453 {offsets = [0, 64], sizes = [8, 64], strides = [1, 1]} : vector<8x128xf32> to vector<8x64xf32>
    %456 = vector.extract_strided_slice %441 {offsets = [0, 128], sizes = [8, 64], strides = [1, 1]} : vector<8x192xf32> to vector<8x64xf32>
    %457 = vector.extract_strided_slice %445 {offsets = [0, 128], sizes = [8, 64], strides = [1, 1]} : vector<8x192xf32> to vector<8x64xf32>
    %c0_165 = arith.constant 0 : index
    %c0_166 = arith.constant 0 : index
    %458 = vector.load %arg8[%c0_165, %c0_166] : memref<1x64xf32, #tpu.memory_space<vmem>>, vector<1x64xf32>
    %459 = vector.broadcast %458 : vector<1x64xf32> to vector<8x64xf32>
    %460 = arith.addf %457, %459 : vector<8x64xf32>
    %461 = arith.mulf %454, %460 : vector<8x64xf32>
    %462 = arith.addf %456, %461 : vector<8x64xf32>
    %463 = math.tanh %462 : vector<8x64xf32>
    %cst_167 = arith.constant 1.000000e+00 : f32
    %464 = vector.broadcast %cst_167 : f32 to vector<8x64xf32>
    %465 = arith.subf %464, %455 : vector<8x64xf32>
    %466 = arith.mulf %465, %463 : vector<8x64xf32>
    %467 = arith.mulf %455, %408 : vector<8x64xf32>
    %468 = arith.addf %466, %467 : vector<8x64xf32>
    %469 = vector.extract_strided_slice %468 {offsets = [0, 0], sizes = [8, 32], strides = [1, 1]} : vector<8x64xf32> to vector<8x32xf32>
    %470 = vector.extract_strided_slice %468 {offsets = [0, 32], sizes = [8, 32], strides = [1, 1]} : vector<8x64xf32> to vector<8x32xf32>
    %c0_168 = arith.constant 0 : index
    %c0_169 = arith.constant 0 : index
    %471 = vector.load %arg9[%c0_168, %c0_169] : memref<1x32xf32, #tpu.memory_space<vmem>>, vector<1x32xf32>
    %472 = vector.broadcast %471 : vector<1x32xf32> to vector<8x32xf32>
    %473 = arith.mulf %469, %472 : vector<8x32xf32>
    %cst_170 = arith.constant dense<0.000000e+00> : vector<8xf32>
    %474 = vector.multi_reduction <add>, %473, %cst_170 [1] : vector<8x32xf32> to vector<8xf32>
    %475 = vector.shape_cast %474 : vector<8xf32> to vector<8x1xf32>
    %c0_171 = arith.constant 0 : index
    %c0_172 = arith.constant 0 : index
    %476 = vector.load %arg10[%c0_171, %c0_172] : memref<1x1xf32, #tpu.memory_space<vmem>>, vector<1x1xf32>
    %477 = vector.broadcast %476 : vector<1x1xf32> to vector<8x1xf32>
    %478 = arith.addf %475, %477 : vector<8x1xf32>
    %c0_173 = arith.constant 0 : index
    %c0_174 = arith.constant 0 : index
    %479 = vector.load %arg11[%c0_173, %c0_174] : memref<32x32xf32, #tpu.memory_space<vmem>>, vector<32x32xf32>
    %cst_175 = arith.constant dense<0.000000e+00> : vector<8x32xf32>
    %480 = tpu.matmul %470, %479, %cst_175 {dimension_numbers = #tpu.dot_dimension_numbers<[1], [0], [0], [1], [0, 0, 1, 1], [], []>} : vector<8x32xf32>, vector<32x32xf32>, vector<8x32xf32> -> vector<8x32xf32>
    %c0_176 = arith.constant 0 : index
    %c0_177 = arith.constant 0 : index
    %481 = vector.load %arg12[%c0_176, %c0_177] : memref<1x32xf32, #tpu.memory_space<vmem>>, vector<1x32xf32>
    %482 = vector.broadcast %481 : vector<1x32xf32> to vector<8x32xf32>
    %483 = arith.addf %480, %482 : vector<8x32xf32>
    %484 = math.tanh %483 : vector<8x32xf32>
    %485 = arith.mulf %443, %484 : vector<8x32xf32>
    %486 = arith.maximumf %426, %478 : vector<8x1xf32>
    %487 = arith.subf %426, %486 : vector<8x1xf32>
    %488 = math.exp %487 : vector<8x1xf32>
    %489 = arith.subf %478, %486 : vector<8x1xf32>
    %490 = math.exp %489 : vector<8x1xf32>
    %491 = arith.mulf %432, %488 : vector<8x1xf32>
    %492 = arith.addf %491, %490 : vector<8x1xf32>
    %493 = vector.broadcast %488 : vector<8x1xf32> to vector<8x32xf32>
    %494 = arith.mulf %437, %493 : vector<8x32xf32>
    %495 = vector.broadcast %490 : vector<8x1xf32> to vector<8x32xf32>
    %496 = arith.mulf %495, %485 : vector<8x32xf32>
    %497 = arith.addf %494, %496 : vector<8x32xf32>
    %c8_i32_178 = arith.constant 8 : i32
    %498 = vector.broadcast %492 : vector<8x1xf32> to vector<8x32xf32>
    %499 = arith.divf %497, %498 : vector<8x32xf32>
    %c0_179 = arith.constant 0 : index
    %c0_180 = arith.constant 0 : index
    %500 = vector.load %arg2[%c0_179, %c0_180] : memref<8x8xf32, #tpu.memory_space<vmem>>, vector<8x8xf32>
    %c0_181 = arith.constant 0 : index
    %c0_182 = arith.constant 0 : index
    %501 = vector.load %arg13[%c0_181, %c0_182] : memref<32x64xf32, #tpu.memory_space<vmem>>, vector<32x64xf32>
    %cst_183 = arith.constant dense<0.000000e+00> : vector<8x64xf32>
    %502 = tpu.matmul %499, %501, %cst_183 {dimension_numbers = #tpu.dot_dimension_numbers<[1], [0], [0], [1], [0, 0, 1, 1], [], []>} : vector<8x32xf32>, vector<32x64xf32>, vector<8x64xf32> -> vector<8x64xf32>
    %c0_184 = arith.constant 0 : index
    %c0_185 = arith.constant 0 : index
    %503 = vector.load %arg14[%c0_184, %c0_185] : memref<8x64xf32, #tpu.memory_space<vmem>>, vector<8x64xf32>
    %cst_186 = arith.constant dense<0.000000e+00> : vector<8x64xf32>
    %504 = tpu.matmul %500, %503, %cst_186 {dimension_numbers = #tpu.dot_dimension_numbers<[1], [0], [0], [1], [0, 0, 1, 1], [], []>} : vector<8x8xf32>, vector<8x64xf32>, vector<8x64xf32> -> vector<8x64xf32>
    %505 = arith.addf %502, %504 : vector<8x64xf32>
    %c0_187 = arith.constant 0 : index
    %c0_188 = arith.constant 0 : index
    %506 = vector.load %arg15[%c0_187, %c0_188] : memref<1x64xf32, #tpu.memory_space<vmem>>, vector<1x64xf32>
    %507 = vector.broadcast %506 : vector<1x64xf32> to vector<8x64xf32>
    %508 = arith.addf %505, %507 : vector<8x64xf32>
    %cst_189 = arith.constant 0.000000e+00 : f32
    %509 = vector.broadcast %cst_189 : f32 to vector<8x64xf32>
    %510 = arith.maximumf %508, %509 : vector<8x64xf32>
    %c0_190 = arith.constant 0 : index
    %c0_191 = arith.constant 0 : index
    %511 = vector.load %arg16[%c0_190, %c0_191] : memref<64x128xf32, #tpu.memory_space<vmem>>, vector<64x128xf32>
    %cst_192 = arith.constant dense<0.000000e+00> : vector<8x128xf32>
    %512 = tpu.matmul %510, %511, %cst_192 {dimension_numbers = #tpu.dot_dimension_numbers<[1], [0], [0], [1], [0, 0, 1, 1], [], []>} : vector<8x64xf32>, vector<64x128xf32>, vector<8x128xf32> -> vector<8x128xf32>
    %c0_193 = arith.constant 0 : index
    %c0_194 = arith.constant 0 : index
    %513 = vector.load %arg17[%c0_193, %c0_194] : memref<1x128xf32, #tpu.memory_space<vmem>>, vector<1x128xf32>
    %514 = vector.broadcast %513 : vector<1x128xf32> to vector<8x128xf32>
    %515 = arith.addf %512, %514 : vector<8x128xf32>
    %c0_195 = arith.constant 0 : index
    %c0_196 = arith.constant 0 : index
    %516 = vector.load %arg18[%c0_195, %c0_196] : memref<8x128xf32, #tpu.memory_space<vmem>>, vector<8x128xf32>
    tpu.vector_store %arg18[%c0_195, %c0_196], %515 {strides = array<i32>} : memref<8x128xf32, #tpu.memory_space<vmem>>, vector<8x128xf32>,
    %cst_197 = arith.constant 0.000000e+00 : f32
    %517 = vector.broadcast %cst_197 : f32 to vector<8x96xf32>
    %518 = tpu.concatenate %499, %517 in 1 : vector<8x32xf32>, vector<8x96xf32> -> vector<8x128xf32>
    %c0_198 = arith.constant 0 : index
    %c0_199 = arith.constant 0 : index
    %519 = vector.load %arg19[%c0_198, %c0_199] : memref<8x128xf32, #tpu.memory_space<vmem>>, vector<8x128xf32>
    tpu.vector_store %arg19[%c0_198, %c0_199], %518 {strides = array<i32>} : memref<8x128xf32, #tpu.memory_space<vmem>>, vector<8x128xf32>,
    return
  }
  func.func @transform_0(%arg0: i32) -> (i32, i32, i32) {
    %c0_i32 = arith.constant 0 : i32
    %c0_i32_0 = arith.constant 0 : i32
    %c0_i32_1 = arith.constant 0 : i32
    return %c0_i32, %arg0, %c0_i32_0 : i32, i32, i32
  }
  func.func @transform_1(%arg0: i32) -> (i32, i32) {
    %c0_i32 = arith.constant 0 : i32
    %c0_i32_0 = arith.constant 0 : i32
    return %arg0, %c0_i32 : i32, i32
  }
  func.func @transform_2(%arg0: i32) -> (i32, i32) {
    %c0_i32 = arith.constant 0 : i32
    %c0_i32_0 = arith.constant 0 : i32
    %c0_i32_1 = arith.constant 0 : i32
    return %c0_i32, %c0_i32_0 : i32, i32
  }
  func.func @transform_3(%arg0: i32) -> (i32, i32) {
    %c0_i32 = arith.constant 0 : i32
    %c0_i32_0 = arith.constant 0 : i32
    %c0_i32_1 = arith.constant 0 : i32
    return %c0_i32, %c0_i32_0 : i32, i32
  }
  func.func @transform_4(%arg0: i32) -> (i32, i32) {
    %c0_i32 = arith.constant 0 : i32
    %c0_i32_0 = arith.constant 0 : i32
    %c0_i32_1 = arith.constant 0 : i32
    return %c0_i32, %c0_i32_0 : i32, i32
  }
  func.func @transform_5(%arg0: i32) -> (i32, i32) {
    %c0_i32 = arith.constant 0 : i32
    %c0_i32_0 = arith.constant 0 : i32
    %c0_i32_1 = arith.constant 0 : i32
    return %c0_i32, %c0_i32_0 : i32, i32
  }
  func.func @transform_6(%arg0: i32) -> (i32, i32) {
    %c0_i32 = arith.constant 0 : i32
    %c0_i32_0 = arith.constant 0 : i32
    %c0_i32_1 = arith.constant 0 : i32
    return %c0_i32, %c0_i32_0 : i32, i32
  }
  func.func @transform_7(%arg0: i32) -> (i32, i32) {
    %c0_i32 = arith.constant 0 : i32
    %c0_i32_0 = arith.constant 0 : i32
    %c0_i32_1 = arith.constant 0 : i32
    return %c0_i32, %c0_i32_0 : i32, i32
  }
  func.func @transform_8(%arg0: i32) -> (i32, i32) {
    %c0_i32 = arith.constant 0 : i32
    %c0_i32_0 = arith.constant 0 : i32
    %c0_i32_1 = arith.constant 0 : i32
    return %c0_i32, %c0_i32_0 : i32, i32
  }
  func.func @transform_9(%arg0: i32) -> (i32, i32) {
    %c0_i32 = arith.constant 0 : i32
    %c0_i32_0 = arith.constant 0 : i32
    %c0_i32_1 = arith.constant 0 : i32
    return %c0_i32, %c0_i32_0 : i32, i32
  }
  func.func @transform_10(%arg0: i32) -> (i32, i32) {
    %c0_i32 = arith.constant 0 : i32
    %c0_i32_0 = arith.constant 0 : i32
    %c0_i32_1 = arith.constant 0 : i32
    return %c0_i32, %c0_i32_0 : i32, i32
  }
  func.func @transform_11(%arg0: i32) -> (i32, i32) {
    %c0_i32 = arith.constant 0 : i32
    %c0_i32_0 = arith.constant 0 : i32
    %c0_i32_1 = arith.constant 0 : i32
    return %c0_i32, %c0_i32_0 : i32, i32
  }
  func.func @transform_12(%arg0: i32) -> (i32, i32) {
    %c0_i32 = arith.constant 0 : i32
    %c0_i32_0 = arith.constant 0 : i32
    %c0_i32_1 = arith.constant 0 : i32
    return %c0_i32, %c0_i32_0 : i32, i32
  }
  func.func @transform_13(%arg0: i32) -> (i32, i32) {
    %c0_i32 = arith.constant 0 : i32
    %c0_i32_0 = arith.constant 0 : i32
    %c0_i32_1 = arith.constant 0 : i32
    return %c0_i32, %c0_i32_0 : i32, i32
  }
  func.func @transform_14(%arg0: i32) -> (i32, i32) {
    %c0_i32 = arith.constant 0 : i32
    %c0_i32_0 = arith.constant 0 : i32
    %c0_i32_1 = arith.constant 0 : i32
    return %c0_i32, %c0_i32_0 : i32, i32
  }
  func.func @transform_15(%arg0: i32) -> (i32, i32) {
    %c0_i32 = arith.constant 0 : i32
    %c0_i32_0 = arith.constant 0 : i32
    %c0_i32_1 = arith.constant 0 : i32
    return %c0_i32, %c0_i32_0 : i32, i32
  }
  func.func @transform_16(%arg0: i32) -> (i32, i32) {
    %c0_i32 = arith.constant 0 : i32
    %c0_i32_0 = arith.constant 0 : i32
    %c0_i32_1 = arith.constant 0 : i32
    return %c0_i32, %c0_i32_0 : i32, i32
  }
  func.func @transform_17(%arg0: i32) -> (i32, i32) {
    %c0_i32 = arith.constant 0 : i32
    %c0_i32_0 = arith.constant 0 : i32
    return %arg0, %c0_i32 : i32, i32
  }
  func.func @transform_18(%arg0: i32) -> (i32, i32) {
    %c0_i32 = arith.constant 0 : i32
    %c0_i32_0 = arith.constant 0 : i32
    return %arg0, %c0_i32 : i32, i32
  }
}

module attributes {stable_mosaic.version = 11 : i64} {
  func.func @_retain_kernel(%arg0: i32, %arg1: memref<8x8x64xf32, #tpu.memory_space<vmem>>, %arg2: memref<8x8xf32, #tpu.memory_space<vmem>>, %arg3: memref<64x32xf32, #tpu.memory_space<vmem>>, %arg4: memref<1x32xf32, #tpu.memory_space<vmem>>, %arg5: memref<32x192xf32, #tpu.memory_space<vmem>>, %arg6: memref<1x192xf32, #tpu.memory_space<vmem>>, %arg7: memref<64x192xf32, #tpu.memory_space<vmem>>, %arg8: memref<1x64xf32, #tpu.memory_space<vmem>>, %arg9: memref<1x32xf32, #tpu.memory_space<vmem>>, %arg10: memref<1x1xf32, #tpu.memory_space<vmem>>, %arg11: memref<32x32xf32, #tpu.memory_space<vmem>>, %arg12: memref<1x32xf32, #tpu.memory_space<vmem>>, %arg13: memref<32x64xf32, #tpu.memory_space<vmem>>, %arg14: memref<8x64xf32, #tpu.memory_space<vmem>>, %arg15: memref<1x64xf32, #tpu.memory_space<vmem>>, %arg16: memref<64x128xf32, #tpu.memory_space<vmem>>, %arg17: memref<1x128xf32, #tpu.memory_space<vmem>>, %arg18: memref<8x128xf32, #tpu.memory_space<vmem>>, %arg19: memref<8x128xf32, #tpu.memory_space<vmem>>, %arg20: memref<64x32xf32, #tpu.memory_space<vmem>>, %arg21: memref<64x192xf32, #tpu.memory_space<vmem>>) attributes {dimension_semantics = [#tpu.dimension_semantics<parallel>], iteration_bounds = array<i64: 1>, scalar_prefetch = 0 : i64, scratch_operands = 2 : i64, tpu.core_type = #tpu.core_type<tc>, window_params = [{transform_indices = @transform_0, window_bounds = array<i64: 8, 8, 64>}, {transform_indices = @transform_1, window_bounds = array<i64: 8, 8>}, {pipeline_mode = #tpu.pipeline_mode<synchronous>, transform_indices = @transform_2, window_bounds = array<i64: 64, 32>}, {pipeline_mode = #tpu.pipeline_mode<synchronous>, transform_indices = @transform_3, window_bounds = array<i64: 1, 32>}, {pipeline_mode = #tpu.pipeline_mode<synchronous>, transform_indices = @transform_4, window_bounds = array<i64: 32, 192>}, {pipeline_mode = #tpu.pipeline_mode<synchronous>, transform_indices = @transform_5, window_bounds = array<i64: 1, 192>}, {pipeline_mode = #tpu.pipeline_mode<synchronous>, transform_indices = @transform_6, window_bounds = array<i64: 64, 192>}, {pipeline_mode = #tpu.pipeline_mode<synchronous>, transform_indices = @transform_7, window_bounds = array<i64: 1, 64>}, {pipeline_mode = #tpu.pipeline_mode<synchronous>, transform_indices = @transform_8, window_bounds = array<i64: 1, 32>}, {pipeline_mode = #tpu.pipeline_mode<synchronous>, transform_indices = @transform_9, window_bounds = array<i64: 1, 1>}, {pipeline_mode = #tpu.pipeline_mode<synchronous>, transform_indices = @transform_10, window_bounds = array<i64: 32, 32>}, {pipeline_mode = #tpu.pipeline_mode<synchronous>, transform_indices = @transform_11, window_bounds = array<i64: 1, 32>}, {pipeline_mode = #tpu.pipeline_mode<synchronous>, transform_indices = @transform_12, window_bounds = array<i64: 32, 64>}, {pipeline_mode = #tpu.pipeline_mode<synchronous>, transform_indices = @transform_13, window_bounds = array<i64: 8, 64>}, {pipeline_mode = #tpu.pipeline_mode<synchronous>, transform_indices = @transform_14, window_bounds = array<i64: 1, 64>}, {pipeline_mode = #tpu.pipeline_mode<synchronous>, transform_indices = @transform_15, window_bounds = array<i64: 64, 128>}, {pipeline_mode = #tpu.pipeline_mode<synchronous>, transform_indices = @transform_16, window_bounds = array<i64: 1, 128>}, {transform_indices = @transform_17, window_bounds = array<i64: 8, 128>}, {transform_indices = @transform_18, window_bounds = array<i64: 8, 128>}]} {
    %c0 = arith.constant 0 : index
    %c0_0 = arith.constant 0 : index
    %c0_1 = arith.constant 0 : index
    %0 = vector.load %arg1[%c0, %c0_0, %c0_1] : memref<8x8x64xf32, #tpu.memory_space<vmem>>, vector<8x8x64xf32>
    %1 = vector.shape_cast %0 : vector<8x8x64xf32> to vector<64x64xf32>
    %c0_2 = arith.constant 0 : index
    %c0_3 = arith.constant 0 : index
    %2 = vector.load %arg3[%c0_2, %c0_3] : memref<64x32xf32, #tpu.memory_space<vmem>>, vector<64x32xf32>
    %cst = arith.constant dense<0.000000e+00> : vector<64x32xf32>
    %3 = tpu.matmul %1, %2, %cst {dimension_numbers = #tpu.dot_dimension_numbers<[1], [0], [0], [1], [0, 0, 1, 1], [], []>} : vector<64x64xf32>, vector<64x32xf32>, vector<64x32xf32> -> vector<64x32xf32>
    %c0_4 = arith.constant 0 : index
    %c0_5 = arith.constant 0 : index
    %4 = vector.load %arg4[%c0_4, %c0_5] : memref<1x32xf32, #tpu.memory_space<vmem>>, vector<1x32xf32>
    %5 = vector.broadcast %4 : vector<1x32xf32> to vector<64x32xf32>
    %6 = arith.addf %3, %5 : vector<64x32xf32>
    %c0_6 = arith.constant 0 : index
    %c0_7 = arith.constant 0 : index
    %7 = vector.load %arg20[%c0_6, %c0_7] : memref<64x32xf32, #tpu.memory_space<vmem>>, vector<64x32xf32>
    tpu.vector_store %arg20[%c0_6, %c0_7], %6 {strides = array<i32>} : memref<64x32xf32, #tpu.memory_space<vmem>>, vector<64x32xf32>,
    %c0_8 = arith.constant 0 : index
    %c0_9 = arith.constant 0 : index
    %8 = vector.load %arg5[%c0_8, %c0_9] : memref<32x192xf32, #tpu.memory_space<vmem>>, vector<32x192xf32>
    %cst_10 = arith.constant dense<0.000000e+00> : vector<64x192xf32>
    %9 = tpu.matmul %6, %8, %cst_10 {dimension_numbers = #tpu.dot_dimension_numbers<[1], [0], [0], [1], [0, 0, 1, 1], [], []>} : vector<64x32xf32>, vector<32x192xf32>, vector<64x192xf32> -> vector<64x192xf32>
    %c0_11 = arith.constant 0 : index
    %c0_12 = arith.constant 0 : index
    %10 = vector.load %arg6[%c0_11, %c0_12] : memref<1x192xf32, #tpu.memory_space<vmem>>, vector<1x192xf32>
    %11 = vector.broadcast %10 : vector<1x192xf32> to vector<64x192xf32>
    %12 = arith.addf %9, %11 : vector<64x192xf32>
    %c0_13 = arith.constant 0 : index
    %c0_14 = arith.constant 0 : index
    %13 = vector.load %arg21[%c0_13, %c0_14] : memref<64x192xf32, #tpu.memory_space<vmem>>, vector<64x192xf32>
    tpu.vector_store %arg21[%c0_13, %c0_14], %12 {strides = array<i32>} : memref<64x192xf32, #tpu.memory_space<vmem>>, vector<64x192xf32>,
    %cst_15 = arith.constant 0.000000e+00 : f32
    %14 = vector.broadcast %cst_15 : f32 to vector<8x64xf32>
    %cst_16 = arith.constant 0xFF800000 : f32
    %15 = vector.broadcast %cst_16 : f32 to vector<8x1xf32>
    %cst_17 = arith.constant 0.000000e+00 : f32
    %16 = vector.broadcast %cst_17 : f32 to vector<8x1xf32>
    %cst_18 = arith.constant 0.000000e+00 : f32
    %17 = vector.broadcast %cst_18 : f32 to vector<8x32xf32>
    %c0_i32 = arith.constant 0 : i32
    %c8_i32 = arith.constant 8 : i32
    %18 = arith.muli %c0_i32, %c8_i32 : i32
    %19 = tpu.assume_multiple %18, 8 : i32
    %20 = arith.index_cast %19 : i32 to index
    %c0_19 = arith.constant 0 : index
    %21 = vector.load %arg21[%20, %c0_19] : memref<64x192xf32, #tpu.memory_space<vmem>>, vector<8x192xf32>
    %22 = arith.index_cast %19 : i32 to index
    %c0_20 = arith.constant 0 : index
    %23 = vector.load %arg20[%22, %c0_20] : memref<64x32xf32, #tpu.memory_space<vmem>>, vector<8x32xf32>
    %c0_21 = arith.constant 0 : index
    %c0_22 = arith.constant 0 : index
    %24 = vector.load %arg7[%c0_21, %c0_22] : memref<64x192xf32, #tpu.memory_space<vmem>>, vector<64x192xf32>
    %cst_23 = arith.constant dense<0.000000e+00> : vector<8x192xf32>
    %25 = tpu.matmul %14, %24, %cst_23 {dimension_numbers = #tpu.dot_dimension_numbers<[1], [0], [0], [1], [0, 0, 1, 1], [], []>} : vector<8x64xf32>, vector<64x192xf32>, vector<8x192xf32> -> vector<8x192xf32>
    %26 = vector.extract_strided_slice %21 {offsets = [0, 0], sizes = [8, 128], strides = [1, 1]} : vector<8x192xf32> to vector<8x128xf32>
    %27 = vector.extract_strided_slice %25 {offsets = [0, 0], sizes = [8, 128], strides = [1, 1]} : vector<8x192xf32> to vector<8x128xf32>
    %28 = arith.addf %26, %27 : vector<8x128xf32>
    %29 = arith.negf %28 : vector<8x128xf32>
    %30 = math.exp %29 : vector<8x128xf32>
    %cst_24 = arith.constant 1.000000e+00 : f32
    %31 = vector.broadcast %cst_24 : f32 to vector<8x128xf32>
    %32 = arith.addf %31, %30 : vector<8x128xf32>
    %33 = arith.divf %31, %32 : vector<8x128xf32>
    %34 = vector.extract_strided_slice %33 {offsets = [0, 0], sizes = [8, 64], strides = [1, 1]} : vector<8x128xf32> to vector<8x64xf32>
    %35 = vector.extract_strided_slice %33 {offsets = [0, 64], sizes = [8, 64], strides = [1, 1]} : vector<8x128xf32> to vector<8x64xf32>
    %36 = vector.extract_strided_slice %21 {offsets = [0, 128], sizes = [8, 64], strides = [1, 1]} : vector<8x192xf32> to vector<8x64xf32>
    %37 = vector.extract_strided_slice %25 {offsets = [0, 128], sizes = [8, 64], strides = [1, 1]} : vector<8x192xf32> to vector<8x64xf32>
    %c0_25 = arith.constant 0 : index
    %c0_26 = arith.constant 0 : index
    %38 = vector.load %arg8[%c0_25, %c0_26] : memref<1x64xf32, #tpu.memory_space<vmem>>, vector<1x64xf32>
    %39 = vector.broadcast %38 : vector<1x64xf32> to vector<8x64xf32>
    %40 = arith.addf %37, %39 : vector<8x64xf32>
    %41 = arith.mulf %34, %40 : vector<8x64xf32>
    %42 = arith.addf %36, %41 : vector<8x64xf32>
    %43 = math.tanh %42 : vector<8x64xf32>
    %cst_27 = arith.constant 1.000000e+00 : f32
    %44 = vector.broadcast %cst_27 : f32 to vector<8x64xf32>
    %45 = arith.subf %44, %35 : vector<8x64xf32>
    %46 = arith.mulf %45, %43 : vector<8x64xf32>
    %47 = arith.mulf %35, %14 : vector<8x64xf32>
    %48 = arith.addf %46, %47 : vector<8x64xf32>
    %49 = vector.extract_strided_slice %48 {offsets = [0, 0], sizes = [8, 32], strides = [1, 1]} : vector<8x64xf32> to vector<8x32xf32>
    %50 = vector.extract_strided_slice %48 {offsets = [0, 32], sizes = [8, 32], strides = [1, 1]} : vector<8x64xf32> to vector<8x32xf32>
    %c0_28 = arith.constant 0 : index
    %c0_29 = arith.constant 0 : index
    %51 = vector.load %arg9[%c0_28, %c0_29] : memref<1x32xf32, #tpu.memory_space<vmem>>, vector<1x32xf32>
    %52 = vector.broadcast %51 : vector<1x32xf32> to vector<8x32xf32>
    %53 = arith.mulf %49, %52 : vector<8x32xf32>
    %cst_30 = arith.constant dense<0.000000e+00> : vector<8xf32>
    %54 = vector.multi_reduction <add>, %53, %cst_30 [1] : vector<8x32xf32> to vector<8xf32>
    %55 = vector.shape_cast %54 : vector<8xf32> to vector<8x1xf32>
    %c0_31 = arith.constant 0 : index
    %c0_32 = arith.constant 0 : index
    %56 = vector.load %arg10[%c0_31, %c0_32] : memref<1x1xf32, #tpu.memory_space<vmem>>, vector<1x1xf32>
    %57 = vector.broadcast %56 : vector<1x1xf32> to vector<8x1xf32>
    %58 = arith.addf %55, %57 : vector<8x1xf32>
    %c0_33 = arith.constant 0 : index
    %c0_34 = arith.constant 0 : index
    %59 = vector.load %arg11[%c0_33, %c0_34] : memref<32x32xf32, #tpu.memory_space<vmem>>, vector<32x32xf32>
    %cst_35 = arith.constant dense<0.000000e+00> : vector<8x32xf32>
    %60 = tpu.matmul %50, %59, %cst_35 {dimension_numbers = #tpu.dot_dimension_numbers<[1], [0], [0], [1], [0, 0, 1, 1], [], []>} : vector<8x32xf32>, vector<32x32xf32>, vector<8x32xf32> -> vector<8x32xf32>
    %c0_36 = arith.constant 0 : index
    %c0_37 = arith.constant 0 : index
    %61 = vector.load %arg12[%c0_36, %c0_37] : memref<1x32xf32, #tpu.memory_space<vmem>>, vector<1x32xf32>
    %62 = vector.broadcast %61 : vector<1x32xf32> to vector<8x32xf32>
    %63 = arith.addf %60, %62 : vector<8x32xf32>
    %64 = math.tanh %63 : vector<8x32xf32>
    %65 = arith.mulf %23, %64 : vector<8x32xf32>
    %66 = arith.maximumf %15, %58 : vector<8x1xf32>
    %67 = arith.subf %15, %66 : vector<8x1xf32>
    %68 = math.exp %67 : vector<8x1xf32>
    %69 = arith.subf %58, %66 : vector<8x1xf32>
    %70 = math.exp %69 : vector<8x1xf32>
    %71 = arith.mulf %16, %68 : vector<8x1xf32>
    %72 = arith.addf %71, %70 : vector<8x1xf32>
    %73 = vector.broadcast %68 : vector<8x1xf32> to vector<8x32xf32>
    %74 = arith.mulf %17, %73 : vector<8x32xf32>
    %75 = vector.broadcast %70 : vector<8x1xf32> to vector<8x32xf32>
    %76 = arith.mulf %75, %65 : vector<8x32xf32>
    %77 = arith.addf %74, %76 : vector<8x32xf32>
    %c1_i32 = arith.constant 1 : i32
    %c8_i32_38 = arith.constant 8 : i32
    %78 = arith.muli %c1_i32, %c8_i32_38 : i32
    %79 = tpu.assume_multiple %78, 8 : i32
    %80 = arith.index_cast %79 : i32 to index
    %c0_39 = arith.constant 0 : index
    %81 = vector.load %arg21[%80, %c0_39] : memref<64x192xf32, #tpu.memory_space<vmem>>, vector<8x192xf32>
    %82 = arith.index_cast %79 : i32 to index
    %c0_40 = arith.constant 0 : index
    %83 = vector.load %arg20[%82, %c0_40] : memref<64x32xf32, #tpu.memory_space<vmem>>, vector<8x32xf32>
    %c0_41 = arith.constant 0 : index
    %c0_42 = arith.constant 0 : index
    %84 = vector.load %arg7[%c0_41, %c0_42] : memref<64x192xf32, #tpu.memory_space<vmem>>, vector<64x192xf32>
    %cst_43 = arith.constant dense<0.000000e+00> : vector<8x192xf32>
    %85 = tpu.matmul %48, %84, %cst_43 {dimension_numbers = #tpu.dot_dimension_numbers<[1], [0], [0], [1], [0, 0, 1, 1], [], []>} : vector<8x64xf32>, vector<64x192xf32>, vector<8x192xf32> -> vector<8x192xf32>
    %86 = vector.extract_strided_slice %81 {offsets = [0, 0], sizes = [8, 128], strides = [1, 1]} : vector<8x192xf32> to vector<8x128xf32>
    %87 = vector.extract_strided_slice %85 {offsets = [0, 0], sizes = [8, 128], strides = [1, 1]} : vector<8x192xf32> to vector<8x128xf32>
    %88 = arith.addf %86, %87 : vector<8x128xf32>
    %89 = arith.negf %88 : vector<8x128xf32>
    %90 = math.exp %89 : vector<8x128xf32>
    %cst_44 = arith.constant 1.000000e+00 : f32
    %91 = vector.broadcast %cst_44 : f32 to vector<8x128xf32>
    %92 = arith.addf %91, %90 : vector<8x128xf32>
    %93 = arith.divf %91, %92 : vector<8x128xf32>
    %94 = vector.extract_strided_slice %93 {offsets = [0, 0], sizes = [8, 64], strides = [1, 1]} : vector<8x128xf32> to vector<8x64xf32>
    %95 = vector.extract_strided_slice %93 {offsets = [0, 64], sizes = [8, 64], strides = [1, 1]} : vector<8x128xf32> to vector<8x64xf32>
    %96 = vector.extract_strided_slice %81 {offsets = [0, 128], sizes = [8, 64], strides = [1, 1]} : vector<8x192xf32> to vector<8x64xf32>
    %97 = vector.extract_strided_slice %85 {offsets = [0, 128], sizes = [8, 64], strides = [1, 1]} : vector<8x192xf32> to vector<8x64xf32>
    %c0_45 = arith.constant 0 : index
    %c0_46 = arith.constant 0 : index
    %98 = vector.load %arg8[%c0_45, %c0_46] : memref<1x64xf32, #tpu.memory_space<vmem>>, vector<1x64xf32>
    %99 = vector.broadcast %98 : vector<1x64xf32> to vector<8x64xf32>
    %100 = arith.addf %97, %99 : vector<8x64xf32>
    %101 = arith.mulf %94, %100 : vector<8x64xf32>
    %102 = arith.addf %96, %101 : vector<8x64xf32>
    %103 = math.tanh %102 : vector<8x64xf32>
    %cst_47 = arith.constant 1.000000e+00 : f32
    %104 = vector.broadcast %cst_47 : f32 to vector<8x64xf32>
    %105 = arith.subf %104, %95 : vector<8x64xf32>
    %106 = arith.mulf %105, %103 : vector<8x64xf32>
    %107 = arith.mulf %95, %48 : vector<8x64xf32>
    %108 = arith.addf %106, %107 : vector<8x64xf32>
    %109 = vector.extract_strided_slice %108 {offsets = [0, 0], sizes = [8, 32], strides = [1, 1]} : vector<8x64xf32> to vector<8x32xf32>
    %110 = vector.extract_strided_slice %108 {offsets = [0, 32], sizes = [8, 32], strides = [1, 1]} : vector<8x64xf32> to vector<8x32xf32>
    %c0_48 = arith.constant 0 : index
    %c0_49 = arith.constant 0 : index
    %111 = vector.load %arg9[%c0_48, %c0_49] : memref<1x32xf32, #tpu.memory_space<vmem>>, vector<1x32xf32>
    %112 = vector.broadcast %111 : vector<1x32xf32> to vector<8x32xf32>
    %113 = arith.mulf %109, %112 : vector<8x32xf32>
    %cst_50 = arith.constant dense<0.000000e+00> : vector<8xf32>
    %114 = vector.multi_reduction <add>, %113, %cst_50 [1] : vector<8x32xf32> to vector<8xf32>
    %115 = vector.shape_cast %114 : vector<8xf32> to vector<8x1xf32>
    %c0_51 = arith.constant 0 : index
    %c0_52 = arith.constant 0 : index
    %116 = vector.load %arg10[%c0_51, %c0_52] : memref<1x1xf32, #tpu.memory_space<vmem>>, vector<1x1xf32>
    %117 = vector.broadcast %116 : vector<1x1xf32> to vector<8x1xf32>
    %118 = arith.addf %115, %117 : vector<8x1xf32>
    %c0_53 = arith.constant 0 : index
    %c0_54 = arith.constant 0 : index
    %119 = vector.load %arg11[%c0_53, %c0_54] : memref<32x32xf32, #tpu.memory_space<vmem>>, vector<32x32xf32>
    %cst_55 = arith.constant dense<0.000000e+00> : vector<8x32xf32>
    %120 = tpu.matmul %110, %119, %cst_55 {dimension_numbers = #tpu.dot_dimension_numbers<[1], [0], [0], [1], [0, 0, 1, 1], [], []>} : vector<8x32xf32>, vector<32x32xf32>, vector<8x32xf32> -> vector<8x32xf32>
    %c0_56 = arith.constant 0 : index
    %c0_57 = arith.constant 0 : index
    %121 = vector.load %arg12[%c0_56, %c0_57] : memref<1x32xf32, #tpu.memory_space<vmem>>, vector<1x32xf32>
    %122 = vector.broadcast %121 : vector<1x32xf32> to vector<8x32xf32>
    %123 = arith.addf %120, %122 : vector<8x32xf32>
    %124 = math.tanh %123 : vector<8x32xf32>
    %125 = arith.mulf %83, %124 : vector<8x32xf32>
    %126 = arith.maximumf %66, %118 : vector<8x1xf32>
    %127 = arith.subf %66, %126 : vector<8x1xf32>
    %128 = math.exp %127 : vector<8x1xf32>
    %129 = arith.subf %118, %126 : vector<8x1xf32>
    %130 = math.exp %129 : vector<8x1xf32>
    %131 = arith.mulf %72, %128 : vector<8x1xf32>
    %132 = arith.addf %131, %130 : vector<8x1xf32>
    %133 = vector.broadcast %128 : vector<8x1xf32> to vector<8x32xf32>
    %134 = arith.mulf %77, %133 : vector<8x32xf32>
    %135 = vector.broadcast %130 : vector<8x1xf32> to vector<8x32xf32>
    %136 = arith.mulf %135, %125 : vector<8x32xf32>
    %137 = arith.addf %134, %136 : vector<8x32xf32>
    %c2_i32 = arith.constant 2 : i32
    %c8_i32_58 = arith.constant 8 : i32
    %138 = arith.muli %c2_i32, %c8_i32_58 : i32
    %139 = tpu.assume_multiple %138, 8 : i32
    %140 = arith.index_cast %139 : i32 to index
    %c0_59 = arith.constant 0 : index
    %141 = vector.load %arg21[%140, %c0_59] : memref<64x192xf32, #tpu.memory_space<vmem>>, vector<8x192xf32>
    %142 = arith.index_cast %139 : i32 to index
    %c0_60 = arith.constant 0 : index
    %143 = vector.load %arg20[%142, %c0_60] : memref<64x32xf32, #tpu.memory_space<vmem>>, vector<8x32xf32>
    %c0_61 = arith.constant 0 : index
    %c0_62 = arith.constant 0 : index
    %144 = vector.load %arg7[%c0_61, %c0_62] : memref<64x192xf32, #tpu.memory_space<vmem>>, vector<64x192xf32>
    %cst_63 = arith.constant dense<0.000000e+00> : vector<8x192xf32>
    %145 = tpu.matmul %108, %144, %cst_63 {dimension_numbers = #tpu.dot_dimension_numbers<[1], [0], [0], [1], [0, 0, 1, 1], [], []>} : vector<8x64xf32>, vector<64x192xf32>, vector<8x192xf32> -> vector<8x192xf32>
    %146 = vector.extract_strided_slice %141 {offsets = [0, 0], sizes = [8, 128], strides = [1, 1]} : vector<8x192xf32> to vector<8x128xf32>
    %147 = vector.extract_strided_slice %145 {offsets = [0, 0], sizes = [8, 128], strides = [1, 1]} : vector<8x192xf32> to vector<8x128xf32>
    %148 = arith.addf %146, %147 : vector<8x128xf32>
    %149 = arith.negf %148 : vector<8x128xf32>
    %150 = math.exp %149 : vector<8x128xf32>
    %cst_64 = arith.constant 1.000000e+00 : f32
    %151 = vector.broadcast %cst_64 : f32 to vector<8x128xf32>
    %152 = arith.addf %151, %150 : vector<8x128xf32>
    %153 = arith.divf %151, %152 : vector<8x128xf32>
    %154 = vector.extract_strided_slice %153 {offsets = [0, 0], sizes = [8, 64], strides = [1, 1]} : vector<8x128xf32> to vector<8x64xf32>
    %155 = vector.extract_strided_slice %153 {offsets = [0, 64], sizes = [8, 64], strides = [1, 1]} : vector<8x128xf32> to vector<8x64xf32>
    %156 = vector.extract_strided_slice %141 {offsets = [0, 128], sizes = [8, 64], strides = [1, 1]} : vector<8x192xf32> to vector<8x64xf32>
    %157 = vector.extract_strided_slice %145 {offsets = [0, 128], sizes = [8, 64], strides = [1, 1]} : vector<8x192xf32> to vector<8x64xf32>
    %c0_65 = arith.constant 0 : index
    %c0_66 = arith.constant 0 : index
    %158 = vector.load %arg8[%c0_65, %c0_66] : memref<1x64xf32, #tpu.memory_space<vmem>>, vector<1x64xf32>
    %159 = vector.broadcast %158 : vector<1x64xf32> to vector<8x64xf32>
    %160 = arith.addf %157, %159 : vector<8x64xf32>
    %161 = arith.mulf %154, %160 : vector<8x64xf32>
    %162 = arith.addf %156, %161 : vector<8x64xf32>
    %163 = math.tanh %162 : vector<8x64xf32>
    %cst_67 = arith.constant 1.000000e+00 : f32
    %164 = vector.broadcast %cst_67 : f32 to vector<8x64xf32>
    %165 = arith.subf %164, %155 : vector<8x64xf32>
    %166 = arith.mulf %165, %163 : vector<8x64xf32>
    %167 = arith.mulf %155, %108 : vector<8x64xf32>
    %168 = arith.addf %166, %167 : vector<8x64xf32>
    %169 = vector.extract_strided_slice %168 {offsets = [0, 0], sizes = [8, 32], strides = [1, 1]} : vector<8x64xf32> to vector<8x32xf32>
    %170 = vector.extract_strided_slice %168 {offsets = [0, 32], sizes = [8, 32], strides = [1, 1]} : vector<8x64xf32> to vector<8x32xf32>
    %c0_68 = arith.constant 0 : index
    %c0_69 = arith.constant 0 : index
    %171 = vector.load %arg9[%c0_68, %c0_69] : memref<1x32xf32, #tpu.memory_space<vmem>>, vector<1x32xf32>
    %172 = vector.broadcast %171 : vector<1x32xf32> to vector<8x32xf32>
    %173 = arith.mulf %169, %172 : vector<8x32xf32>
    %cst_70 = arith.constant dense<0.000000e+00> : vector<8xf32>
    %174 = vector.multi_reduction <add>, %173, %cst_70 [1] : vector<8x32xf32> to vector<8xf32>
    %175 = vector.shape_cast %174 : vector<8xf32> to vector<8x1xf32>
    %c0_71 = arith.constant 0 : index
    %c0_72 = arith.constant 0 : index
    %176 = vector.load %arg10[%c0_71, %c0_72] : memref<1x1xf32, #tpu.memory_space<vmem>>, vector<1x1xf32>
    %177 = vector.broadcast %176 : vector<1x1xf32> to vector<8x1xf32>
    %178 = arith.addf %175, %177 : vector<8x1xf32>
    %c0_73 = arith.constant 0 : index
    %c0_74 = arith.constant 0 : index
    %179 = vector.load %arg11[%c0_73, %c0_74] : memref<32x32xf32, #tpu.memory_space<vmem>>, vector<32x32xf32>
    %cst_75 = arith.constant dense<0.000000e+00> : vector<8x32xf32>
    %180 = tpu.matmul %170, %179, %cst_75 {dimension_numbers = #tpu.dot_dimension_numbers<[1], [0], [0], [1], [0, 0, 1, 1], [], []>} : vector<8x32xf32>, vector<32x32xf32>, vector<8x32xf32> -> vector<8x32xf32>
    %c0_76 = arith.constant 0 : index
    %c0_77 = arith.constant 0 : index
    %181 = vector.load %arg12[%c0_76, %c0_77] : memref<1x32xf32, #tpu.memory_space<vmem>>, vector<1x32xf32>
    %182 = vector.broadcast %181 : vector<1x32xf32> to vector<8x32xf32>
    %183 = arith.addf %180, %182 : vector<8x32xf32>
    %184 = math.tanh %183 : vector<8x32xf32>
    %185 = arith.mulf %143, %184 : vector<8x32xf32>
    %186 = arith.maximumf %126, %178 : vector<8x1xf32>
    %187 = arith.subf %126, %186 : vector<8x1xf32>
    %188 = math.exp %187 : vector<8x1xf32>
    %189 = arith.subf %178, %186 : vector<8x1xf32>
    %190 = math.exp %189 : vector<8x1xf32>
    %191 = arith.mulf %132, %188 : vector<8x1xf32>
    %192 = arith.addf %191, %190 : vector<8x1xf32>
    %193 = vector.broadcast %188 : vector<8x1xf32> to vector<8x32xf32>
    %194 = arith.mulf %137, %193 : vector<8x32xf32>
    %195 = vector.broadcast %190 : vector<8x1xf32> to vector<8x32xf32>
    %196 = arith.mulf %195, %185 : vector<8x32xf32>
    %197 = arith.addf %194, %196 : vector<8x32xf32>
    %c3_i32 = arith.constant 3 : i32
    %c8_i32_78 = arith.constant 8 : i32
    %198 = arith.muli %c3_i32, %c8_i32_78 : i32
    %199 = tpu.assume_multiple %198, 8 : i32
    %200 = arith.index_cast %199 : i32 to index
    %c0_79 = arith.constant 0 : index
    %201 = vector.load %arg21[%200, %c0_79] : memref<64x192xf32, #tpu.memory_space<vmem>>, vector<8x192xf32>
    %202 = arith.index_cast %199 : i32 to index
    %c0_80 = arith.constant 0 : index
    %203 = vector.load %arg20[%202, %c0_80] : memref<64x32xf32, #tpu.memory_space<vmem>>, vector<8x32xf32>
    %c0_81 = arith.constant 0 : index
    %c0_82 = arith.constant 0 : index
    %204 = vector.load %arg7[%c0_81, %c0_82] : memref<64x192xf32, #tpu.memory_space<vmem>>, vector<64x192xf32>
    %cst_83 = arith.constant dense<0.000000e+00> : vector<8x192xf32>
    %205 = tpu.matmul %168, %204, %cst_83 {dimension_numbers = #tpu.dot_dimension_numbers<[1], [0], [0], [1], [0, 0, 1, 1], [], []>} : vector<8x64xf32>, vector<64x192xf32>, vector<8x192xf32> -> vector<8x192xf32>
    %206 = vector.extract_strided_slice %201 {offsets = [0, 0], sizes = [8, 128], strides = [1, 1]} : vector<8x192xf32> to vector<8x128xf32>
    %207 = vector.extract_strided_slice %205 {offsets = [0, 0], sizes = [8, 128], strides = [1, 1]} : vector<8x192xf32> to vector<8x128xf32>
    %208 = arith.addf %206, %207 : vector<8x128xf32>
    %209 = arith.negf %208 : vector<8x128xf32>
    %210 = math.exp %209 : vector<8x128xf32>
    %cst_84 = arith.constant 1.000000e+00 : f32
    %211 = vector.broadcast %cst_84 : f32 to vector<8x128xf32>
    %212 = arith.addf %211, %210 : vector<8x128xf32>
    %213 = arith.divf %211, %212 : vector<8x128xf32>
    %214 = vector.extract_strided_slice %213 {offsets = [0, 0], sizes = [8, 64], strides = [1, 1]} : vector<8x128xf32> to vector<8x64xf32>
    %215 = vector.extract_strided_slice %213 {offsets = [0, 64], sizes = [8, 64], strides = [1, 1]} : vector<8x128xf32> to vector<8x64xf32>
    %216 = vector.extract_strided_slice %201 {offsets = [0, 128], sizes = [8, 64], strides = [1, 1]} : vector<8x192xf32> to vector<8x64xf32>
    %217 = vector.extract_strided_slice %205 {offsets = [0, 128], sizes = [8, 64], strides = [1, 1]} : vector<8x192xf32> to vector<8x64xf32>
    %c0_85 = arith.constant 0 : index
    %c0_86 = arith.constant 0 : index
    %218 = vector.load %arg8[%c0_85, %c0_86] : memref<1x64xf32, #tpu.memory_space<vmem>>, vector<1x64xf32>
    %219 = vector.broadcast %218 : vector<1x64xf32> to vector<8x64xf32>
    %220 = arith.addf %217, %219 : vector<8x64xf32>
    %221 = arith.mulf %214, %220 : vector<8x64xf32>
    %222 = arith.addf %216, %221 : vector<8x64xf32>
    %223 = math.tanh %222 : vector<8x64xf32>
    %cst_87 = arith.constant 1.000000e+00 : f32
    %224 = vector.broadcast %cst_87 : f32 to vector<8x64xf32>
    %225 = arith.subf %224, %215 : vector<8x64xf32>
    %226 = arith.mulf %225, %223 : vector<8x64xf32>
    %227 = arith.mulf %215, %168 : vector<8x64xf32>
    %228 = arith.addf %226, %227 : vector<8x64xf32>
    %229 = vector.extract_strided_slice %228 {offsets = [0, 0], sizes = [8, 32], strides = [1, 1]} : vector<8x64xf32> to vector<8x32xf32>
    %230 = vector.extract_strided_slice %228 {offsets = [0, 32], sizes = [8, 32], strides = [1, 1]} : vector<8x64xf32> to vector<8x32xf32>
    %c0_88 = arith.constant 0 : index
    %c0_89 = arith.constant 0 : index
    %231 = vector.load %arg9[%c0_88, %c0_89] : memref<1x32xf32, #tpu.memory_space<vmem>>, vector<1x32xf32>
    %232 = vector.broadcast %231 : vector<1x32xf32> to vector<8x32xf32>
    %233 = arith.mulf %229, %232 : vector<8x32xf32>
    %cst_90 = arith.constant dense<0.000000e+00> : vector<8xf32>
    %234 = vector.multi_reduction <add>, %233, %cst_90 [1] : vector<8x32xf32> to vector<8xf32>
    %235 = vector.shape_cast %234 : vector<8xf32> to vector<8x1xf32>
    %c0_91 = arith.constant 0 : index
    %c0_92 = arith.constant 0 : index
    %236 = vector.load %arg10[%c0_91, %c0_92] : memref<1x1xf32, #tpu.memory_space<vmem>>, vector<1x1xf32>
    %237 = vector.broadcast %236 : vector<1x1xf32> to vector<8x1xf32>
    %238 = arith.addf %235, %237 : vector<8x1xf32>
    %c0_93 = arith.constant 0 : index
    %c0_94 = arith.constant 0 : index
    %239 = vector.load %arg11[%c0_93, %c0_94] : memref<32x32xf32, #tpu.memory_space<vmem>>, vector<32x32xf32>
    %cst_95 = arith.constant dense<0.000000e+00> : vector<8x32xf32>
    %240 = tpu.matmul %230, %239, %cst_95 {dimension_numbers = #tpu.dot_dimension_numbers<[1], [0], [0], [1], [0, 0, 1, 1], [], []>} : vector<8x32xf32>, vector<32x32xf32>, vector<8x32xf32> -> vector<8x32xf32>
    %c0_96 = arith.constant 0 : index
    %c0_97 = arith.constant 0 : index
    %241 = vector.load %arg12[%c0_96, %c0_97] : memref<1x32xf32, #tpu.memory_space<vmem>>, vector<1x32xf32>
    %242 = vector.broadcast %241 : vector<1x32xf32> to vector<8x32xf32>
    %243 = arith.addf %240, %242 : vector<8x32xf32>
    %244 = math.tanh %243 : vector<8x32xf32>
    %245 = arith.mulf %203, %244 : vector<8x32xf32>
    %246 = arith.maximumf %186, %238 : vector<8x1xf32>
    %247 = arith.subf %186, %246 : vector<8x1xf32>
    %248 = math.exp %247 : vector<8x1xf32>
    %249 = arith.subf %238, %246 : vector<8x1xf32>
    %250 = math.exp %249 : vector<8x1xf32>
    %251 = arith.mulf %192, %248 : vector<8x1xf32>
    %252 = arith.addf %251, %250 : vector<8x1xf32>
    %253 = vector.broadcast %248 : vector<8x1xf32> to vector<8x32xf32>
    %254 = arith.mulf %197, %253 : vector<8x32xf32>
    %255 = vector.broadcast %250 : vector<8x1xf32> to vector<8x32xf32>
    %256 = arith.mulf %255, %245 : vector<8x32xf32>
    %257 = arith.addf %254, %256 : vector<8x32xf32>
    %c4_i32 = arith.constant 4 : i32
    %c8_i32_98 = arith.constant 8 : i32
    %258 = arith.muli %c4_i32, %c8_i32_98 : i32
    %259 = tpu.assume_multiple %258, 8 : i32
    %260 = arith.index_cast %259 : i32 to index
    %c0_99 = arith.constant 0 : index
    %261 = vector.load %arg21[%260, %c0_99] : memref<64x192xf32, #tpu.memory_space<vmem>>, vector<8x192xf32>
    %262 = arith.index_cast %259 : i32 to index
    %c0_100 = arith.constant 0 : index
    %263 = vector.load %arg20[%262, %c0_100] : memref<64x32xf32, #tpu.memory_space<vmem>>, vector<8x32xf32>
    %c0_101 = arith.constant 0 : index
    %c0_102 = arith.constant 0 : index
    %264 = vector.load %arg7[%c0_101, %c0_102] : memref<64x192xf32, #tpu.memory_space<vmem>>, vector<64x192xf32>
    %cst_103 = arith.constant dense<0.000000e+00> : vector<8x192xf32>
    %265 = tpu.matmul %228, %264, %cst_103 {dimension_numbers = #tpu.dot_dimension_numbers<[1], [0], [0], [1], [0, 0, 1, 1], [], []>} : vector<8x64xf32>, vector<64x192xf32>, vector<8x192xf32> -> vector<8x192xf32>
    %266 = vector.extract_strided_slice %261 {offsets = [0, 0], sizes = [8, 128], strides = [1, 1]} : vector<8x192xf32> to vector<8x128xf32>
    %267 = vector.extract_strided_slice %265 {offsets = [0, 0], sizes = [8, 128], strides = [1, 1]} : vector<8x192xf32> to vector<8x128xf32>
    %268 = arith.addf %266, %267 : vector<8x128xf32>
    %269 = arith.negf %268 : vector<8x128xf32>
    %270 = math.exp %269 : vector<8x128xf32>
    %cst_104 = arith.constant 1.000000e+00 : f32
    %271 = vector.broadcast %cst_104 : f32 to vector<8x128xf32>
    %272 = arith.addf %271, %270 : vector<8x128xf32>
    %273 = arith.divf %271, %272 : vector<8x128xf32>
    %274 = vector.extract_strided_slice %273 {offsets = [0, 0], sizes = [8, 64], strides = [1, 1]} : vector<8x128xf32> to vector<8x64xf32>
    %275 = vector.extract_strided_slice %273 {offsets = [0, 64], sizes = [8, 64], strides = [1, 1]} : vector<8x128xf32> to vector<8x64xf32>
    %276 = vector.extract_strided_slice %261 {offsets = [0, 128], sizes = [8, 64], strides = [1, 1]} : vector<8x192xf32> to vector<8x64xf32>
    %277 = vector.extract_strided_slice %265 {offsets = [0, 128], sizes = [8, 64], strides = [1, 1]} : vector<8x192xf32> to vector<8x64xf32>
    %c0_105 = arith.constant 0 : index
    %c0_106 = arith.constant 0 : index
    %278 = vector.load %arg8[%c0_105, %c0_106] : memref<1x64xf32, #tpu.memory_space<vmem>>, vector<1x64xf32>
    %279 = vector.broadcast %278 : vector<1x64xf32> to vector<8x64xf32>
    %280 = arith.addf %277, %279 : vector<8x64xf32>
    %281 = arith.mulf %274, %280 : vector<8x64xf32>
    %282 = arith.addf %276, %281 : vector<8x64xf32>
    %283 = math.tanh %282 : vector<8x64xf32>
    %cst_107 = arith.constant 1.000000e+00 : f32
    %284 = vector.broadcast %cst_107 : f32 to vector<8x64xf32>
    %285 = arith.subf %284, %275 : vector<8x64xf32>
    %286 = arith.mulf %285, %283 : vector<8x64xf32>
    %287 = arith.mulf %275, %228 : vector<8x64xf32>
    %288 = arith.addf %286, %287 : vector<8x64xf32>
    %289 = vector.extract_strided_slice %288 {offsets = [0, 0], sizes = [8, 32], strides = [1, 1]} : vector<8x64xf32> to vector<8x32xf32>
    %290 = vector.extract_strided_slice %288 {offsets = [0, 32], sizes = [8, 32], strides = [1, 1]} : vector<8x64xf32> to vector<8x32xf32>
    %c0_108 = arith.constant 0 : index
    %c0_109 = arith.constant 0 : index
    %291 = vector.load %arg9[%c0_108, %c0_109] : memref<1x32xf32, #tpu.memory_space<vmem>>, vector<1x32xf32>
    %292 = vector.broadcast %291 : vector<1x32xf32> to vector<8x32xf32>
    %293 = arith.mulf %289, %292 : vector<8x32xf32>
    %cst_110 = arith.constant dense<0.000000e+00> : vector<8xf32>
    %294 = vector.multi_reduction <add>, %293, %cst_110 [1] : vector<8x32xf32> to vector<8xf32>
    %295 = vector.shape_cast %294 : vector<8xf32> to vector<8x1xf32>
    %c0_111 = arith.constant 0 : index
    %c0_112 = arith.constant 0 : index
    %296 = vector.load %arg10[%c0_111, %c0_112] : memref<1x1xf32, #tpu.memory_space<vmem>>, vector<1x1xf32>
    %297 = vector.broadcast %296 : vector<1x1xf32> to vector<8x1xf32>
    %298 = arith.addf %295, %297 : vector<8x1xf32>
    %c0_113 = arith.constant 0 : index
    %c0_114 = arith.constant 0 : index
    %299 = vector.load %arg11[%c0_113, %c0_114] : memref<32x32xf32, #tpu.memory_space<vmem>>, vector<32x32xf32>
    %cst_115 = arith.constant dense<0.000000e+00> : vector<8x32xf32>
    %300 = tpu.matmul %290, %299, %cst_115 {dimension_numbers = #tpu.dot_dimension_numbers<[1], [0], [0], [1], [0, 0, 1, 1], [], []>} : vector<8x32xf32>, vector<32x32xf32>, vector<8x32xf32> -> vector<8x32xf32>
    %c0_116 = arith.constant 0 : index
    %c0_117 = arith.constant 0 : index
    %301 = vector.load %arg12[%c0_116, %c0_117] : memref<1x32xf32, #tpu.memory_space<vmem>>, vector<1x32xf32>
    %302 = vector.broadcast %301 : vector<1x32xf32> to vector<8x32xf32>
    %303 = arith.addf %300, %302 : vector<8x32xf32>
    %304 = math.tanh %303 : vector<8x32xf32>
    %305 = arith.mulf %263, %304 : vector<8x32xf32>
    %306 = arith.maximumf %246, %298 : vector<8x1xf32>
    %307 = arith.subf %246, %306 : vector<8x1xf32>
    %308 = math.exp %307 : vector<8x1xf32>
    %309 = arith.subf %298, %306 : vector<8x1xf32>
    %310 = math.exp %309 : vector<8x1xf32>
    %311 = arith.mulf %252, %308 : vector<8x1xf32>
    %312 = arith.addf %311, %310 : vector<8x1xf32>
    %313 = vector.broadcast %308 : vector<8x1xf32> to vector<8x32xf32>
    %314 = arith.mulf %257, %313 : vector<8x32xf32>
    %315 = vector.broadcast %310 : vector<8x1xf32> to vector<8x32xf32>
    %316 = arith.mulf %315, %305 : vector<8x32xf32>
    %317 = arith.addf %314, %316 : vector<8x32xf32>
    %c5_i32 = arith.constant 5 : i32
    %c8_i32_118 = arith.constant 8 : i32
    %318 = arith.muli %c5_i32, %c8_i32_118 : i32
    %319 = tpu.assume_multiple %318, 8 : i32
    %320 = arith.index_cast %319 : i32 to index
    %c0_119 = arith.constant 0 : index
    %321 = vector.load %arg21[%320, %c0_119] : memref<64x192xf32, #tpu.memory_space<vmem>>, vector<8x192xf32>
    %322 = arith.index_cast %319 : i32 to index
    %c0_120 = arith.constant 0 : index
    %323 = vector.load %arg20[%322, %c0_120] : memref<64x32xf32, #tpu.memory_space<vmem>>, vector<8x32xf32>
    %c0_121 = arith.constant 0 : index
    %c0_122 = arith.constant 0 : index
    %324 = vector.load %arg7[%c0_121, %c0_122] : memref<64x192xf32, #tpu.memory_space<vmem>>, vector<64x192xf32>
    %cst_123 = arith.constant dense<0.000000e+00> : vector<8x192xf32>
    %325 = tpu.matmul %288, %324, %cst_123 {dimension_numbers = #tpu.dot_dimension_numbers<[1], [0], [0], [1], [0, 0, 1, 1], [], []>} : vector<8x64xf32>, vector<64x192xf32>, vector<8x192xf32> -> vector<8x192xf32>
    %326 = vector.extract_strided_slice %321 {offsets = [0, 0], sizes = [8, 128], strides = [1, 1]} : vector<8x192xf32> to vector<8x128xf32>
    %327 = vector.extract_strided_slice %325 {offsets = [0, 0], sizes = [8, 128], strides = [1, 1]} : vector<8x192xf32> to vector<8x128xf32>
    %328 = arith.addf %326, %327 : vector<8x128xf32>
    %329 = arith.negf %328 : vector<8x128xf32>
    %330 = math.exp %329 : vector<8x128xf32>
    %cst_124 = arith.constant 1.000000e+00 : f32
    %331 = vector.broadcast %cst_124 : f32 to vector<8x128xf32>
    %332 = arith.addf %331, %330 : vector<8x128xf32>
    %333 = arith.divf %331, %332 : vector<8x128xf32>
    %334 = vector.extract_strided_slice %333 {offsets = [0, 0], sizes = [8, 64], strides = [1, 1]} : vector<8x128xf32> to vector<8x64xf32>
    %335 = vector.extract_strided_slice %333 {offsets = [0, 64], sizes = [8, 64], strides = [1, 1]} : vector<8x128xf32> to vector<8x64xf32>
    %336 = vector.extract_strided_slice %321 {offsets = [0, 128], sizes = [8, 64], strides = [1, 1]} : vector<8x192xf32> to vector<8x64xf32>
    %337 = vector.extract_strided_slice %325 {offsets = [0, 128], sizes = [8, 64], strides = [1, 1]} : vector<8x192xf32> to vector<8x64xf32>
    %c0_125 = arith.constant 0 : index
    %c0_126 = arith.constant 0 : index
    %338 = vector.load %arg8[%c0_125, %c0_126] : memref<1x64xf32, #tpu.memory_space<vmem>>, vector<1x64xf32>
    %339 = vector.broadcast %338 : vector<1x64xf32> to vector<8x64xf32>
    %340 = arith.addf %337, %339 : vector<8x64xf32>
    %341 = arith.mulf %334, %340 : vector<8x64xf32>
    %342 = arith.addf %336, %341 : vector<8x64xf32>
    %343 = math.tanh %342 : vector<8x64xf32>
    %cst_127 = arith.constant 1.000000e+00 : f32
    %344 = vector.broadcast %cst_127 : f32 to vector<8x64xf32>
    %345 = arith.subf %344, %335 : vector<8x64xf32>
    %346 = arith.mulf %345, %343 : vector<8x64xf32>
    %347 = arith.mulf %335, %288 : vector<8x64xf32>
    %348 = arith.addf %346, %347 : vector<8x64xf32>
    %349 = vector.extract_strided_slice %348 {offsets = [0, 0], sizes = [8, 32], strides = [1, 1]} : vector<8x64xf32> to vector<8x32xf32>
    %350 = vector.extract_strided_slice %348 {offsets = [0, 32], sizes = [8, 32], strides = [1, 1]} : vector<8x64xf32> to vector<8x32xf32>
    %c0_128 = arith.constant 0 : index
    %c0_129 = arith.constant 0 : index
    %351 = vector.load %arg9[%c0_128, %c0_129] : memref<1x32xf32, #tpu.memory_space<vmem>>, vector<1x32xf32>
    %352 = vector.broadcast %351 : vector<1x32xf32> to vector<8x32xf32>
    %353 = arith.mulf %349, %352 : vector<8x32xf32>
    %cst_130 = arith.constant dense<0.000000e+00> : vector<8xf32>
    %354 = vector.multi_reduction <add>, %353, %cst_130 [1] : vector<8x32xf32> to vector<8xf32>
    %355 = vector.shape_cast %354 : vector<8xf32> to vector<8x1xf32>
    %c0_131 = arith.constant 0 : index
    %c0_132 = arith.constant 0 : index
    %356 = vector.load %arg10[%c0_131, %c0_132] : memref<1x1xf32, #tpu.memory_space<vmem>>, vector<1x1xf32>
    %357 = vector.broadcast %356 : vector<1x1xf32> to vector<8x1xf32>
    %358 = arith.addf %355, %357 : vector<8x1xf32>
    %c0_133 = arith.constant 0 : index
    %c0_134 = arith.constant 0 : index
    %359 = vector.load %arg11[%c0_133, %c0_134] : memref<32x32xf32, #tpu.memory_space<vmem>>, vector<32x32xf32>
    %cst_135 = arith.constant dense<0.000000e+00> : vector<8x32xf32>
    %360 = tpu.matmul %350, %359, %cst_135 {dimension_numbers = #tpu.dot_dimension_numbers<[1], [0], [0], [1], [0, 0, 1, 1], [], []>} : vector<8x32xf32>, vector<32x32xf32>, vector<8x32xf32> -> vector<8x32xf32>
    %c0_136 = arith.constant 0 : index
    %c0_137 = arith.constant 0 : index
    %361 = vector.load %arg12[%c0_136, %c0_137] : memref<1x32xf32, #tpu.memory_space<vmem>>, vector<1x32xf32>
    %362 = vector.broadcast %361 : vector<1x32xf32> to vector<8x32xf32>
    %363 = arith.addf %360, %362 : vector<8x32xf32>
    %364 = math.tanh %363 : vector<8x32xf32>
    %365 = arith.mulf %323, %364 : vector<8x32xf32>
    %366 = arith.maximumf %306, %358 : vector<8x1xf32>
    %367 = arith.subf %306, %366 : vector<8x1xf32>
    %368 = math.exp %367 : vector<8x1xf32>
    %369 = arith.subf %358, %366 : vector<8x1xf32>
    %370 = math.exp %369 : vector<8x1xf32>
    %371 = arith.mulf %312, %368 : vector<8x1xf32>
    %372 = arith.addf %371, %370 : vector<8x1xf32>
    %373 = vector.broadcast %368 : vector<8x1xf32> to vector<8x32xf32>
    %374 = arith.mulf %317, %373 : vector<8x32xf32>
    %375 = vector.broadcast %370 : vector<8x1xf32> to vector<8x32xf32>
    %376 = arith.mulf %375, %365 : vector<8x32xf32>
    %377 = arith.addf %374, %376 : vector<8x32xf32>
    %c6_i32 = arith.constant 6 : i32
    %c8_i32_138 = arith.constant 8 : i32
    %378 = arith.muli %c6_i32, %c8_i32_138 : i32
    %379 = tpu.assume_multiple %378, 8 : i32
    %380 = arith.index_cast %379 : i32 to index
    %c0_139 = arith.constant 0 : index
    %381 = vector.load %arg21[%380, %c0_139] : memref<64x192xf32, #tpu.memory_space<vmem>>, vector<8x192xf32>
    %382 = arith.index_cast %379 : i32 to index
    %c0_140 = arith.constant 0 : index
    %383 = vector.load %arg20[%382, %c0_140] : memref<64x32xf32, #tpu.memory_space<vmem>>, vector<8x32xf32>
    %c0_141 = arith.constant 0 : index
    %c0_142 = arith.constant 0 : index
    %384 = vector.load %arg7[%c0_141, %c0_142] : memref<64x192xf32, #tpu.memory_space<vmem>>, vector<64x192xf32>
    %cst_143 = arith.constant dense<0.000000e+00> : vector<8x192xf32>
    %385 = tpu.matmul %348, %384, %cst_143 {dimension_numbers = #tpu.dot_dimension_numbers<[1], [0], [0], [1], [0, 0, 1, 1], [], []>} : vector<8x64xf32>, vector<64x192xf32>, vector<8x192xf32> -> vector<8x192xf32>
    %386 = vector.extract_strided_slice %381 {offsets = [0, 0], sizes = [8, 128], strides = [1, 1]} : vector<8x192xf32> to vector<8x128xf32>
    %387 = vector.extract_strided_slice %385 {offsets = [0, 0], sizes = [8, 128], strides = [1, 1]} : vector<8x192xf32> to vector<8x128xf32>
    %388 = arith.addf %386, %387 : vector<8x128xf32>
    %389 = arith.negf %388 : vector<8x128xf32>
    %390 = math.exp %389 : vector<8x128xf32>
    %cst_144 = arith.constant 1.000000e+00 : f32
    %391 = vector.broadcast %cst_144 : f32 to vector<8x128xf32>
    %392 = arith.addf %391, %390 : vector<8x128xf32>
    %393 = arith.divf %391, %392 : vector<8x128xf32>
    %394 = vector.extract_strided_slice %393 {offsets = [0, 0], sizes = [8, 64], strides = [1, 1]} : vector<8x128xf32> to vector<8x64xf32>
    %395 = vector.extract_strided_slice %393 {offsets = [0, 64], sizes = [8, 64], strides = [1, 1]} : vector<8x128xf32> to vector<8x64xf32>
    %396 = vector.extract_strided_slice %381 {offsets = [0, 128], sizes = [8, 64], strides = [1, 1]} : vector<8x192xf32> to vector<8x64xf32>
    %397 = vector.extract_strided_slice %385 {offsets = [0, 128], sizes = [8, 64], strides = [1, 1]} : vector<8x192xf32> to vector<8x64xf32>
    %c0_145 = arith.constant 0 : index
    %c0_146 = arith.constant 0 : index
    %398 = vector.load %arg8[%c0_145, %c0_146] : memref<1x64xf32, #tpu.memory_space<vmem>>, vector<1x64xf32>
    %399 = vector.broadcast %398 : vector<1x64xf32> to vector<8x64xf32>
    %400 = arith.addf %397, %399 : vector<8x64xf32>
    %401 = arith.mulf %394, %400 : vector<8x64xf32>
    %402 = arith.addf %396, %401 : vector<8x64xf32>
    %403 = math.tanh %402 : vector<8x64xf32>
    %cst_147 = arith.constant 1.000000e+00 : f32
    %404 = vector.broadcast %cst_147 : f32 to vector<8x64xf32>
    %405 = arith.subf %404, %395 : vector<8x64xf32>
    %406 = arith.mulf %405, %403 : vector<8x64xf32>
    %407 = arith.mulf %395, %348 : vector<8x64xf32>
    %408 = arith.addf %406, %407 : vector<8x64xf32>
    %409 = vector.extract_strided_slice %408 {offsets = [0, 0], sizes = [8, 32], strides = [1, 1]} : vector<8x64xf32> to vector<8x32xf32>
    %410 = vector.extract_strided_slice %408 {offsets = [0, 32], sizes = [8, 32], strides = [1, 1]} : vector<8x64xf32> to vector<8x32xf32>
    %c0_148 = arith.constant 0 : index
    %c0_149 = arith.constant 0 : index
    %411 = vector.load %arg9[%c0_148, %c0_149] : memref<1x32xf32, #tpu.memory_space<vmem>>, vector<1x32xf32>
    %412 = vector.broadcast %411 : vector<1x32xf32> to vector<8x32xf32>
    %413 = arith.mulf %409, %412 : vector<8x32xf32>
    %cst_150 = arith.constant dense<0.000000e+00> : vector<8xf32>
    %414 = vector.multi_reduction <add>, %413, %cst_150 [1] : vector<8x32xf32> to vector<8xf32>
    %415 = vector.shape_cast %414 : vector<8xf32> to vector<8x1xf32>
    %c0_151 = arith.constant 0 : index
    %c0_152 = arith.constant 0 : index
    %416 = vector.load %arg10[%c0_151, %c0_152] : memref<1x1xf32, #tpu.memory_space<vmem>>, vector<1x1xf32>
    %417 = vector.broadcast %416 : vector<1x1xf32> to vector<8x1xf32>
    %418 = arith.addf %415, %417 : vector<8x1xf32>
    %c0_153 = arith.constant 0 : index
    %c0_154 = arith.constant 0 : index
    %419 = vector.load %arg11[%c0_153, %c0_154] : memref<32x32xf32, #tpu.memory_space<vmem>>, vector<32x32xf32>
    %cst_155 = arith.constant dense<0.000000e+00> : vector<8x32xf32>
    %420 = tpu.matmul %410, %419, %cst_155 {dimension_numbers = #tpu.dot_dimension_numbers<[1], [0], [0], [1], [0, 0, 1, 1], [], []>} : vector<8x32xf32>, vector<32x32xf32>, vector<8x32xf32> -> vector<8x32xf32>
    %c0_156 = arith.constant 0 : index
    %c0_157 = arith.constant 0 : index
    %421 = vector.load %arg12[%c0_156, %c0_157] : memref<1x32xf32, #tpu.memory_space<vmem>>, vector<1x32xf32>
    %422 = vector.broadcast %421 : vector<1x32xf32> to vector<8x32xf32>
    %423 = arith.addf %420, %422 : vector<8x32xf32>
    %424 = math.tanh %423 : vector<8x32xf32>
    %425 = arith.mulf %383, %424 : vector<8x32xf32>
    %426 = arith.maximumf %366, %418 : vector<8x1xf32>
    %427 = arith.subf %366, %426 : vector<8x1xf32>
    %428 = math.exp %427 : vector<8x1xf32>
    %429 = arith.subf %418, %426 : vector<8x1xf32>
    %430 = math.exp %429 : vector<8x1xf32>
    %431 = arith.mulf %372, %428 : vector<8x1xf32>
    %432 = arith.addf %431, %430 : vector<8x1xf32>
    %433 = vector.broadcast %428 : vector<8x1xf32> to vector<8x32xf32>
    %434 = arith.mulf %377, %433 : vector<8x32xf32>
    %435 = vector.broadcast %430 : vector<8x1xf32> to vector<8x32xf32>
    %436 = arith.mulf %435, %425 : vector<8x32xf32>
    %437 = arith.addf %434, %436 : vector<8x32xf32>
    %c7_i32 = arith.constant 7 : i32
    %c8_i32_158 = arith.constant 8 : i32
    %438 = arith.muli %c7_i32, %c8_i32_158 : i32
    %439 = tpu.assume_multiple %438, 8 : i32
    %440 = arith.index_cast %439 : i32 to index
    %c0_159 = arith.constant 0 : index
    %441 = vector.load %arg21[%440, %c0_159] : memref<64x192xf32, #tpu.memory_space<vmem>>, vector<8x192xf32>
    %442 = arith.index_cast %439 : i32 to index
    %c0_160 = arith.constant 0 : index
    %443 = vector.load %arg20[%442, %c0_160] : memref<64x32xf32, #tpu.memory_space<vmem>>, vector<8x32xf32>
    %c0_161 = arith.constant 0 : index
    %c0_162 = arith.constant 0 : index
    %444 = vector.load %arg7[%c0_161, %c0_162] : memref<64x192xf32, #tpu.memory_space<vmem>>, vector<64x192xf32>
    %cst_163 = arith.constant dense<0.000000e+00> : vector<8x192xf32>
    %445 = tpu.matmul %408, %444, %cst_163 {dimension_numbers = #tpu.dot_dimension_numbers<[1], [0], [0], [1], [0, 0, 1, 1], [], []>} : vector<8x64xf32>, vector<64x192xf32>, vector<8x192xf32> -> vector<8x192xf32>
    %446 = vector.extract_strided_slice %441 {offsets = [0, 0], sizes = [8, 128], strides = [1, 1]} : vector<8x192xf32> to vector<8x128xf32>
    %447 = vector.extract_strided_slice %445 {offsets = [0, 0], sizes = [8, 128], strides = [1, 1]} : vector<8x192xf32> to vector<8x128xf32>
    %448 = arith.addf %446, %447 : vector<8x128xf32>
    %449 = arith.negf %448 : vector<8x128xf32>
    %450 = math.exp %449 : vector<8x128xf32>
    %cst_164 = arith.constant 1.000000e+00 : f32
    %451 = vector.broadcast %cst_164 : f32 to vector<8x128xf32>
    %452 = arith.addf %451, %450 : vector<8x128xf32>
    %453 = arith.divf %451, %452 : vector<8x128xf32>
    %454 = vector.extract_strided_slice %453 {offsets = [0, 0], sizes = [8, 64], strides = [1, 1]} : vector<8x128xf32> to vector<8x64xf32>
    %455 = vector.extract_strided_slice %453 {offsets = [0, 64], sizes = [8, 64], strides = [1, 1]} : vector<8x128xf32> to vector<8x64xf32>
    %456 = vector.extract_strided_slice %441 {offsets = [0, 128], sizes = [8, 64], strides = [1, 1]} : vector<8x192xf32> to vector<8x64xf32>
    %457 = vector.extract_strided_slice %445 {offsets = [0, 128], sizes = [8, 64], strides = [1, 1]} : vector<8x192xf32> to vector<8x64xf32>
    %c0_165 = arith.constant 0 : index
    %c0_166 = arith.constant 0 : index
    %458 = vector.load %arg8[%c0_165, %c0_166] : memref<1x64xf32, #tpu.memory_space<vmem>>, vector<1x64xf32>
    %459 = vector.broadcast %458 : vector<1x64xf32> to vector<8x64xf32>
    %460 = arith.addf %457, %459 : vector<8x64xf32>
    %461 = arith.mulf %454, %460 : vector<8x64xf32>
    %462 = arith.addf %456, %461 : vector<8x64xf32>
    %463 = math.tanh %462 : vector<8x64xf32>
    %cst_167 = arith.constant 1.000000e+00 : f32
    %464 = vector.broadcast %cst_167 : f32 to vector<8x64xf32>
    %465 = arith.subf %464, %455 : vector<8x64xf32>
    %466 = arith.mulf %465, %463 : vector<8x64xf32>
    %467 = arith.mulf %455, %408 : vector<8x64xf32>
    %468 = arith.addf %466, %467 : vector<8x64xf32>
    %469 = vector.extract_strided_slice %468 {offsets = [0, 0], sizes = [8, 32], strides = [1, 1]} : vector<8x64xf32> to vector<8x32xf32>
    %470 = vector.extract_strided_slice %468 {offsets = [0, 32], sizes = [8, 32], strides = [1, 1]} : vector<8x64xf32> to vector<8x32xf32>
    %c0_168 = arith.constant 0 : index
    %c0_169 = arith.constant 0 : index
    %471 = vector.load %arg9[%c0_168, %c0_169] : memref<1x32xf32, #tpu.memory_space<vmem>>, vector<1x32xf32>
    %472 = vector.broadcast %471 : vector<1x32xf32> to vector<8x32xf32>
    %473 = arith.mulf %469, %472 : vector<8x32xf32>
    %cst_170 = arith.constant dense<0.000000e+00> : vector<8xf32>
    %474 = vector.multi_reduction <add>, %473, %cst_170 [1] : vector<8x32xf32> to vector<8xf32>
    %475 = vector.shape_cast %474 : vector<8xf32> to vector<8x1xf32>
    %c0_171 = arith.constant 0 : index
    %c0_172 = arith.constant 0 : index
    %476 = vector.load %arg10[%c0_171, %c0_172] : memref<1x1xf32, #tpu.memory_space<vmem>>, vector<1x1xf32>
    %477 = vector.broadcast %476 : vector<1x1xf32> to vector<8x1xf32>
    %478 = arith.addf %475, %477 : vector<8x1xf32>
    %c0_173 = arith.constant 0 : index
    %c0_174 = arith.constant 0 : index
    %479 = vector.load %arg11[%c0_173, %c0_174] : memref<32x32xf32, #tpu.memory_space<vmem>>, vector<32x32xf32>
    %cst_175 = arith.constant dense<0.000000e+00> : vector<8x32xf32>
    %480 = tpu.matmul %470, %479, %cst_175 {dimension_numbers = #tpu.dot_dimension_numbers<[1], [0], [0], [1], [0, 0, 1, 1], [], []>} : vector<8x32xf32>, vector<32x32xf32>, vector<8x32xf32> -> vector<8x32xf32>
    %c0_176 = arith.constant 0 : index
    %c0_177 = arith.constant 0 : index
    %481 = vector.load %arg12[%c0_176, %c0_177] : memref<1x32xf32, #tpu.memory_space<vmem>>, vector<1x32xf32>
    %482 = vector.broadcast %481 : vector<1x32xf32> to vector<8x32xf32>
    %483 = arith.addf %480, %482 : vector<8x32xf32>
    %484 = math.tanh %483 : vector<8x32xf32>
    %485 = arith.mulf %443, %484 : vector<8x32xf32>
    %486 = arith.maximumf %426, %478 : vector<8x1xf32>
    %487 = arith.subf %426, %486 : vector<8x1xf32>
    %488 = math.exp %487 : vector<8x1xf32>
    %489 = arith.subf %478, %486 : vector<8x1xf32>
    %490 = math.exp %489 : vector<8x1xf32>
    %491 = arith.mulf %432, %488 : vector<8x1xf32>
    %492 = arith.addf %491, %490 : vector<8x1xf32>
    %493 = vector.broadcast %488 : vector<8x1xf32> to vector<8x32xf32>
    %494 = arith.mulf %437, %493 : vector<8x32xf32>
    %495 = vector.broadcast %490 : vector<8x1xf32> to vector<8x32xf32>
    %496 = arith.mulf %495, %485 : vector<8x32xf32>
    %497 = arith.addf %494, %496 : vector<8x32xf32>
    %c8_i32_178 = arith.constant 8 : i32
    %498 = vector.broadcast %492 : vector<8x1xf32> to vector<8x32xf32>
    %499 = arith.divf %497, %498 : vector<8x32xf32>
    %c0_179 = arith.constant 0 : index
    %c0_180 = arith.constant 0 : index
    %500 = vector.load %arg2[%c0_179, %c0_180] : memref<8x8xf32, #tpu.memory_space<vmem>>, vector<8x8xf32>
    %c0_181 = arith.constant 0 : index
    %c0_182 = arith.constant 0 : index
    %501 = vector.load %arg13[%c0_181, %c0_182] : memref<32x64xf32, #tpu.memory_space<vmem>>, vector<32x64xf32>
    %cst_183 = arith.constant dense<0.000000e+00> : vector<8x64xf32>
    %502 = tpu.matmul %499, %501, %cst_183 {dimension_numbers = #tpu.dot_dimension_numbers<[1], [0], [0], [1], [0, 0, 1, 1], [], []>} : vector<8x32xf32>, vector<32x64xf32>, vector<8x64xf32> -> vector<8x64xf32>
    %c0_184 = arith.constant 0 : index
    %c0_185 = arith.constant 0 : index
    %503 = vector.load %arg14[%c0_184, %c0_185] : memref<8x64xf32, #tpu.memory_space<vmem>>, vector<8x64xf32>
    %cst_186 = arith.constant dense<0.000000e+00> : vector<8x64xf32>
    %504 = tpu.matmul %500, %503, %cst_186 {dimension_numbers = #tpu.dot_dimension_numbers<[1], [0], [0], [1], [0, 0, 1, 1], [], []>} : vector<8x8xf32>, vector<8x64xf32>, vector<8x64xf32> -> vector<8x64xf32>
    %505 = arith.addf %502, %504 : vector<8x64xf32>
    %c0_187 = arith.constant 0 : index
    %c0_188 = arith.constant 0 : index
    %506 = vector.load %arg15[%c0_187, %c0_188] : memref<1x64xf32, #tpu.memory_space<vmem>>, vector<1x64xf32>
    %507 = vector.broadcast %506 : vector<1x64xf32> to vector<8x64xf32>
    %508 = arith.addf %505, %507 : vector<8x64xf32>
    %cst_189 = arith.constant 0.000000e+00 : f32
    %509 = vector.broadcast %cst_189 : f32 to vector<8x64xf32>
    %510 = arith.maximumf %508, %509 : vector<8x64xf32>
    %c0_190 = arith.constant 0 : index
    %c0_191 = arith.constant 0 : index
    %511 = vector.load %arg16[%c0_190, %c0_191] : memref<64x128xf32, #tpu.memory_space<vmem>>, vector<64x128xf32>
    %cst_192 = arith.constant dense<0.000000e+00> : vector<8x128xf32>
    %512 = tpu.matmul %510, %511, %cst_192 {dimension_numbers = #tpu.dot_dimension_numbers<[1], [0], [0], [1], [0, 0, 1, 1], [], []>} : vector<8x64xf32>, vector<64x128xf32>, vector<8x128xf32> -> vector<8x128xf32>
    %c0_193 = arith.constant 0 : index
    %c0_194 = arith.constant 0 : index
    %513 = vector.load %arg17[%c0_193, %c0_194] : memref<1x128xf32, #tpu.memory_space<vmem>>, vector<1x128xf32>
    %514 = vector.broadcast %513 : vector<1x128xf32> to vector<8x128xf32>
    %515 = arith.addf %512, %514 : vector<8x128xf32>
    %c0_195 = arith.constant 0 : index
    %c0_196 = arith.constant 0 : index
    %516 = vector.load %arg18[%c0_195, %c0_196] : memref<8x128xf32, #tpu.memory_space<vmem>>, vector<8x128xf32>
    tpu.vector_store %arg18[%c0_195, %c0_196], %515 {strides = array<i32>} : memref<8x128xf32, #tpu.memory_space<vmem>>, vector<8x128xf32>,
    %cst_197 = arith.constant 0.000000e+00 : f32
    %517 = vector.broadcast %cst_197 : f32 to vector<8x96xf32>
    %518 = tpu.concatenate %499, %517 in 1 : vector<8x32xf32>, vector<8x96xf32> -> vector<8x128xf32>
    %c0_198 = arith.constant 0 : index
    %c0_199 = arith.constant 0 : index
    %519 = vector.load %arg19[%c0_198, %c0_199] : memref<8x128xf32, #tpu.memory_space<vmem>>, vector<8x128xf32>
    tpu.vector_store %arg19[%c0_198, %c0_199], %518 {strides = array<i32>} : memref<8x128xf32, #tpu.memory_space<vmem>>, vector<8x128xf32>,
    return
  }
  func.func @transform_0(%arg0: i32) -> (i32, i32, i32) {
    %c0_i32 = arith.constant 0 : i32
    %c0_i32_0 = arith.constant 0 : i32
    %c0_i32_1 = arith.constant 0 : i32
    return %c0_i32, %arg0, %c0_i32_0 : i32, i32, i32
  }
  func.func @transform_1(%arg0: i32) -> (i32, i32) {
    %c0_i32 = arith.constant 0 : i32
    %c0_i32_0 = arith.constant 0 : i32
    return %arg0, %c0_i32 : i32, i32
  }
  func.func @transform_2(%arg0: i32) -> (i32, i32) {
    %c0_i32 = arith.constant 0 : i32
    %c0_i32_0 = arith.constant 0 : i32
    %c0_i32_1 = arith.constant 0 : i32
    return %c0_i32, %c0_i32_0 : i32, i32
  }
  func.func @transform_3(%arg0: i32) -> (i32, i32) {
    %c0_i32 = arith.constant 0 : i32
    %c0_i32_0 = arith.constant 0 : i32
    %c0_i32_1 = arith.constant 0 : i32
    return %c0_i32, %c0_i32_0 : i32, i32
  }
  func.func @transform_4(%arg0: i32) -> (i32, i32) {
    %c0_i32 = arith.constant 0 : i32
    %c0_i32_0 = arith.constant 0 : i32
    %c0_i32_1 = arith.constant 0 : i32
    return %c0_i32, %c0_i32_0 : i32, i32
  }
  func.func @transform_5(%arg0: i32) -> (i32, i32) {
    %c0_i32 = arith.constant 0 : i32
    %c0_i32_0 = arith.constant 0 : i32
    %c0_i32_1 = arith.constant 0 : i32
    return %c0_i32, %c0_i32_0 : i32, i32
  }
  func.func @transform_6(%arg0: i32) -> (i32, i32) {
    %c0_i32 = arith.constant 0 : i32
    %c0_i32_0 = arith.constant 0 : i32
    %c0_i32_1 = arith.constant 0 : i32
    return %c0_i32, %c0_i32_0 : i32, i32
  }
  func.func @transform_7(%arg0: i32) -> (i32, i32) {
    %c0_i32 = arith.constant 0 : i32
    %c0_i32_0 = arith.constant 0 : i32
    %c0_i32_1 = arith.constant 0 : i32
    return %c0_i32, %c0_i32_0 : i32, i32
  }
  func.func @transform_8(%arg0: i32) -> (i32, i32) {
    %c0_i32 = arith.constant 0 : i32
    %c0_i32_0 = arith.constant 0 : i32
    %c0_i32_1 = arith.constant 0 : i32
    return %c0_i32, %c0_i32_0 : i32, i32
  }
  func.func @transform_9(%arg0: i32) -> (i32, i32) {
    %c0_i32 = arith.constant 0 : i32
    %c0_i32_0 = arith.constant 0 : i32
    %c0_i32_1 = arith.constant 0 : i32
    return %c0_i32, %c0_i32_0 : i32, i32
  }
  func.func @transform_10(%arg0: i32) -> (i32, i32) {
    %c0_i32 = arith.constant 0 : i32
    %c0_i32_0 = arith.constant 0 : i32
    %c0_i32_1 = arith.constant 0 : i32
    return %c0_i32, %c0_i32_0 : i32, i32
  }
  func.func @transform_11(%arg0: i32) -> (i32, i32) {
    %c0_i32 = arith.constant 0 : i32
    %c0_i32_0 = arith.constant 0 : i32
    %c0_i32_1 = arith.constant 0 : i32
    return %c0_i32, %c0_i32_0 : i32, i32
  }
  func.func @transform_12(%arg0: i32) -> (i32, i32) {
    %c0_i32 = arith.constant 0 : i32
    %c0_i32_0 = arith.constant 0 : i32
    %c0_i32_1 = arith.constant 0 : i32
    return %c0_i32, %c0_i32_0 : i32, i32
  }
  func.func @transform_13(%arg0: i32) -> (i32, i32) {
    %c0_i32 = arith.constant 0 : i32
    %c0_i32_0 = arith.constant 0 : i32
    %c0_i32_1 = arith.constant 0 : i32
    return %c0_i32, %c0_i32_0 : i32, i32
  }
  func.func @transform_14(%arg0: i32) -> (i32, i32) {
    %c0_i32 = arith.constant 0 : i32
    %c0_i32_0 = arith.constant 0 : i32
    %c0_i32_1 = arith.constant 0 : i32
    return %c0_i32, %c0_i32_0 : i32, i32
  }
  func.func @transform_15(%arg0: i32) -> (i32, i32) {
    %c0_i32 = arith.constant 0 : i32
    %c0_i32_0 = arith.constant 0 : i32
    %c0_i32_1 = arith.constant 0 : i32
    return %c0_i32, %c0_i32_0 : i32, i32
  }
  func.func @transform_16(%arg0: i32) -> (i32, i32) {
    %c0_i32 = arith.constant 0 : i32
    %c0_i32_0 = arith.constant 0 : i32
    %c0_i32_1 = arith.constant 0 : i32
    return %c0_i32, %c0_i32_0 : i32, i32
  }
  func.func @transform_17(%arg0: i32) -> (i32, i32) {
    %c0_i32 = arith.constant 0 : i32
    %c0_i32_0 = arith.constant 0 : i32
    return %arg0, %c0_i32 : i32, i32
  }
  func.func @transform_18(%arg0: i32) -> (i32, i32) {
    %c0_i32 = arith.constant 0 : i32
    %c0_i32_0 = arith.constant 0 : i32
    return %arg0, %c0_i32 : i32, i32
  }
}

</mosaic_0001>

<llo_original>
// kernel: tpu_custom_call.1
$region0: #{tpu_custom_call.1}
  #allocation0 [shape = 'u32[]', space=smem, size = 0x4, offset = 0x4, fixed_abs, tag = 'smem constant byte address 0x4 - core index']
  #allocation1 [shape = 'u32[72,128]{1,0:T(1,128)}', space=vmem, size = 0x9000, scoped, tag = 'internal scratch']
  #allocation2 [shape = 'f32[64,32]{1,0:T(8,128)}', space=vmem, size = 0x8000, scoped, tag = 'scratch operand']
  #allocation3 [shape = 'f32[64,192]{1,0:T(8,128)}', space=vmem, size = 0x10000, scoped, tag = 'scratch operand']
  #allocation4 [shape = 'f32[1,1]{1,0:T(1,128)S(1)}', space=vmem, size = 0x200, scoped, tag = 'scoped memory for tpu_custom_call.1']
  %s0 = inlined_call_operand.vmem [shape: f32[8,8,64], index: 0, kind: input, shape index: {}]
  %s1 = inlined_call_operand.hbm [shape: f32[8,8], index: 1, kind: input, shape index: {}]
  %s2 = inlined_call_operand.vmem [shape: f32[64,32], index: 2, kind: input, shape index: {}]
  %s3 = inlined_call_operand.vmem [shape: f32[1,32], index: 3, kind: input, shape index: {}]
  %s4 = inlined_call_operand.hbm [shape: f32[32,192], index: 4, kind: input, shape index: {}]
  %s5 = inlined_call_operand.hbm [shape: f32[1,192], index: 5, kind: input, shape index: {}]
  %s6 = inlined_call_operand.hbm [shape: f32[64,192], index: 6, kind: input, shape index: {}]
  %s7 = inlined_call_operand.hbm [shape: f32[1,64], index: 7, kind: input, shape index: {}]
  %s8 = inlined_call_operand.hbm [shape: f32[1,32], index: 8, kind: input, shape index: {}]
  %s9 = inlined_call_operand.<no memory space> [shape: f32[1,1], index: 9, kind: input, shape index: {}]
  %s10 = inlined_call_operand.vmem [shape: f32[32,32], index: 10, kind: input, shape index: {}]
  %s11 = inlined_call_operand.vmem [shape: f32[1,32], index: 11, kind: input, shape index: {}]
  %s12 = inlined_call_operand.hbm [shape: f32[32,64], index: 12, kind: input, shape index: {}]
  %s13 = inlined_call_operand.vmem [shape: f32[8,64], index: 13, kind: input, shape index: {}]
  %s14 = inlined_call_operand.vmem [shape: f32[1,64], index: 14, kind: input, shape index: {}]
  %s15 = inlined_call_operand.hbm [shape: f32[64,128], index: 15, kind: input, shape index: {}]
  %s16 = inlined_call_operand.vmem [shape: f32[1,128], index: 16, kind: input, shape index: {}]
  %s17 = inlined_call_operand.hbm [shape: f32[8,128], index: 17, kind: output, shape index: {0}]
  %s18 = inlined_call_operand.hbm [shape: f32[8,128], index: 18, kind: output, shape index: {1}]
  %19 = xla_tuple %s17, %s18
  %s20 = sld [smem:[#allocation0]]
  $region118: #{tpu_custom_call.1} parent=0
    _
  %s22 = ssub.s32 1, %s20
  %s23 = scalar_select 0, %s22, %s20
  %v24 = vstv %s9
  %25 = vst [vmem:[#allocation4] sm:$0x1] %v24
  $region1: #{tpu_custom_call.1} parent=0
    #allocation5 [shape = 'u8[4096]{0}', space=vmem, size = 0x1000, scoped, tag = 'input window, operand 1, single buffered']
    #allocation6 [shape = 's32[1]{0}', space=sflag, size = 0x4, scoped, tag = 'scoped memory for tpu_custom_call.1']
    #allocation7 [shape = 's32[1]{0}', space=sflag, size = 0x4, scoped, tag = 'scoped memory for tpu_custom_call.1']
    #allocation8 [shape = 'u8[32768]{0}', space=vmem, size = 0x8000, scoped, tag = 'input window, operand 4, single buffered']
    #allocation9 [shape = 's32[1]{0}', space=sflag, size = 0x4, scoped, tag = 'scoped memory for tpu_custom_call.1']
    #allocation10 [shape = 'u8[1024]{0}', space=vmem, size = 0x400, scoped, tag = 'input window, operand 5, single buffered']
    #allocation11 [shape = 'u8[65536]{0}', space=vmem, size = 0x10000, scoped, tag = 'input window, operand 6, single buffered']
    #allocation12 [shape = 's32[1]{0}', space=sflag, size = 0x4, scoped, tag = 'scoped memory for tpu_custom_call.1']
    #allocation13 [shape = 'u8[512]{0}', space=vmem, size = 0x400, scoped, tag = 'input window, operand 7, single buffered']
    #allocation14 [shape = 'u8[512]{0}', space=vmem, size = 0x400, scoped, tag = 'input window, operand 8, single buffered']
    #allocation15 [shape = 's32[1]{0}', space=sflag, size = 0x4, scoped, tag = 'scoped memory for tpu_custom_call.1']
    #allocation16 [shape = 'u8[16384]{0}', space=vmem, size = 0x4000, scoped, tag = 'input window, operand 12, single buffered']
    #allocation17 [shape = 'u8[32768]{0}', space=vmem, size = 0x8000, scoped, tag = 'input window, operand 15, single buffered']
    #allocation18 [shape = 's32[1]{0}', space=sflag, size = 0x4, scoped, tag = 'scoped memory for tpu_custom_call.1']
    #allocation19 [shape = 'u8[4096]{0}', space=vmem, size = 0x1000, scoped, tag = 'output window, operand 0, single buffered']
    #allocation20 [shape = 'u8[4096]{0}', space=vmem, size = 0x1000, scoped, tag = 'output window, operand 1, single buffered']
    #allocation21 [shape = 's32[1]{0}', space=sflag, size = 0x4, scoped, tag = 'scoped memory for tpu_custom_call.1']
    %26 = vsyncpa [#allocation6], 0
    %27 = vsyncpa [#allocation9], 0
    %28 = vsyncpa [#allocation12], 0
    %29 = vsyncpa [#allocation15], 0
    %30 = vsyncpa [#allocation18], 0
    %31 = vsyncpa [#allocation7], 0
    %32 = vsyncpa [#allocation21], 0
    // Predicated region
    $region2: #{tpu_custom_call.1} parent=1 // pred_check
      _
    $region3: #{tpu_custom_call.1} parent=1 // pred_check_branch
      %34 = sbr.rel (0) target = $region5
    $region4: #{tpu_custom_call.1} parent=1 // pred_region
      _
    $region5: #{tpu_custom_call.1} parent=1 // pred_fallthru
      _
    // Predicated region
    $region6: #{tpu_custom_call.1} parent=1 // pred_check
      _
    $region7: #{tpu_custom_call.1} parent=1 // pred_check_branch
      %36 = sbr.rel (0) target = $region9
    $region8: #{tpu_custom_call.1} parent=1 // pred_region
      %38 = vsyncadd [#allocation6], 0
      %s40 = sshll.u32 %s1, 4
      %s41 = int_to_ptr.hbm [resolvable:$true] %s40
      %s42 = sshll.u32 [#allocation5], 4
      %s43 = int_to_ptr.vmem [resolvable:$true] %s42
      %45 = dma.hbm_to_vmem [thread:$0]  %s41, 128, %s43, [#allocation6]
    $region9: #{tpu_custom_call.1} parent=1 // pred_fallthru
      _
    // Predicated region
    $region10: #{tpu_custom_call.1} parent=1 // pred_check
      _
    $region11: #{tpu_custom_call.1} parent=1 // pred_check_branch
      %47 = sbr.rel (0) target = $region13
    $region12: #{tpu_custom_call.1} parent=1 // pred_region
      _
    $region13: #{tpu_custom_call.1} parent=1 // pred_fallthru
      _
    // Predicated region
    $region14: #{tpu_custom_call.1} parent=1 // pred_check
      _
    $region15: #{tpu_custom_call.1} parent=1 // pred_check_branch
      %49 = sbr.rel (0) target = $region17
    $region16: #{tpu_custom_call.1} parent=1 // pred_region
      _
    $region17: #{tpu_custom_call.1} parent=1 // pred_fallthru
      _
    // Predicated region
    $region18: #{tpu_custom_call.1} parent=1 // pred_check
      _
    $region19: #{tpu_custom_call.1} parent=1 // pred_check_branch
      %51 = sbr.rel (0) target = $region21
    $region20: #{tpu_custom_call.1} parent=1 // pred_region
      %53 = vsyncadd [#allocation9], 0
      %s54 = sshll.u32 %s4, 4
      %s55 = int_to_ptr.hbm [resolvable:$true] %s54
      %s56 = sshll.u32 [#allocation8], 4
      %s57 = int_to_ptr.vmem [resolvable:$true] %s56
      %62 = dma.hbm_to_vmem [thread:$0]  %s55, 1024, %s57, [#allocation9], 256, 256, 16
    $region21: #{tpu_custom_call.1} parent=1 // pred_fallthru
      _
    // Predicated region
    $region22: #{tpu_custom_call.1} parent=1 // pred_check
      _
    $region23: #{tpu_custom_call.1} parent=1 // pred_check_branch
      %64 = sbr.rel (0) target = $region25
    $region24: #{tpu_custom_call.1} parent=1 // pred_region
      %66 = vsyncadd [#allocation9], 0
      %s68 = sshll.u32 %s5, 4
      %s69 = int_to_ptr.hbm [resolvable:$true] %s68
      %s70 = sshll.u32 [#allocation10], 4
      %s71 = int_to_ptr.vmem [resolvable:$true] %s70
      %73 = dma.hbm_to_vmem [thread:$0]  %s69, 32, %s71, [#allocation9]
    $region25: #{tpu_custom_call.1} parent=1 // pred_fallthru
      _
    // Predicated region
    $region26: #{tpu_custom_call.1} parent=1 // pred_check
      _
    $region27: #{tpu_custom_call.1} parent=1 // pred_check_branch
      %75 = sbr.rel (0) target = $region29
    $region28: #{tpu_custom_call.1} parent=1 // pred_region
      %77 = vsyncadd [#allocation12], 0
      %s78 = sshll.u32 %s6, 4
      %s79 = int_to_ptr.hbm [resolvable:$true] %s78
      %s80 = sshll.u32 [#allocation11], 4
      %s81 = int_to_ptr.vmem [resolvable:$true] %s80
      %86 = dma.hbm_to_vmem [thread:$0]  %s79, 2048, %s81, [#allocation12], 256, 256, 16
    $region29: #{tpu_custom_call.1} parent=1 // pred_fallthru
      _
    // Predicated region
    $region30: #{tpu_custom_call.1} parent=1 // pred_check
      _
    $region31: #{tpu_custom_call.1} parent=1 // pred_check_branch
      %88 = sbr.rel (0) target = $region33
    $region32: #{tpu_custom_call.1} parent=1 // pred_region
      %90 = vsyncadd [#allocation12], 0
      %s92 = sshll.u32 %s7, 4
      %s93 = int_to_ptr.hbm [resolvable:$true] %s92
      %s94 = sshll.u32 [#allocation13], 4
      %s95 = int_to_ptr.vmem [resolvable:$true] %s94
      %97 = dma.hbm_to_vmem [thread:$0]  %s93, 16, %s95, [#allocation12]
    $region33: #{tpu_custom_call.1} parent=1 // pred_fallthru
      _
    // Predicated region
    $region34: #{tpu_custom_call.1} parent=1 // pred_check
      _
    $region35: #{tpu_custom_call.1} parent=1 // pred_check_branch
      %99 = sbr.rel (0) target = $region37
    $region36: #{tpu_custom_call.1} parent=1 // pred_region
      %101 = vsyncadd [#allocation15], 0
      %s103 = sshll.u32 %s8, 4
      %s104 = int_to_ptr.hbm [resolvable:$true] %s103
      %s105 = sshll.u32 [#allocation14], 4
      %s106 = int_to_ptr.vmem [resolvable:$true] %s105
      %108 = dma.hbm_to_vmem [thread:$0]  %s104, 16, %s106, [#allocation15]
    $region37: #{tpu_custom_call.1} parent=1 // pred_fallthru
      _
    // Predicated region
    $region38: #{tpu_custom_call.1} parent=1 // pred_check
      _
    $region39: #{tpu_custom_call.1} parent=1 // pred_check_branch
      %110 = sbr.rel (0) target = $region41
    $region40: #{tpu_custom_call.1} parent=1 // pred_region
      _
    $region41: #{tpu_custom_call.1} parent=1 // pred_fallthru
      _
    // Predicated region
    $region42: #{tpu_custom_call.1} parent=1 // pred_check
      _
    $region43: #{tpu_custom_call.1} parent=1 // pred_check_branch
      %112 = sbr.rel (0) target = $region45
    $region44: #{tpu_custom_call.1} parent=1 // pred_region
      _
    $region45: #{tpu_custom_call.1} parent=1 // pred_fallthru
      _
    // Predicated region
    $region46: #{tpu_custom_call.1} parent=1 // pred_check
      _
    $region47: #{tpu_custom_call.1} parent=1 // pred_check_branch
      %114 = sbr.rel (0) target = $region49
    $region48: #{tpu_custom_call.1} parent=1 // pred_region
      _
    $region49: #{tpu_custom_call.1} parent=1 // pred_fallthru
      _
    // Predicated region
    $region50: #{tpu_custom_call.1} parent=1 // pred_check
      _
    $region51: #{tpu_custom_call.1} parent=1 // pred_check_branch
      %116 = sbr.rel (0) target = $region53
    $region52: #{tpu_custom_call.1} parent=1 // pred_region
      %118 = vsyncadd [#allocation15], 0
      %s119 = sshll.u32 %s12, 4
      %s120 = int_to_ptr.hbm [resolvable:$true] %s119
      %s121 = sshll.u32 [#allocation16], 4
      %s122 = int_to_ptr.vmem [resolvable:$true] %s121
      %127 = dma.hbm_to_vmem [thread:$0]  %s120, 512, %s122, [#allocation15], 128, 128, 8
    $region53: #{tpu_custom_call.1} parent=1 // pred_fallthru
      _
    // Predicated region
    $region54: #{tpu_custom_call.1} parent=1 // pred_check
      _
    $region55: #{tpu_custom_call.1} parent=1 // pred_check_branch
      %129 = sbr.rel (0) target = $region57
    $region56: #{tpu_custom_call.1} parent=1 // pred_region
      _
    $region57: #{tpu_custom_call.1} parent=1 // pred_fallthru
      _
    // Predicated region
    $region58: #{tpu_custom_call.1} parent=1 // pred_check
      _
    $region59: #{tpu_custom_call.1} parent=1 // pred_check_branch
      %131 = sbr.rel (0) target = $region61
    $region60: #{tpu_custom_call.1} parent=1 // pred_region
      _
    $region61: #{tpu_custom_call.1} parent=1 // pred_fallthru
      _
    // Predicated region
    $region62: #{tpu_custom_call.1} parent=1 // pred_check
      _
    $region63: #{tpu_custom_call.1} parent=1 // pred_check_branch
      %133 = sbr.rel (0) target = $region65
    $region64: #{tpu_custom_call.1} parent=1 // pred_region
      %135 = vsyncadd [#allocation18], 0
      %s136 = sshll.u32 %s15, 4
      %s137 = int_to_ptr.hbm [resolvable:$true] %s136
      %s138 = sshll.u32 [#allocation17], 4
      %s139 = int_to_ptr.vmem [resolvable:$true] %s138
      %144 = dma.hbm_to_vmem [thread:$0]  %s137, 1024, %s139, [#allocation18], 128, 128, 8
    $region65: #{tpu_custom_call.1} parent=1 // pred_fallthru
      _
    // Predicated region
    $region66: #{tpu_custom_call.1} parent=1 // pred_check
      _
    $region67: #{tpu_custom_call.1} parent=1 // pred_check_branch
      %146 = sbr.rel (0) target = $region69
    $region68: #{tpu_custom_call.1} parent=1 // pred_region
      _
    $region69: #{tpu_custom_call.1} parent=1 // pred_fallthru
      _
    // Predicated region
    $region70: #{tpu_custom_call.1} parent=1 // pred_check
      _
    $region71: #{tpu_custom_call.1} parent=1 // pred_check_branch
      %148 = sbr.rel (0) target = $region73
    $region72: #{tpu_custom_call.1} parent=1 // pred_region
      %150 = dma.done [#allocation6], 128
    $region73: #{tpu_custom_call.1} parent=1 // pred_fallthru
      _
    // Predicated region
    $region74: #{tpu_custom_call.1} parent=1 // pred_check
      _
    $region75: #{tpu_custom_call.1} parent=1 // pred_check_branch
      %152 = sbr.rel (0) target = $region77
    $region76: #{tpu_custom_call.1} parent=1 // pred_region
      %154 = dma.done [#allocation9], 1024
    $region77: #{tpu_custom_call.1} parent=1 // pred_fallthru
      _
    // Predicated region
    $region78: #{tpu_custom_call.1} parent=1 // pred_check
      _
    $region79: #{tpu_custom_call.1} parent=1 // pred_check_branch
      %156 = sbr.rel (0) target = $region81
    $region80: #{tpu_custom_call.1} parent=1 // pred_region
      %158 = dma.done [#allocation9], 32
    $region81: #{tpu_custom_call.1} parent=1 // pred_fallthru
      _
    // Predicated region
    $region82: #{tpu_custom_call.1} parent=1 // pred_check
      _
    $region83: #{tpu_custom_call.1} parent=1 // pred_check_branch
      %160 = sbr.rel (0) target = $region85
    $region84: #{tpu_custom_call.1} parent=1 // pred_region
      %162 = dma.done [#allocation12], 2048
    $region85: #{tpu_custom_call.1} parent=1 // pred_fallthru
      _
    // Predicated region
    $region86: #{tpu_custom_call.1} parent=1 // pred_check
      _
    $region87: #{tpu_custom_call.1} parent=1 // pred_check_branch
      %164 = sbr.rel (0) target = $region89
    $region88: #{tpu_custom_call.1} parent=1 // pred_region
      %166 = dma.done [#allocation12], 16
    $region89: #{tpu_custom_call.1} parent=1 // pred_fallthru
      _
    // Predicated region
    $region90: #{tpu_custom_call.1} parent=1 // pred_check
      _
    $region91: #{tpu_custom_call.1} parent=1 // pred_check_branch
      %168 = sbr.rel (0) target = $region93
    $region92: #{tpu_custom_call.1} parent=1 // pred_region
      %170 = dma.done [#allocation15], 16
    $region93: #{tpu_custom_call.1} parent=1 // pred_fallthru
      _
    // Predicated region
    $region94: #{tpu_custom_call.1} parent=1 // pred_check
      _
    $region95: #{tpu_custom_call.1} parent=1 // pred_check_branch
      %172 = sbr.rel (0) target = $region97
    $region96: #{tpu_custom_call.1} parent=1 // pred_region
      %174 = dma.done [#allocation15], 512
    $region97: #{tpu_custom_call.1} parent=1 // pred_fallthru
      _
    // Predicated region
    $region98: #{tpu_custom_call.1} parent=1 // pred_check
      _
    $region99: #{tpu_custom_call.1} parent=1 // pred_check_branch
      %176 = sbr.rel (0) target = $region101
    $region100: #{tpu_custom_call.1} parent=1 // pred_region
      %178 = dma.done [#allocation18], 1024
    $region101: #{tpu_custom_call.1} parent=1 // pred_fallthru
      _
    %v179 = vld [vmem:[%s0] sm:$0xff]
    %v180 = vld [vmem:[%s0 + $0x8] sm:$0xff]
    %v181 = vld [vmem:[%s0 + $0x10] sm:$0xff]
    %v182 = vld [vmem:[%s0 + $0x18] sm:$0xff]
    %v183 = vld [vmem:[%s0 + $0x20] sm:$0xff]
    %v184 = vld [vmem:[%s0 + $0x28] sm:$0xff]
    %v185 = vld [vmem:[%s0 + $0x30] sm:$0xff]
    %v186 = vld [vmem:[%s0 + $0x38] sm:$0xff]
    %v187 = vld [vmem:[%s2] sm:$0xff]
    %v188 = vld [vmem:[%s2 + $0x8] sm:$0xff]
    %v189 = vld [vmem:[%s2 + $0x10] sm:$0xff]
    %v190 = vld [vmem:[%s2 + $0x18] sm:$0xff]
    %v191 = vld [vmem:[%s2 + $0x20] sm:$0xff]
    %v192 = vld [vmem:[%s2 + $0x28] sm:$0xff]
    %v193 = vld [vmem:[%s2 + $0x30] sm:$0xff]
    %v194 = vld [vmem:[%s2 + $0x38] sm:$0xff]
    %v195 = vld [vmem:[%s3] sm:$0x1]
    %v197 = vperm.slane %v195, 0
    %vm199 = vcmask 523264
    %v201 = vsel %vm199, %v179, 0
    %v204 = vsel %vm199, %v180, 0
    %v207 = vsel %vm199, %v181, 0
    %v210 = vsel %vm199, %v182, 0
    %v213 = vsel %vm199, %v183, 0
    %v216 = vsel %vm199, %v184, 0
    %v219 = vsel %vm199, %v185, 0
    %v222 = vsel %vm199, %v186, 0
    %224 = vmatpush.msra.mxu0 0.0
    %225 = vmatpush.msra.mxu0 0.0
    %226 = vmatpush.msra.mxu0 0.0
    %227 = vmatpush.msra.mxu0 0.0
    %228 = vmatpush.msra.mxu0 0.0
    %229 = vmatpush.msra.mxu0 0.0
    %230 = vmatpush.msra.mxu0 0.0
    %231 = vmatpush.msra.mxu0 0.0
    %232 = vmatpush.msra.mxu0 %v194
    %233 = vmatpush.msra.mxu0 %v193
    %234 = vmatpush.msra.mxu0 %v192
    %235 = vmatpush.msra.mxu0 %v191
    %236 = vmatpush.msra.mxu0 %v190
    %237 = vmatpush.msra.mxu0 %v189
    %238 = vmatpush.msra.mxu0 %v188
    %239 = vmatpush.msra.mxu0 %v187
    %240 = vmatmul.f32.gmra.mxu0 %v201
    %v241 = vpop.f32.mrf.mxu0
    %v242 = vadd.f32 %v197, %v241
    %243 = vmatmul.f32.gmra.mxu0 %v204
    %v244 = vpop.f32.mrf.mxu0
    %v245 = vadd.f32 %v197, %v244
    %246 = vmatmul.f32.gmra.mxu0 %v207
    %v247 = vpop.f32.mrf.mxu0
    %v248 = vadd.f32 %v197, %v247
    %249 = vmatmul.f32.gmra.mxu0 %v210
    %v250 = vpop.f32.mrf.mxu0
    %v251 = vadd.f32 %v197, %v250
    %252 = vmatmul.f32.gmra.mxu0 %v213
    %v253 = vpop.f32.mrf.mxu0
    %v254 = vadd.f32 %v197, %v253
    %255 = vmatmul.f32.gmra.mxu0 %v216
    %v256 = vpop.f32.mrf.mxu0
    %v257 = vadd.f32 %v197, %v256
    %258 = vmatmul.f32.gmra.mxu0 %v219
    %v259 = vpop.f32.mrf.mxu0
    %v260 = vadd.f32 %v197, %v259
    %261 = vmatmul.f32.gmra.mxu0 %v222
    %v262 = vpop.f32.mrf.mxu0
    %v263 = vadd.f32 %v197, %v262
    %264 = vdwg.mxu0
    %vm265 = vcmask 261120
    %266 = vst.msk [vmem:[#allocation2] sm:$0xff] %vm265, %v242
    %267 = vst.msk [vmem:[#allocation2 + $0x8] sm:$0xff] %vm265, %v245
    %268 = vst.msk [vmem:[#allocation2 + $0x10] sm:$0xff] %vm265, %v248
    %269 = vst.msk [vmem:[#allocation2 + $0x18] sm:$0xff] %vm265, %v251
    %270 = vst.msk [vmem:[#allocation2 + $0x20] sm:$0xff] %vm265, %v254
    %271 = vst.msk [vmem:[#allocation2 + $0x28] sm:$0xff] %vm265, %v257
    %272 = vst.msk [vmem:[#allocation2 + $0x30] sm:$0xff] %vm265, %v260
    %273 = vst.msk [vmem:[#allocation2 + $0x38] sm:$0xff] %vm265, %v263
    %v274 = vld [vmem:[#allocation8] sm:$0xff]
    %v275 = vld [vmem:[#allocation8 + $0x8] sm:$0xff]
    %v276 = vld [vmem:[#allocation8 + $0x10] sm:$0xff]
    %v277 = vld [vmem:[#allocation8 + $0x18] sm:$0xff]
    %v278 = vld [vmem:[#allocation8 + $0x20] sm:$0xff]
    %v279 = vld [vmem:[#allocation8 + $0x28] sm:$0xff]
    %v280 = vld [vmem:[#allocation8 + $0x30] sm:$0xff]
    %v281 = vld [vmem:[#allocation8 + $0x38] sm:$0xff]
    %v282 = vld [vmem:[#allocation10] sm:$0x3]
    %v284 = vperm.slane %v282, 0
    %v285 = vperm.slane %v282, 1
    %v289 = vsel %vm265, %v242, 0
    %v292 = vsel %vm265, %v245, 0
    %v295 = vsel %vm265, %v248, 0
    %v298 = vsel %vm265, %v251, 0
    %v301 = vsel %vm265, %v254, 0
    %v304 = vsel %vm265, %v257, 0
    %v307 = vsel %vm265, %v260, 0
    %v310 = vsel %vm265, %v263, 0
    %312 = vmatpush.msra.mxu0 0.0
    %313 = vmatpush.msra.mxu0 0.0
    %314 = vmatpush.msra.mxu0 0.0
    %315 = vmatpush.msra.mxu0 0.0
    %316 = vmatpush.msra.mxu0 0.0
    %317 = vmatpush.msra.mxu0 0.0
    %318 = vmatpush.msra.mxu0 0.0
    %319 = vmatpush.msra.mxu0 0.0
    %320 = vmatpush.msra.mxu0 0.0
    %321 = vmatpush.msra.mxu0 0.0
    %322 = vmatpush.msra.mxu0 0.0
    %323 = vmatpush.msra.mxu0 0.0
    %324 = vmatpush.msra.mxu0 %v280
    %325 = vmatpush.msra.mxu0 %v278
    %326 = vmatpush.msra.mxu0 %v276
    %327 = vmatpush.msra.mxu0 %v274
    %328 = vmatmul.f32.gmra.mxu0 %v289
    %v329 = vpop.f32.mrf.mxu0
    %v330 = vadd.f32 %v284, %v329
    %331 = vmatmul.f32.gmra.mxu0 %v292
    %v332 = vpop.f32.mrf.mxu0
    %v333 = vadd.f32 %v284, %v332
    %334 = vmatmul.f32.gmra.mxu0 %v295
    %v335 = vpop.f32.mrf.mxu0
    %v336 = vadd.f32 %v284, %v335
    %337 = vmatmul.f32.gmra.mxu0 %v298
    %v338 = vpop.f32.mrf.mxu0
    %v339 = vadd.f32 %v284, %v338
    %340 = vmatmul.f32.gmra.mxu0 %v301
    %v341 = vpop.f32.mrf.mxu0
    %v342 = vadd.f32 %v284, %v341
    %343 = vmatmul.f32.gmra.mxu0 %v304
    %v344 = vpop.f32.mrf.mxu0
    %v345 = vadd.f32 %v284, %v344
    %346 = vmatmul.f32.gmra.mxu0 %v307
    %v347 = vpop.f32.mrf.mxu0
    %v348 = vadd.f32 %v284, %v347
    %349 = vmatmul.f32.gmra.mxu0 %v310
    %v350 = vpop.f32.mrf.mxu0
    %v351 = vadd.f32 %v284, %v350
    %352 = vdwg.mxu0
    %353 = vmatpush.msra.mxu0 0.0
    %354 = vmatpush.msra.mxu0 0.0
    %355 = vmatpush.msra.mxu0 0.0
    %356 = vmatpush.msra.mxu0 0.0
    %357 = vmatpush.msra.mxu0 0.0
    %358 = vmatpush.msra.mxu0 0.0
    %359 = vmatpush.msra.mxu0 0.0
    %360 = vmatpush.msra.mxu0 0.0
    %361 = vmatpush.msra.mxu0 0.0
    %362 = vmatpush.msra.mxu0 0.0
    %363 = vmatpush.msra.mxu0 0.0
    %364 = vmatpush.msra.mxu0 0.0
    %365 = vmatpush.msra.mxu0 %v281
    %366 = vmatpush.msra.mxu0 %v279
    %367 = vmatpush.msra.mxu0 %v277
    %368 = vmatpush.msra.mxu0 %v275
    %369 = vmatmul.f32.gmra.mxu0 %v289
    %v370 = vpop.f32.mrf.mxu0
    %v371 = vadd.f32 %v285, %v370
    %372 = vmatmul.f32.gmra.mxu0 %v292
    %v373 = vpop.f32.mrf.mxu0
    %v374 = vadd.f32 %v285, %v373
    %375 = vmatmul.f32.gmra.mxu0 %v295
    %v376 = vpop.f32.mrf.mxu0
    %v377 = vadd.f32 %v285, %v376
    %378 = vmatmul.f32.gmra.mxu0 %v298
    %v379 = vpop.f32.mrf.mxu0
    %v380 = vadd.f32 %v285, %v379
    %381 = vmatmul.f32.gmra.mxu0 %v301
    %v382 = vpop.f32.mrf.mxu0
    %v383 = vadd.f32 %v285, %v382
    %384 = vmatmul.f32.gmra.mxu0 %v304
    %v385 = vpop.f32.mrf.mxu0
    %v386 = vadd.f32 %v285, %v385
    %387 = vmatmul.f32.gmra.mxu0 %v307
    %v388 = vpop.f32.mrf.mxu0
    %v389 = vadd.f32 %v285, %v388
    %390 = vmatmul.f32.gmra.mxu0 %v310
    %v391 = vpop.f32.mrf.mxu0
    %v392 = vadd.f32 %v285, %v391
    %393 = vdwg.mxu0
    %394 = vst [vmem:[#allocation3] sm:$0xff] %v330
    %395 = vst.msk [vmem:[#allocation3 + $0x8] sm:$0xff] %vm199, %v371
    %396 = vst [vmem:[#allocation3 + $0x10] sm:$0xff] %v333
    %397 = vst.msk [vmem:[#allocation3 + $0x18] sm:$0xff] %vm199, %v374
    %398 = vst [vmem:[#allocation3 + $0x20] sm:$0xff] %v336
    %399 = vst.msk [vmem:[#allocation3 + $0x28] sm:$0xff] %vm199, %v377
    %400 = vst [vmem:[#allocation3 + $0x30] sm:$0xff] %v339
    %401 = vst.msk [vmem:[#allocation3 + $0x38] sm:$0xff] %vm199, %v380
    %402 = vst [vmem:[#allocation3 + $0x40] sm:$0xff] %v342
    %403 = vst.msk [vmem:[#allocation3 + $0x48] sm:$0xff] %vm199, %v383
    %404 = vst [vmem:[#allocation3 + $0x50] sm:$0xff] %v345
    %405 = vst.msk [vmem:[#allocation3 + $0x58] sm:$0xff] %vm199, %v386
    %406 = vst [vmem:[#allocation3 + $0x60] sm:$0xff] %v348
    %407 = vst.msk [vmem:[#allocation3 + $0x68] sm:$0xff] %vm199, %v389
    %408 = vst [vmem:[#allocation3 + $0x70] sm:$0xff] %v351
    %409 = vst.msk [vmem:[#allocation3 + $0x78] sm:$0xff] %vm199, %v392
    %s410 = smul.u32 0, 2
    %s411 = smul.addr %s410, 8
    %s412 = scalar_lea.vmem [#allocation3], %s411
    %v413 = vld [vmem:[%s412] sm:$0xff]
    %v414 = vld [vmem:[%s412 + $0x8] sm:$0xff]
    %v415 = vld [vmem:[#allocation2] sm:$0xff]
    %v416 = vld [vmem:[#allocation11] sm:$0xff]
    %v417 = vld [vmem:[#allocation11 + $0x8] sm:$0xff]
    %v418 = vld [vmem:[#allocation11 + $0x10] sm:$0xff]
    %v419 = vld [vmem:[#allocation11 + $0x18] sm:$0xff]
    %v420 = vld [vmem:[#allocation11 + $0x20] sm:$0xff]
    %v421 = vld [vmem:[#allocation11 + $0x28] sm:$0xff]
    %v422 = vld [vmem:[#allocation11 + $0x30] sm:$0xff]
    %v423 = vld [vmem:[#allocation11 + $0x38] sm:$0xff]
    %v424 = vld [vmem:[#allocation11 + $0x40] sm:$0xff]
    %v425 = vld [vmem:[#allocation11 + $0x48] sm:$0xff]
    %v426 = vld [vmem:[#allocation11 + $0x50] sm:$0xff]
    %v427 = vld [vmem:[#allocation11 + $0x58] sm:$0xff]
    %v428 = vld [vmem:[#allocation11 + $0x60] sm:$0xff]
    %v429 = vld [vmem:[#allocation11 + $0x68] sm:$0xff]
    %v430 = vld [vmem:[#allocation11 + $0x70] sm:$0xff]
    %v431 = vld [vmem:[#allocation11 + $0x78] sm:$0xff]
    %v433 = vsel %vm199, 0.0, 0
    %435 = vmatpush.msra.mxu0 0.0
    %436 = vmatpush.msra.mxu0 0.0
    %437 = vmatpush.msra.mxu0 0.0
    %438 = vmatpush.msra.mxu0 0.0
    %439 = vmatpush.msra.mxu0 0.0
    %440 = vmatpush.msra.mxu0 0.0
    %441 = vmatpush.msra.mxu0 0.0
    %442 = vmatpush.msra.mxu0 0.0
    %443 = vmatpush.msra.mxu0 %v430
    %444 = vmatpush.msra.mxu0 %v428
    %445 = vmatpush.msra.mxu0 %v426
    %446 = vmatpush.msra.mxu0 %v424
    %447 = vmatpush.msra.mxu0 %v422
    %448 = vmatpush.msra.mxu0 %v420
    %449 = vmatpush.msra.mxu0 %v418
    %450 = vmatpush.msra.mxu0 %v416
    %451 = vmatmul.f32.gmra.mxu0 %v433
    %v452 = vpop.f32.mrf.mxu0
    %v453 = vadd.f32 0.0, %v452
    %454 = vdwg.mxu0
    %455 = vmatpush.msra.mxu0 0.0
    %456 = vmatpush.msra.mxu0 0.0
    %457 = vmatpush.msra.mxu0 0.0
    %458 = vmatpush.msra.mxu0 0.0
    %459 = vmatpush.msra.mxu0 0.0
    %460 = vmatpush.msra.mxu0 0.0
    %461 = vmatpush.msra.mxu0 0.0
    %462 = vmatpush.msra.mxu0 0.0
    %463 = vmatpush.msra.mxu0 %v431
    %464 = vmatpush.msra.mxu0 %v429
    %465 = vmatpush.msra.mxu0 %v427
    %466 = vmatpush.msra.mxu0 %v425
    %467 = vmatpush.msra.mxu0 %v423
    %468 = vmatpush.msra.mxu0 %v421
    %469 = vmatpush.msra.mxu0 %v419
    %470 = vmatpush.msra.mxu0 %v417
    %471 = vmatmul.f32.gmra.mxu0 %v433
    %v472 = vpop.f32.mrf.mxu0
    %v473 = vadd.f32 0.0, %v472
    %474 = vdwg.mxu0
    %v475 = vadd.f32 %v413, %v453
    %v476 = vxor.u32 %v475, 2147483648
    %v477 = vmul.f32 %v476, 1.442695
    %v478 = vpow.pop %v477
    %v479 = vadd.f32 %v478, 1.0
    %v480 = vrcp.pop %v479
    %v481 = vmul.f32 %v479, %v480
    %v482 = vsub.f32 1.0, %v481
    %v483 = vmul.f32 %v480, %v482
    %v484 = vadd.f32 %v480, %v483
    %vm485 = vweird.f32 %v479
    %vm486 = vweird.f32 %v480
    %vm487 = vmor %vm485, %vm486
    %v488 = vsel %vm487, %v480, %v484
    %v489 = vand.u32 2147483647, %v479
    %vm490 = vcmp.eq.f32.partialorder %v489, 8.507059e+37
    %v491 = vand.u32 %v479, 2147483648
    %v492 = vor.u32 1.1754944e-38, %v491
    %v493 = vsel %vm490, %v492, %v488
    %v494 = vmul.f32 1.0, %v493
    %v495 = vld [vmem:[#allocation13] sm:$0x1]
    %v497 = vperm.slane %v495, 0
    %v499 = vadd.f32 %v473, %v497
    %v500 = vmul.f32 %v494, %v499
    %v501 = vadd.f32 %v414, %v500
    %v502 = vtanh.pop %v501
    %v503 = vsub.f32 1.0, %v494
    %505 = vrot.lane.b32.xlu0 %v502, 64
    %v506 = vpop.permute.xlu0 %505
    %v508 = vmul.f32 %v503, %v506
    %v509 = vmul.f32 %v494, 0.0
    %v510 = vadd.f32 %v508, %v509
    %v511 = vld [vmem:[#allocation14] sm:$0x1]
    %v513 = vperm.slane %v511, 0
    %514 = vrot.lane.b32.xlu0 %v513, 64
    %v515 = vpop.permute.xlu0 %514
    %v517 = vmul.f32 %v510, %v515
    %519 = vrot.lane.b32.xlu0 %v517, 64
    %v520 = vpop.permute.xlu0 %519
    %v522 = vsel %vm265, %v520, 0.0
    %523 = vadd.xlane.f32.xlu0 %v522
    %v524 = vpop.xlane.xlu0 %523
    %v525 = vld [vmem:[#allocation4] sm:$0x1]
    %v527 = vperm.slane %v525, 0
    %v529 = vadd.f32 %v524, %v527
    %v530 = vld [vmem:[%s10] sm:$0xff]
    %v531 = vld [vmem:[%s10 + $0x8] sm:$0xff]
    %v532 = vld [vmem:[%s10 + $0x10] sm:$0xff]
    %v533 = vld [vmem:[%s10 + $0x18] sm:$0xff]
    %v534 = vld [vmem:[%s11] sm:$0x1]
    %v536 = vperm.slane %v534, 0
    %539 = vrot.lane.b32.xlu0 %v510, 32
    %v540 = vpop.permute.xlu0 %539
    %v541 = vsel %vm265, %v540, 0
    %543 = vmatpush.msra.mxu0 0.0
    %544 = vmatpush.msra.mxu0 0.0
    %545 = vmatpush.msra.mxu0 0.0
    %546 = vmatpush.msra.mxu0 0.0
    %547 = vmatpush.msra.mxu0 0.0
    %548 = vmatpush.msra.mxu0 0.0
    %549 = vmatpush.msra.mxu0 0.0
    %550 = vmatpush.msra.mxu0 0.0
    %551 = vmatpush.msra.mxu0 0.0
    %552 = vmatpush.msra.mxu0 0.0
    %553 = vmatpush.msra.mxu0 0.0
    %554 = vmatpush.msra.mxu0 0.0
    %555 = vmatpush.msra.mxu0 %v533
    %556 = vmatpush.msra.mxu0 %v532
    %557 = vmatpush.msra.mxu0 %v531
    %558 = vmatpush.msra.mxu0 %v530
    %559 = vmatmul.f32.gmra.mxu0 %v541
    %v560 = vpop.f32.mrf.mxu0
    %v561 = vadd.f32 %v536, %v560
    %562 = vdwg.mxu0
    %v563 = vtanh.pop %v561
    %v564 = vmul.f32 %v415, %v563
    %v565 = vsub.f32 -inf, %v529
    %v566 = vmul.f32 %v565, 1.442695
    %v567 = vpow.pop %v566
    %v568 = vsub.f32 %v529, %v529
    %v569 = vmul.f32 %v568, 1.442695
    %v570 = vpow.pop %v569
    %v571 = vmul.f32 %v567, 0.0
    %v572 = vadd.f32 %v571, %v570
    %574 = vset.pattern.permute.xlu0 0
    %575 = vperm.xlu0 %574, %v567
    %v576 = vpop.permute.xlu0 %575
    %v578 = vmul.f32 %v576, 0.0
    %580 = vset.pattern.permute.xlu0 0
    %581 = vperm.xlu0 %580, %v570
    %v582 = vpop.permute.xlu0 %581
    %v584 = vmul.f32 %v582, %v564
    %v585 = vadd.f32 %v578, %v584
    %s586 = smul.u32 1, 2
    %s587 = smul.addr %s586, 8
    %s588 = scalar_lea.vmem [#allocation3], %s587
    %v589 = vld [vmem:[%s588] sm:$0xff]
    %v590 = vld [vmem:[%s588 + $0x8] sm:$0xff]
    %s591 = scalar_lea.vmem [#allocation2], 8
    %v592 = vld [vmem:[%s591] sm:$0xff]
    %593 = vrot.lane.b32.xlu0 %v510, 64
    %v594 = vpop.permute.xlu0 %593
    %v595 = vsel %vm199, %v594, 0
    %597 = vmatpush.msra.mxu0 0.0
    %598 = vmatpush.msra.mxu0 0.0
    %599 = vmatpush.msra.mxu0 0.0
    %600 = vmatpush.msra.mxu0 0.0
    %601 = vmatpush.msra.mxu0 0.0
    %602 = vmatpush.msra.mxu0 0.0
    %603 = vmatpush.msra.mxu0 0.0
    %604 = vmatpush.msra.mxu0 0.0
    %605 = vmatpush.msra.mxu0 %v430
    %606 = vmatpush.msra.mxu0 %v428
    %607 = vmatpush.msra.mxu0 %v426
    %608 = vmatpush.msra.mxu0 %v424
    %609 = vmatpush.msra.mxu0 %v422
    %610 = vmatpush.msra.mxu0 %v420
    %611 = vmatpush.msra.mxu0 %v418
    %612 = vmatpush.msra.mxu0 %v416
    %613 = vmatmul.f32.gmra.mxu0 %v595
    %v614 = vpop.f32.mrf.mxu0
    %v615 = vadd.f32 0.0, %v614
    %616 = vdwg.mxu0
    %617 = vmatpush.msra.mxu0 0.0
    %618 = vmatpush.msra.mxu0 0.0
    %619 = vmatpush.msra.mxu0 0.0
    %620 = vmatpush.msra.mxu0 0.0
    %621 = vmatpush.msra.mxu0 0.0
    %622 = vmatpush.msra.mxu0 0.0
    %623 = vmatpush.msra.mxu0 0.0
    %624 = vmatpush.msra.mxu0 0.0
    %625 = vmatpush.msra.mxu0 %v431
    %626 = vmatpush.msra.mxu0 %v429
    %627 = vmatpush.msra.mxu0 %v427
    %628 = vmatpush.msra.mxu0 %v425
    %629 = vmatpush.msra.mxu0 %v423
    %630 = vmatpush.msra.mxu0 %v421
    %631 = vmatpush.msra.mxu0 %v419
    %632 = vmatpush.msra.mxu0 %v417
    %633 = vmatmul.f32.gmra.mxu0 %v595
    %v634 = vpop.f32.mrf.mxu0
    %v635 = vadd.f32 0.0, %v634
    %636 = vdwg.mxu0
    %v637 = vadd.f32 %v589, %v615
    %v638 = vxor.u32 %v637, 2147483648
    %v639 = vmul.f32 %v638, 1.442695
    %v640 = vpow.pop %v639
    %v641 = vadd.f32 %v640, 1.0
    %v642 = vrcp.pop %v641
    %v643 = vmul.f32 %v641, %v642
    %v644 = vsub.f32 1.0, %v643
    %v645 = vmul.f32 %v642, %v644
    %v646 = vadd.f32 %v642, %v645
    %vm647 = vweird.f32 %v641
    %vm648 = vweird.f32 %v642
    %vm649 = vmor %vm647, %vm648
    %v650 = vsel %vm649, %v642, %v646
    %v651 = vand.u32 2147483647, %v641
    %vm652 = vcmp.eq.f32.partialorder %v651, 8.507059e+37
    %v653 = vand.u32 %v641, 2147483648
    %v654 = vor.u32 1.1754944e-38, %v653
    %v655 = vsel %vm652, %v654, %v650
    %v656 = vmul.f32 1.0, %v655
    %v657 = vadd.f32 %v635, %v497
    %v658 = vmul.f32 %v656, %v657
    %v659 = vadd.f32 %v590, %v658
    %v660 = vtanh.pop %v659
    %v661 = vsub.f32 1.0, %v656
    %663 = vrot.lane.b32.xlu0 %v660, 64
    %v664 = vpop.permute.xlu0 %663
    %v666 = vmul.f32 %v661, %v664
    %v667 = vmul.f32 %v656, %v510
    %v668 = vadd.f32 %v666, %v667
    %v669 = vmul.f32 %v668, %v515
    %671 = vrot.lane.b32.xlu0 %v669, 64
    %v672 = vpop.permute.xlu0 %671
    %v674 = vsel %vm265, %v672, 0.0
    %675 = vadd.xlane.f32.xlu0 %v674
    %v676 = vpop.xlane.xlu0 %675
    %v677 = vadd.f32 %v676, %v527
    %679 = vrot.lane.b32.xlu0 %v668, 32
    %v680 = vpop.permute.xlu0 %679
    %v681 = vsel %vm265, %v680, 0
    %683 = vmatpush.msra.mxu0 0.0
    %684 = vmatpush.msra.mxu0 0.0
    %685 = vmatpush.msra.mxu0 0.0
    %686 = vmatpush.msra.mxu0 0.0
    %687 = vmatpush.msra.mxu0 0.0
    %688 = vmatpush.msra.mxu0 0.0
    %689 = vmatpush.msra.mxu0 0.0
    %690 = vmatpush.msra.mxu0 0.0
    %691 = vmatpush.msra.mxu0 0.0
    %692 = vmatpush.msra.mxu0 0.0
    %693 = vmatpush.msra.mxu0 0.0
    %694 = vmatpush.msra.mxu0 0.0
    %695 = vmatpush.msra.mxu0 %v533
    %696 = vmatpush.msra.mxu0 %v532
    %697 = vmatpush.msra.mxu0 %v531
    %698 = vmatpush.msra.mxu0 %v530
    %699 = vmatmul.f32.gmra.mxu0 %v681
    %v700 = vpop.f32.mrf.mxu0
    %v701 = vadd.f32 %v536, %v700
    %702 = vdwg.mxu0
    %v703 = vtanh.pop %v701
    %v704 = vmul.f32 %v592, %v703
    %v705 = vmax.f32 %v529, %v677
    %v706 = vsub.f32 %v529, %v705
    %v707 = vmul.f32 %v706, 1.442695
    %v708 = vpow.pop %v707
    %v709 = vsub.f32 %v677, %v705
    %v710 = vmul.f32 %v709, 1.442695
    %v711 = vpow.pop %v710
    %v712 = vmul.f32 %v572, %v708
    %v713 = vadd.f32 %v712, %v711
    %715 = vset.pattern.permute.xlu0 0
    %716 = vperm.xlu0 %715, %v708
    %v717 = vpop.permute.xlu0 %716
    %v719 = vmul.f32 %v585, %v717
    %721 = vset.pattern.permute.xlu0 0
    %722 = vperm.xlu0 %721, %v711
    %v723 = vpop.permute.xlu0 %722
    %v725 = vmul.f32 %v723, %v704
    %v726 = vadd.f32 %v719, %v725
    %s727 = smul.u32 2, 2
    %s728 = smul.addr %s727, 8
    %s729 = scalar_lea.vmem [#allocation3], %s728
    %v730 = vld [vmem:[%s729] sm:$0xff]
    %v731 = vld [vmem:[%s729 + $0x8] sm:$0xff]
    %s732 = scalar_lea.vmem [#allocation2], 16
    %v733 = vld [vmem:[%s732] sm:$0xff]
    %734 = vrot.lane.b32.xlu0 %v668, 64
    %v735 = vpop.permute.xlu0 %734
    %v736 = vsel %vm199, %v735, 0
    %738 = vmatpush.msra.mxu0 0.0
    %739 = vmatpush.msra.mxu0 0.0
    %740 = vmatpush.msra.mxu0 0.0
    %741 = vmatpush.msra.mxu0 0.0
    %742 = vmatpush.msra.mxu0 0.0
    %743 = vmatpush.msra.mxu0 0.0
    %744 = vmatpush.msra.mxu0 0.0
    %745 = vmatpush.msra.mxu0 0.0
    %746 = vmatpush.msra.mxu0 %v430
    %747 = vmatpush.msra.mxu0 %v428
    %748 = vmatpush.msra.mxu0 %v426
    %749 = vmatpush.msra.mxu0 %v424
    %750 = vmatpush.msra.mxu0 %v422
    %751 = vmatpush.msra.mxu0 %v420
    %752 = vmatpush.msra.mxu0 %v418
    %753 = vmatpush.msra.mxu0 %v416
    %754 = vmatmul.f32.gmra.mxu0 %v736
    %v755 = vpop.f32.mrf.mxu0
    %v756 = vadd.f32 0.0, %v755
    %757 = vdwg.mxu0
    %758 = vmatpush.msra.mxu0 0.0
    %759 = vmatpush.msra.mxu0 0.0
    %760 = vmatpush.msra.mxu0 0.0
    %761 = vmatpush.msra.mxu0 0.0
    %762 = vmatpush.msra.mxu0 0.0
    %763 = vmatpush.msra.mxu0 0.0
    %764 = vmatpush.msra.mxu0 0.0
    %765 = vmatpush.msra.mxu0 0.0
    %766 = vmatpush.msra.mxu0 %v431
    %767 = vmatpush.msra.mxu0 %v429
    %768 = vmatpush.msra.mxu0 %v427
    %769 = vmatpush.msra.mxu0 %v425
    %770 = vmatpush.msra.mxu0 %v423
    %771 = vmatpush.msra.mxu0 %v421
    %772 = vmatpush.msra.mxu0 %v419
    %773 = vmatpush.msra.mxu0 %v417
    %774 = vmatmul.f32.gmra.mxu0 %v736
    %v775 = vpop.f32.mrf.mxu0
    %v776 = vadd.f32 0.0, %v775
    %777 = vdwg.mxu0
    %v778 = vadd.f32 %v730, %v756
    %v779 = vxor.u32 %v778, 2147483648
    %v780 = vmul.f32 %v779, 1.442695
    %v781 = vpow.pop %v780
    %v782 = vadd.f32 %v781, 1.0
    %v783 = vrcp.pop %v782
    %v784 = vmul.f32 %v782, %v783
    %v785 = vsub.f32 1.0, %v784
    %v786 = vmul.f32 %v783, %v785
    %v787 = vadd.f32 %v783, %v786
    %vm788 = vweird.f32 %v782
    %vm789 = vweird.f32 %v783
    %vm790 = vmor %vm788, %vm789
    %v791 = vsel %vm790, %v783, %v787
    %v792 = vand.u32 2147483647, %v782
    %vm793 = vcmp.eq.f32.partialorder %v792, 8.507059e+37
    %v794 = vand.u32 %v782, 2147483648
    %v795 = vor.u32 1.1754944e-38, %v794
    %v796 = vsel %vm793, %v795, %v791
    %v797 = vmul.f32 1.0, %v796
    %v798 = vadd.f32 %v776, %v497
    %v799 = vmul.f32 %v797, %v798
    %v800 = vadd.f32 %v731, %v799
    %v801 = vtanh.pop %v800
    %v802 = vsub.f32 1.0, %v797
    %804 = vrot.lane.b32.xlu0 %v801, 64
    %v805 = vpop.permute.xlu0 %804
    %v807 = vmul.f32 %v802, %v805
    %v808 = vmul.f32 %v797, %v668
    %v809 = vadd.f32 %v807, %v808
    %v810 = vmul.f32 %v809, %v515
    %812 = vrot.lane.b32.xlu0 %v810, 64
    %v813 = vpop.permute.xlu0 %812
    %v815 = vsel %vm265, %v813, 0.0
    %816 = vadd.xlane.f32.xlu0 %v815
    %v817 = vpop.xlane.xlu0 %816
    %v818 = vadd.f32 %v817, %v527
    %820 = vrot.lane.b32.xlu0 %v809, 32
    %v821 = vpop.permute.xlu0 %820
    %v822 = vsel %vm265, %v821, 0
    %824 = vmatpush.msra.mxu0 0.0
    %825 = vmatpush.msra.mxu0 0.0
    %826 = vmatpush.msra.mxu0 0.0
    %827 = vmatpush.msra.mxu0 0.0
    %828 = vmatpush.msra.mxu0 0.0
    %829 = vmatpush.msra.mxu0 0.0
    %830 = vmatpush.msra.mxu0 0.0
    %831 = vmatpush.msra.mxu0 0.0
    %832 = vmatpush.msra.mxu0 0.0
    %833 = vmatpush.msra.mxu0 0.0
    %834 = vmatpush.msra.mxu0 0.0
    %835 = vmatpush.msra.mxu0 0.0
    %836 = vmatpush.msra.mxu0 %v533
    %837 = vmatpush.msra.mxu0 %v532
    %838 = vmatpush.msra.mxu0 %v531
    %839 = vmatpush.msra.mxu0 %v530
    %840 = vmatmul.f32.gmra.mxu0 %v822
    %v841 = vpop.f32.mrf.mxu0
    %v842 = vadd.f32 %v536, %v841
    %843 = vdwg.mxu0
    %v844 = vtanh.pop %v842
    %v845 = vmul.f32 %v733, %v844
    %v846 = vmax.f32 %v705, %v818
    %v847 = vsub.f32 %v705, %v846
    %v848 = vmul.f32 %v847, 1.442695
    %v849 = vpow.pop %v848
    %v850 = vsub.f32 %v818, %v846
    %v851 = vmul.f32 %v850, 1.442695
    %v852 = vpow.pop %v851
    %v853 = vmul.f32 %v713, %v849
    %v854 = vadd.f32 %v853, %v852
    %856 = vset.pattern.permute.xlu0 0
    %857 = vperm.xlu0 %856, %v849
    %v858 = vpop.permute.xlu0 %857
    %v860 = vmul.f32 %v726, %v858
    %862 = vset.pattern.permute.xlu0 0
    %863 = vperm.xlu0 %862, %v852
    %v864 = vpop.permute.xlu0 %863
    %v866 = vmul.f32 %v864, %v845
    %v867 = vadd.f32 %v860, %v866
    %s868 = smul.u32 3, 2
    %s869 = smul.addr %s868, 8
    %s870 = scalar_lea.vmem [#allocation3], %s869
    %v871 = vld [vmem:[%s870] sm:$0xff]
    %v872 = vld [vmem:[%s870 + $0x8] sm:$0xff]
    %s873 = scalar_lea.vmem [#allocation2], 24
    %v874 = vld [vmem:[%s873] sm:$0xff]
    %875 = vrot.lane.b32.xlu0 %v809, 64
    %v876 = vpop.permute.xlu0 %875
    %v877 = vsel %vm199, %v876, 0
    %879 = vmatpush.msra.mxu0 0.0
    %880 = vmatpush.msra.mxu0 0.0
    %881 = vmatpush.msra.mxu0 0.0
    %882 = vmatpush.msra.mxu0 0.0
    %883 = vmatpush.msra.mxu0 0.0
    %884 = vmatpush.msra.mxu0 0.0
    %885 = vmatpush.msra.mxu0 0.0
    %886 = vmatpush.msra.mxu0 0.0
    %887 = vmatpush.msra.mxu0 %v430
    %888 = vmatpush.msra.mxu0 %v428
    %889 = vmatpush.msra.mxu0 %v426
    %890 = vmatpush.msra.mxu0 %v424
    %891 = vmatpush.msra.mxu0 %v422
    %892 = vmatpush.msra.mxu0 %v420
    %893 = vmatpush.msra.mxu0 %v418
    %894 = vmatpush.msra.mxu0 %v416
    %895 = vmatmul.f32.gmra.mxu0 %v877
    %v896 = vpop.f32.mrf.mxu0
    %v897 = vadd.f32 0.0, %v896
    %898 = vdwg.mxu0
    %899 = vmatpush.msra.mxu0 0.0
    %900 = vmatpush.msra.mxu0 0.0
    %901 = vmatpush.msra.mxu0 0.0
    %902 = vmatpush.msra.mxu0 0.0
    %903 = vmatpush.msra.mxu0 0.0
    %904 = vmatpush.msra.mxu0 0.0
    %905 = vmatpush.msra.mxu0 0.0
    %906 = vmatpush.msra.mxu0 0.0
    %907 = vmatpush.msra.mxu0 %v431
    %908 = vmatpush.msra.mxu0 %v429
    %909 = vmatpush.msra.mxu0 %v427
    %910 = vmatpush.msra.mxu0 %v425
    %911 = vmatpush.msra.mxu0 %v423
    %912 = vmatpush.msra.mxu0 %v421
    %913 = vmatpush.msra.mxu0 %v419
    %914 = vmatpush.msra.mxu0 %v417
    %915 = vmatmul.f32.gmra.mxu0 %v877
    %v916 = vpop.f32.mrf.mxu0
    %v917 = vadd.f32 0.0, %v916
    %918 = vdwg.mxu0
    %v919 = vadd.f32 %v871, %v897
    %v920 = vxor.u32 %v919, 2147483648
    %v921 = vmul.f32 %v920, 1.442695
    %v922 = vpow.pop %v921
    %v923 = vadd.f32 %v922, 1.0
    %v924 = vrcp.pop %v923
    %v925 = vmul.f32 %v923, %v924
    %v926 = vsub.f32 1.0, %v925
    %v927 = vmul.f32 %v924, %v926
    %v928 = vadd.f32 %v924, %v927
    %vm929 = vweird.f32 %v923
    %vm930 = vweird.f32 %v924
    %vm931 = vmor %vm929, %vm930
    %v932 = vsel %vm931, %v924, %v928
    %v933 = vand.u32 2147483647, %v923
    %vm934 = vcmp.eq.f32.partialorder %v933, 8.507059e+37
    %v935 = vand.u32 %v923, 2147483648
    %v936 = vor.u32 1.1754944e-38, %v935
    %v937 = vsel %vm934, %v936, %v932
    %v938 = vmul.f32 1.0, %v937
    %v939 = vadd.f32 %v917, %v497
    %v940 = vmul.f32 %v938, %v939
    %v941 = vadd.f32 %v872, %v940
    %v942 = vtanh.pop %v941
    %v943 = vsub.f32 1.0, %v938
    %945 = vrot.lane.b32.xlu0 %v942, 64
    %v946 = vpop.permute.xlu0 %945
    %v948 = vmul.f32 %v943, %v946
    %v949 = vmul.f32 %v938, %v809
    %v950 = vadd.f32 %v948, %v949
    %v951 = vmul.f32 %v950, %v515
    %953 = vrot.lane.b32.xlu0 %v951, 64
    %v954 = vpop.permute.xlu0 %953
    %v956 = vsel %vm265, %v954, 0.0
    %957 = vadd.xlane.f32.xlu0 %v956
    %v958 = vpop.xlane.xlu0 %957
    %v959 = vadd.f32 %v958, %v527
    %961 = vrot.lane.b32.xlu0 %v950, 32
    %v962 = vpop.permute.xlu0 %961
    %v963 = vsel %vm265, %v962, 0
    %965 = vmatpush.msra.mxu0 0.0
    %966 = vmatpush.msra.mxu0 0.0
    %967 = vmatpush.msra.mxu0 0.0
    %968 = vmatpush.msra.mxu0 0.0
    %969 = vmatpush.msra.mxu0 0.0
    %970 = vmatpush.msra.mxu0 0.0
    %971 = vmatpush.msra.mxu0 0.0
    %972 = vmatpush.msra.mxu0 0.0
    %973 = vmatpush.msra.mxu0 0.0
    %974 = vmatpush.msra.mxu0 0.0
    %975 = vmatpush.msra.mxu0 0.0
    %976 = vmatpush.msra.mxu0 0.0
    %977 = vmatpush.msra.mxu0 %v533
    %978 = vmatpush.msra.mxu0 %v532
    %979 = vmatpush.msra.mxu0 %v531
    %980 = vmatpush.msra.mxu0 %v530
    %981 = vmatmul.f32.gmra.mxu0 %v963
    %v982 = vpop.f32.mrf.mxu0
    %v983 = vadd.f32 %v536, %v982
    %984 = vdwg.mxu0
    %v985 = vtanh.pop %v983
    %v986 = vmul.f32 %v874, %v985
    %v987 = vmax.f32 %v846, %v959
    %v988 = vsub.f32 %v846, %v987
    %v989 = vmul.f32 %v988, 1.442695
    %v990 = vpow.pop %v989
    %v991 = vsub.f32 %v959, %v987
    %v992 = vmul.f32 %v991, 1.442695
    %v993 = vpow.pop %v992
    %v994 = vmul.f32 %v854, %v990
    %v995 = vadd.f32 %v994, %v993
    %997 = vset.pattern.permute.xlu0 0
    %998 = vperm.xlu0 %997, %v990
    %v999 = vpop.permute.xlu0 %998
    %v1001 = vmul.f32 %v867, %v999
    %1003 = vset.pattern.permute.xlu0 0
    %1004 = vperm.xlu0 %1003, %v993
    %v1005 = vpop.permute.xlu0 %1004
    %v1007 = vmul.f32 %v1005, %v986
    %v1008 = vadd.f32 %v1001, %v1007
    %s1009 = smul.u32 4, 2
    %s1010 = smul.addr %s1009, 8
    %s1011 = scalar_lea.vmem [#allocation3], %s1010
    %v1012 = vld [vmem:[%s1011] sm:$0xff]
    %v1013 = vld [vmem:[%s1011 + $0x8] sm:$0xff]
    %s1014 = scalar_lea.vmem [#allocation2], 32
    %v1015 = vld [vmem:[%s1014] sm:$0xff]
    %1016 = vrot.lane.b32.xlu0 %v950, 64
    %v1017 = vpop.permute.xlu0 %1016
    %v1018 = vsel %vm199, %v1017, 0
    %1020 = vmatpush.msra.mxu0 0.0
    %1021 = vmatpush.msra.mxu0 0.0
    %1022 = vmatpush.msra.mxu0 0.0
    %1023 = vmatpush.msra.mxu0 0.0
    %1024 = vmatpush.msra.mxu0 0.0
    %1025 = vmatpush.msra.mxu0 0.0
    %1026 = vmatpush.msra.mxu0 0.0
    %1027 = vmatpush.msra.mxu0 0.0
    %1028 = vmatpush.msra.mxu0 %v430
    %1029 = vmatpush.msra.mxu0 %v428
    %1030 = vmatpush.msra.mxu0 %v426
    %1031 = vmatpush.msra.mxu0 %v424
    %1032 = vmatpush.msra.mxu0 %v422
    %1033 = vmatpush.msra.mxu0 %v420
    %1034 = vmatpush.msra.mxu0 %v418
    %1035 = vmatpush.msra.mxu0 %v416
    %1036 = vmatmul.f32.gmra.mxu0 %v1018
    %v1037 = vpop.f32.mrf.mxu0
    %v1038 = vadd.f32 0.0, %v1037
    %1039 = vdwg.mxu0
    %1040 = vmatpush.msra.mxu0 0.0
    %1041 = vmatpush.msra.mxu0 0.0
    %1042 = vmatpush.msra.mxu0 0.0
    %1043 = vmatpush.msra.mxu0 0.0
    %1044 = vmatpush.msra.mxu0 0.0
    %1045 = vmatpush.msra.mxu0 0.0
    %1046 = vmatpush.msra.mxu0 0.0
    %1047 = vmatpush.msra.mxu0 0.0
    %1048 = vmatpush.msra.mxu0 %v431
    %1049 = vmatpush.msra.mxu0 %v429
    %1050 = vmatpush.msra.mxu0 %v427
    %1051 = vmatpush.msra.mxu0 %v425
    %1052 = vmatpush.msra.mxu0 %v423
    %1053 = vmatpush.msra.mxu0 %v421
    %1054 = vmatpush.msra.mxu0 %v419
    %1055 = vmatpush.msra.mxu0 %v417
    %1056 = vmatmul.f32.gmra.mxu0 %v1018
    %v1057 = vpop.f32.mrf.mxu0
    %v1058 = vadd.f32 0.0, %v1057
    %1059 = vdwg.mxu0
    %v1060 = vadd.f32 %v1012, %v1038
    %v1061 = vxor.u32 %v1060, 2147483648
    %v1062 = vmul.f32 %v1061, 1.442695
    %v1063 = vpow.pop %v1062
    %v1064 = vadd.f32 %v1063, 1.0
    %v1065 = vrcp.pop %v1064
    %v1066 = vmul.f32 %v1064, %v1065
    %v1067 = vsub.f32 1.0, %v1066
    %v1068 = vmul.f32 %v1065, %v1067
    %v1069 = vadd.f32 %v1065, %v1068
    %vm1070 = vweird.f32 %v1064
    %vm1071 = vweird.f32 %v1065
    %vm1072 = vmor %vm1070, %vm1071
    %v1073 = vsel %vm1072, %v1065, %v1069
    %v1074 = vand.u32 2147483647, %v1064
    %vm1075 = vcmp.eq.f32.partialorder %v1074, 8.507059e+37
    %v1076 = vand.u32 %v1064, 2147483648
    %v1077 = vor.u32 1.1754944e-38, %v1076
    %v1078 = vsel %vm1075, %v1077, %v1073
    %v1079 = vmul.f32 1.0, %v1078
    %v1080 = vadd.f32 %v1058, %v497
    %v1081 = vmul.f32 %v1079, %v1080
    %v1082 = vadd.f32 %v1013, %v1081
    %v1083 = vtanh.pop %v1082
    %v1084 = vsub.f32 1.0, %v1079
    %1086 = vrot.lane.b32.xlu0 %v1083, 64
    %v1087 = vpop.permute.xlu0 %1086
    %v1089 = vmul.f32 %v1084, %v1087
    %v1090 = vmul.f32 %v1079, %v950
    %v1091 = vadd.f32 %v1089, %v1090
    %v1092 = vmul.f32 %v1091, %v515
    %1094 = vrot.lane.b32.xlu0 %v1092, 64
    %v1095 = vpop.permute.xlu0 %1094
    %v1097 = vsel %vm265, %v1095, 0.0
    %1098 = vadd.xlane.f32.xlu0 %v1097
    %v1099 = vpop.xlane.xlu0 %1098
    %v1100 = vadd.f32 %v1099, %v527
    %1102 = vrot.lane.b32.xlu0 %v1091, 32
    %v1103 = vpop.permute.xlu0 %1102
    %v1104 = vsel %vm265, %v1103, 0
    %1106 = vmatpush.msra.mxu0 0.0
    %1107 = vmatpush.msra.mxu0 0.0
    %1108 = vmatpush.msra.mxu0 0.0
    %1109 = vmatpush.msra.mxu0 0.0
    %1110 = vmatpush.msra.mxu0 0.0
    %1111 = vmatpush.msra.mxu0 0.0
    %1112 = vmatpush.msra.mxu0 0.0
    %1113 = vmatpush.msra.mxu0 0.0
    %1114 = vmatpush.msra.mxu0 0.0
    %1115 = vmatpush.msra.mxu0 0.0
    %1116 = vmatpush.msra.mxu0 0.0
    %1117 = vmatpush.msra.mxu0 0.0
    %1118 = vmatpush.msra.mxu0 %v533
    %1119 = vmatpush.msra.mxu0 %v532
    %1120 = vmatpush.msra.mxu0 %v531
    %1121 = vmatpush.msra.mxu0 %v530
    %1122 = vmatmul.f32.gmra.mxu0 %v1104
    %v1123 = vpop.f32.mrf.mxu0
    %v1124 = vadd.f32 %v536, %v1123
    %1125 = vdwg.mxu0
    %v1126 = vtanh.pop %v1124
    %v1127 = vmul.f32 %v1015, %v1126
    %v1128 = vmax.f32 %v987, %v1100
    %v1129 = vsub.f32 %v987, %v1128
    %v1130 = vmul.f32 %v1129, 1.442695
    %v1131 = vpow.pop %v1130
    %v1132 = vsub.f32 %v1100, %v1128
    %v1133 = vmul.f32 %v1132, 1.442695
    %v1134 = vpow.pop %v1133
    %v1135 = vmul.f32 %v995, %v1131
    %v1136 = vadd.f32 %v1135, %v1134
    %1138 = vset.pattern.permute.xlu0 0
    %1139 = vperm.xlu0 %1138, %v1131
    %v1140 = vpop.permute.xlu0 %1139
    %v1142 = vmul.f32 %v1008, %v1140
    %1144 = vset.pattern.permute.xlu0 0
    %1145 = vperm.xlu0 %1144, %v1134
    %v1146 = vpop.permute.xlu0 %1145
    %v1148 = vmul.f32 %v1146, %v1127
    %v1149 = vadd.f32 %v1142, %v1148
    %s1150 = smul.u32 5, 2
    %s1151 = smul.addr %s1150, 8
    %s1152 = scalar_lea.vmem [#allocation3], %s1151
    %v1153 = vld [vmem:[%s1152] sm:$0xff]
    %v1154 = vld [vmem:[%s1152 + $0x8] sm:$0xff]
    %s1155 = scalar_lea.vmem [#allocation2], 40
    %v1156 = vld [vmem:[%s1155] sm:$0xff]
    %1157 = vrot.lane.b32.xlu0 %v1091, 64
    %v1158 = vpop.permute.xlu0 %1157
    %v1159 = vsel %vm199, %v1158, 0
    %1161 = vmatpush.msra.mxu0 0.0
    %1162 = vmatpush.msra.mxu0 0.0
    %1163 = vmatpush.msra.mxu0 0.0
    %1164 = vmatpush.msra.mxu0 0.0
    %1165 = vmatpush.msra.mxu0 0.0
    %1166 = vmatpush.msra.mxu0 0.0
    %1167 = vmatpush.msra.mxu0 0.0
    %1168 = vmatpush.msra.mxu0 0.0
    %1169 = vmatpush.msra.mxu0 %v430
    %1170 = vmatpush.msra.mxu0 %v428
    %1171 = vmatpush.msra.mxu0 %v426
    %1172 = vmatpush.msra.mxu0 %v424
    %1173 = vmatpush.msra.mxu0 %v422
    %1174 = vmatpush.msra.mxu0 %v420
    %1175 = vmatpush.msra.mxu0 %v418
    %1176 = vmatpush.msra.mxu0 %v416
    %1177 = vmatmul.f32.gmra.mxu0 %v1159
    %v1178 = vpop.f32.mrf.mxu0
    %v1179 = vadd.f32 0.0, %v1178
    %1180 = vdwg.mxu0
    %1181 = vmatpush.msra.mxu0 0.0
    %1182 = vmatpush.msra.mxu0 0.0
    %1183 = vmatpush.msra.mxu0 0.0
    %1184 = vmatpush.msra.mxu0 0.0
    %1185 = vmatpush.msra.mxu0 0.0
    %1186 = vmatpush.msra.mxu0 0.0
    %1187 = vmatpush.msra.mxu0 0.0
    %1188 = vmatpush.msra.mxu0 0.0
    %1189 = vmatpush.msra.mxu0 %v431
    %1190 = vmatpush.msra.mxu0 %v429
    %1191 = vmatpush.msra.mxu0 %v427
    %1192 = vmatpush.msra.mxu0 %v425
    %1193 = vmatpush.msra.mxu0 %v423
    %1194 = vmatpush.msra.mxu0 %v421
    %1195 = vmatpush.msra.mxu0 %v419
    %1196 = vmatpush.msra.mxu0 %v417
    %1197 = vmatmul.f32.gmra.mxu0 %v1159
    %v1198 = vpop.f32.mrf.mxu0
    %v1199 = vadd.f32 0.0, %v1198
    %1200 = vdwg.mxu0
    %v1201 = vadd.f32 %v1153, %v1179
    %v1202 = vxor.u32 %v1201, 2147483648
    %v1203 = vmul.f32 %v1202, 1.442695
    %v1204 = vpow.pop %v1203
    %v1205 = vadd.f32 %v1204, 1.0
    %v1206 = vrcp.pop %v1205
    %v1207 = vmul.f32 %v1205, %v1206
    %v1208 = vsub.f32 1.0, %v1207
    %v1209 = vmul.f32 %v1206, %v1208
    %v1210 = vadd.f32 %v1206, %v1209
    %vm1211 = vweird.f32 %v1205
    %vm1212 = vweird.f32 %v1206
    %vm1213 = vmor %vm1211, %vm1212
    %v1214 = vsel %vm1213, %v1206, %v1210
    %v1215 = vand.u32 2147483647, %v1205
    %vm1216 = vcmp.eq.f32.partialorder %v1215, 8.507059e+37
    %v1217 = vand.u32 %v1205, 2147483648
    %v1218 = vor.u32 1.1754944e-38, %v1217
    %v1219 = vsel %vm1216, %v1218, %v1214
    %v1220 = vmul.f32 1.0, %v1219
    %v1221 = vadd.f32 %v1199, %v497
    %v1222 = vmul.f32 %v1220, %v1221
    %v1223 = vadd.f32 %v1154, %v1222
    %v1224 = vtanh.pop %v1223
    %v1225 = vsub.f32 1.0, %v1220
    %1227 = vrot.lane.b32.xlu0 %v1224, 64
    %v1228 = vpop.permute.xlu0 %1227
    %v1230 = vmul.f32 %v1225, %v1228
    %v1231 = vmul.f32 %v1220, %v1091
    %v1232 = vadd.f32 %v1230, %v1231
    %v1233 = vmul.f32 %v1232, %v515
    %1235 = vrot.lane.b32.xlu0 %v1233, 64
    %v1236 = vpop.permute.xlu0 %1235
    %v1238 = vsel %vm265, %v1236, 0.0
    %1239 = vadd.xlane.f32.xlu0 %v1238
    %v1240 = vpop.xlane.xlu0 %1239
    %v1241 = vadd.f32 %v1240, %v527
    %1243 = vrot.lane.b32.xlu0 %v1232, 32
    %v1244 = vpop.permute.xlu0 %1243
    %v1245 = vsel %vm265, %v1244, 0
    %1247 = vmatpush.msra.mxu0 0.0
    %1248 = vmatpush.msra.mxu0 0.0
    %1249 = vmatpush.msra.mxu0 0.0
    %1250 = vmatpush.msra.mxu0 0.0
    %1251 = vmatpush.msra.mxu0 0.0
    %1252 = vmatpush.msra.mxu0 0.0
    %1253 = vmatpush.msra.mxu0 0.0
    %1254 = vmatpush.msra.mxu0 0.0
    %1255 = vmatpush.msra.mxu0 0.0
    %1256 = vmatpush.msra.mxu0 0.0
    %1257 = vmatpush.msra.mxu0 0.0
    %1258 = vmatpush.msra.mxu0 0.0
    %1259 = vmatpush.msra.mxu0 %v533
    %1260 = vmatpush.msra.mxu0 %v532
    %1261 = vmatpush.msra.mxu0 %v531
    %1262 = vmatpush.msra.mxu0 %v530
    %1263 = vmatmul.f32.gmra.mxu0 %v1245
    %v1264 = vpop.f32.mrf.mxu0
    %v1265 = vadd.f32 %v536, %v1264
    %1266 = vdwg.mxu0
    %v1267 = vtanh.pop %v1265
    %v1268 = vmul.f32 %v1156, %v1267
    %v1269 = vmax.f32 %v1128, %v1241
    %v1270 = vsub.f32 %v1128, %v1269
    %v1271 = vmul.f32 %v1270, 1.442695
    %v1272 = vpow.pop %v1271
    %v1273 = vsub.f32 %v1241, %v1269
    %v1274 = vmul.f32 %v1273, 1.442695
    %v1275 = vpow.pop %v1274
    %v1276 = vmul.f32 %v1136, %v1272
    %v1277 = vadd.f32 %v1276, %v1275
    %1279 = vset.pattern.permute.xlu0 0
    %1280 = vperm.xlu0 %1279, %v1272
    %v1281 = vpop.permute.xlu0 %1280
    %v1283 = vmul.f32 %v1149, %v1281
    %1285 = vset.pattern.permute.xlu0 0
    %1286 = vperm.xlu0 %1285, %v1275
    %v1287 = vpop.permute.xlu0 %1286
    %v1289 = vmul.f32 %v1287, %v1268
    %v1290 = vadd.f32 %v1283, %v1289
    %s1291 = smul.u32 6, 2
    %s1292 = smul.addr %s1291, 8
    %s1293 = scalar_lea.vmem [#allocation3], %s1292
    %v1294 = vld [vmem:[%s1293] sm:$0xff]
    %v1295 = vld [vmem:[%s1293 + $0x8] sm:$0xff]
    %s1296 = scalar_lea.vmem [#allocation2], 48
    %v1297 = vld [vmem:[%s1296] sm:$0xff]
    %1298 = vrot.lane.b32.xlu0 %v1232, 64
    %v1299 = vpop.permute.xlu0 %1298
    %v1300 = vsel %vm199, %v1299, 0
    %1302 = vmatpush.msra.mxu0 0.0
    %1303 = vmatpush.msra.mxu0 0.0
    %1304 = vmatpush.msra.mxu0 0.0
    %1305 = vmatpush.msra.mxu0 0.0
    %1306 = vmatpush.msra.mxu0 0.0
    %1307 = vmatpush.msra.mxu0 0.0
    %1308 = vmatpush.msra.mxu0 0.0
    %1309 = vmatpush.msra.mxu0 0.0
    %1310 = vmatpush.msra.mxu0 %v430
    %1311 = vmatpush.msra.mxu0 %v428
    %1312 = vmatpush.msra.mxu0 %v426
    %1313 = vmatpush.msra.mxu0 %v424
    %1314 = vmatpush.msra.mxu0 %v422
    %1315 = vmatpush.msra.mxu0 %v420
    %1316 = vmatpush.msra.mxu0 %v418
    %1317 = vmatpush.msra.mxu0 %v416
    %1318 = vmatmul.f32.gmra.mxu0 %v1300
    %v1319 = vpop.f32.mrf.mxu0
    %v1320 = vadd.f32 0.0, %v1319
    %1321 = vdwg.mxu0
    %1322 = vmatpush.msra.mxu0 0.0
    %1323 = vmatpush.msra.mxu0 0.0
    %1324 = vmatpush.msra.mxu0 0.0
    %1325 = vmatpush.msra.mxu0 0.0
    %1326 = vmatpush.msra.mxu0 0.0
    %1327 = vmatpush.msra.mxu0 0.0
    %1328 = vmatpush.msra.mxu0 0.0
    %1329 = vmatpush.msra.mxu0 0.0
    %1330 = vmatpush.msra.mxu0 %v431
    %1331 = vmatpush.msra.mxu0 %v429
    %1332 = vmatpush.msra.mxu0 %v427
    %1333 = vmatpush.msra.mxu0 %v425
    %1334 = vmatpush.msra.mxu0 %v423
    %1335 = vmatpush.msra.mxu0 %v421
    %1336 = vmatpush.msra.mxu0 %v419
    %1337 = vmatpush.msra.mxu0 %v417
    %1338 = vmatmul.f32.gmra.mxu0 %v1300
    %v1339 = vpop.f32.mrf.mxu0
    %v1340 = vadd.f32 0.0, %v1339
    %1341 = vdwg.mxu0
    %v1342 = vadd.f32 %v1294, %v1320
    %v1343 = vxor.u32 %v1342, 2147483648
    %v1344 = vmul.f32 %v1343, 1.442695
    %v1345 = vpow.pop %v1344
    %v1346 = vadd.f32 %v1345, 1.0
    %v1347 = vrcp.pop %v1346
    %v1348 = vmul.f32 %v1346, %v1347
    %v1349 = vsub.f32 1.0, %v1348
    %v1350 = vmul.f32 %v1347, %v1349
    %v1351 = vadd.f32 %v1347, %v1350
    %vm1352 = vweird.f32 %v1346
    %vm1353 = vweird.f32 %v1347
    %vm1354 = vmor %vm1352, %vm1353
    %v1355 = vsel %vm1354, %v1347, %v1351
    %v1356 = vand.u32 2147483647, %v1346
    %vm1357 = vcmp.eq.f32.partialorder %v1356, 8.507059e+37
    %v1358 = vand.u32 %v1346, 2147483648
    %v1359 = vor.u32 1.1754944e-38, %v1358
    %v1360 = vsel %vm1357, %v1359, %v1355
    %v1361 = vmul.f32 1.0, %v1360
    %v1362 = vadd.f32 %v1340, %v497
    %v1363 = vmul.f32 %v1361, %v1362
    %v1364 = vadd.f32 %v1295, %v1363
    %v1365 = vtanh.pop %v1364
    %v1366 = vsub.f32 1.0, %v1361
    %1368 = vrot.lane.b32.xlu0 %v1365, 64
    %v1369 = vpop.permute.xlu0 %1368
    %v1371 = vmul.f32 %v1366, %v1369
    %v1372 = vmul.f32 %v1361, %v1232
    %v1373 = vadd.f32 %v1371, %v1372
    %v1374 = vmul.f32 %v1373, %v515
    %1376 = vrot.lane.b32.xlu0 %v1374, 64
    %v1377 = vpop.permute.xlu0 %1376
    %v1379 = vsel %vm265, %v1377, 0.0
    %1380 = vadd.xlane.f32.xlu0 %v1379
    %v1381 = vpop.xlane.xlu0 %1380
    %v1382 = vadd.f32 %v1381, %v527
    %1384 = vrot.lane.b32.xlu0 %v1373, 32
    %v1385 = vpop.permute.xlu0 %1384
    %v1386 = vsel %vm265, %v1385, 0
    %1388 = vmatpush.msra.mxu0 0.0
    %1389 = vmatpush.msra.mxu0 0.0
    %1390 = vmatpush.msra.mxu0 0.0
    %1391 = vmatpush.msra.mxu0 0.0
    %1392 = vmatpush.msra.mxu0 0.0
    %1393 = vmatpush.msra.mxu0 0.0
    %1394 = vmatpush.msra.mxu0 0.0
    %1395 = vmatpush.msra.mxu0 0.0
    %1396 = vmatpush.msra.mxu0 0.0
    %1397 = vmatpush.msra.mxu0 0.0
    %1398 = vmatpush.msra.mxu0 0.0
    %1399 = vmatpush.msra.mxu0 0.0
    %1400 = vmatpush.msra.mxu0 %v533
    %1401 = vmatpush.msra.mxu0 %v532
    %1402 = vmatpush.msra.mxu0 %v531
    %1403 = vmatpush.msra.mxu0 %v530
    %1404 = vmatmul.f32.gmra.mxu0 %v1386
    %v1405 = vpop.f32.mrf.mxu0
    %v1406 = vadd.f32 %v536, %v1405
    %1407 = vdwg.mxu0
    %v1408 = vtanh.pop %v1406
    %v1409 = vmul.f32 %v1297, %v1408
    %v1410 = vmax.f32 %v1269, %v1382
    %v1411 = vsub.f32 %v1269, %v1410
    %v1412 = vmul.f32 %v1411, 1.442695
    %v1413 = vpow.pop %v1412
    %v1414 = vsub.f32 %v1382, %v1410
    %v1415 = vmul.f32 %v1414, 1.442695
    %v1416 = vpow.pop %v1415
    %v1417 = vmul.f32 %v1277, %v1413
    %v1418 = vadd.f32 %v1417, %v1416
    %1420 = vset.pattern.permute.xlu0 0
    %1421 = vperm.xlu0 %1420, %v1413
    %v1422 = vpop.permute.xlu0 %1421
    %v1424 = vmul.f32 %v1290, %v1422
    %1426 = vset.pattern.permute.xlu0 0
    %1427 = vperm.xlu0 %1426, %v1416
    %v1428 = vpop.permute.xlu0 %1427
    %v1430 = vmul.f32 %v1428, %v1409
    %v1431 = vadd.f32 %v1424, %v1430
    %s1432 = smul.u32 7, 2
    %s1433 = smul.addr %s1432, 8
    %s1434 = scalar_lea.vmem [#allocation3], %s1433
    %v1435 = vld [vmem:[%s1434] sm:$0xff]
    %v1436 = vld [vmem:[%s1434 + $0x8] sm:$0xff]
    %s1437 = scalar_lea.vmem [#allocation2], 56
    %v1438 = vld [vmem:[%s1437] sm:$0xff]
    %1439 = vrot.lane.b32.xlu0 %v1373, 64
    %v1440 = vpop.permute.xlu0 %1439
    %v1441 = vsel %vm199, %v1440, 0
    %1443 = vmatpush.msra.mxu0 0.0
    %1444 = vmatpush.msra.mxu0 0.0
    %1445 = vmatpush.msra.mxu0 0.0
    %1446 = vmatpush.msra.mxu0 0.0
    %1447 = vmatpush.msra.mxu0 0.0
    %1448 = vmatpush.msra.mxu0 0.0
    %1449 = vmatpush.msra.mxu0 0.0
    %1450 = vmatpush.msra.mxu0 0.0
    %1451 = vmatpush.msra.mxu0 %v430
    %1452 = vmatpush.msra.mxu0 %v428
    %1453 = vmatpush.msra.mxu0 %v426
    %1454 = vmatpush.msra.mxu0 %v424
    %1455 = vmatpush.msra.mxu0 %v422
    %1456 = vmatpush.msra.mxu0 %v420
    %1457 = vmatpush.msra.mxu0 %v418
    %1458 = vmatpush.msra.mxu0 %v416
    %1459 = vmatmul.f32.gmra.mxu0 %v1441
    %v1460 = vpop.f32.mrf.mxu0
    %v1461 = vadd.f32 0.0, %v1460
    %1462 = vdwg.mxu0
    %1463 = vmatpush.msra.mxu0 0.0
    %1464 = vmatpush.msra.mxu0 0.0
    %1465 = vmatpush.msra.mxu0 0.0
    %1466 = vmatpush.msra.mxu0 0.0
    %1467 = vmatpush.msra.mxu0 0.0
    %1468 = vmatpush.msra.mxu0 0.0
    %1469 = vmatpush.msra.mxu0 0.0
    %1470 = vmatpush.msra.mxu0 0.0
    %1471 = vmatpush.msra.mxu0 %v431
    %1472 = vmatpush.msra.mxu0 %v429
    %1473 = vmatpush.msra.mxu0 %v427
    %1474 = vmatpush.msra.mxu0 %v425
    %1475 = vmatpush.msra.mxu0 %v423
    %1476 = vmatpush.msra.mxu0 %v421
    %1477 = vmatpush.msra.mxu0 %v419
    %1478 = vmatpush.msra.mxu0 %v417
    %1479 = vmatmul.f32.gmra.mxu0 %v1441
    %v1480 = vpop.f32.mrf.mxu0
    %v1481 = vadd.f32 0.0, %v1480
    %1482 = vdwg.mxu0
    %v1483 = vadd.f32 %v1435, %v1461
    %v1484 = vxor.u32 %v1483, 2147483648
    %v1485 = vmul.f32 %v1484, 1.442695
    %v1486 = vpow.pop %v1485
    %v1487 = vadd.f32 %v1486, 1.0
    %v1488 = vrcp.pop %v1487
    %v1489 = vmul.f32 %v1487, %v1488
    %v1490 = vsub.f32 1.0, %v1489
    %v1491 = vmul.f32 %v1488, %v1490
    %v1492 = vadd.f32 %v1488, %v1491
    %vm1493 = vweird.f32 %v1487
    %vm1494 = vweird.f32 %v1488
    %vm1495 = vmor %vm1493, %vm1494
    %v1496 = vsel %vm1495, %v1488, %v1492
    %v1497 = vand.u32 2147483647, %v1487
    %vm1498 = vcmp.eq.f32.partialorder %v1497, 8.507059e+37
    %v1499 = vand.u32 %v1487, 2147483648
    %v1500 = vor.u32 1.1754944e-38, %v1499
    %v1501 = vsel %vm1498, %v1500, %v1496
    %v1502 = vmul.f32 1.0, %v1501
    %v1503 = vadd.f32 %v1481, %v497
    %v1504 = vmul.f32 %v1502, %v1503
    %v1505 = vadd.f32 %v1436, %v1504
    %v1506 = vtanh.pop %v1505
    %v1507 = vsub.f32 1.0, %v1502
    %1509 = vrot.lane.b32.xlu0 %v1506, 64
    %v1510 = vpop.permute.xlu0 %1509
    %v1512 = vmul.f32 %v1507, %v1510
    %v1513 = vmul.f32 %v1502, %v1373
    %v1514 = vadd.f32 %v1512, %v1513
    %v1515 = vmul.f32 %v1514, %v515
    %1517 = vrot.lane.b32.xlu0 %v1515, 64
    %v1518 = vpop.permute.xlu0 %1517
    %v1520 = vsel %vm265, %v1518, 0.0
    %1521 = vadd.xlane.f32.xlu0 %v1520
    %v1522 = vpop.xlane.xlu0 %1521
    %v1523 = vadd.f32 %v1522, %v527
    %1525 = vrot.lane.b32.xlu0 %v1514, 32
    %v1526 = vpop.permute.xlu0 %1525
    %v1527 = vsel %vm265, %v1526, 0
    %1529 = vmatpush.msra.mxu0 0.0
    %1530 = vmatpush.msra.mxu0 0.0
    %1531 = vmatpush.msra.mxu0 0.0
    %1532 = vmatpush.msra.mxu0 0.0
    %1533 = vmatpush.msra.mxu0 0.0
    %1534 = vmatpush.msra.mxu0 0.0
    %1535 = vmatpush.msra.mxu0 0.0
    %1536 = vmatpush.msra.mxu0 0.0
    %1537 = vmatpush.msra.mxu0 0.0
    %1538 = vmatpush.msra.mxu0 0.0
    %1539 = vmatpush.msra.mxu0 0.0
    %1540 = vmatpush.msra.mxu0 0.0
    %1541 = vmatpush.msra.mxu0 %v533
    %1542 = vmatpush.msra.mxu0 %v532
    %1543 = vmatpush.msra.mxu0 %v531
    %1544 = vmatpush.msra.mxu0 %v530
    %1545 = vmatmul.f32.gmra.mxu0 %v1527
    %v1546 = vpop.f32.mrf.mxu0
    %v1547 = vadd.f32 %v536, %v1546
    %1548 = vdwg.mxu0
    %v1549 = vtanh.pop %v1547
    %v1550 = vmul.f32 %v1438, %v1549
    %v1551 = vmax.f32 %v1410, %v1523
    %v1552 = vsub.f32 %v1410, %v1551
    %v1553 = vmul.f32 %v1552, 1.442695
    %v1554 = vpow.pop %v1553
    %v1555 = vsub.f32 %v1523, %v1551
    %v1556 = vmul.f32 %v1555, 1.442695
    %v1557 = vpow.pop %v1556
    %v1558 = vmul.f32 %v1418, %v1554
    %v1559 = vadd.f32 %v1558, %v1557
    %1561 = vset.pattern.permute.xlu0 0
    %1562 = vperm.xlu0 %1561, %v1554
    %v1563 = vpop.permute.xlu0 %1562
    %v1565 = vmul.f32 %v1431, %v1563
    %1567 = vset.pattern.permute.xlu0 0
    %1568 = vperm.xlu0 %1567, %v1557
    %v1569 = vpop.permute.xlu0 %1568
    %v1571 = vmul.f32 %v1569, %v1550
    %v1572 = vadd.f32 %v1565, %v1571
    %1574 = vset.pattern.permute.xlu0 0
    %1575 = vperm.xlu0 %1574, %v1559
    %v1576 = vpop.permute.xlu0 %1575
    %v1578 = vrcp.pop %v1576
    %v1579 = vmul.f32 %v1576, %v1578
    %v1580 = vsub.f32 1.0, %v1579
    %v1581 = vmul.f32 %v1578, %v1580
    %v1582 = vadd.f32 %v1578, %v1581
    %vm1583 = vweird.f32 %v1576
    %vm1584 = vweird.f32 %v1578
    %vm1585 = vmor %vm1583, %vm1584
    %v1586 = vsel %vm1585, %v1578, %v1582
    %v1587 = vand.u32 2147483647, %v1576
    %vm1588 = vcmp.eq.f32.partialorder %v1587, 8.507059e+37
    %v1589 = vand.u32 %v1576, 2147483648
    %v1590 = vor.u32 1.1754944e-38, %v1589
    %v1591 = vsel %vm1588, %v1590, %v1586
    %v1592 = vmul.f32 %v1572, %v1591
    %v1593 = vld [vmem:[#allocation5] sm:$0xff]
    %v1594 = vld [vmem:[#allocation16] sm:$0xff]
    %v1595 = vld [vmem:[#allocation16 + $0x8] sm:$0xff]
    %v1596 = vld [vmem:[#allocation16 + $0x10] sm:$0xff]
    %v1597 = vld [vmem:[#allocation16 + $0x18] sm:$0xff]
    %v1598 = vld [vmem:[%s13] sm:$0xff]
    %vm1599 = vcmask 64512
    %v1601 = vsel %vm1599, %v1593, 0
    %1603 = vmatpush.msra.mxu0 0.0
    %1604 = vmatpush.msra.mxu0 0.0
    %1605 = vmatpush.msra.mxu0 0.0
    %1606 = vmatpush.msra.mxu0 0.0
    %1607 = vmatpush.msra.mxu0 0.0
    %1608 = vmatpush.msra.mxu0 0.0
    %1609 = vmatpush.msra.mxu0 0.0
    %1610 = vmatpush.msra.mxu0 0.0
    %1611 = vmatpush.msra.mxu0 0.0
    %1612 = vmatpush.msra.mxu0 0.0
    %1613 = vmatpush.msra.mxu0 0.0
    %1614 = vmatpush.msra.mxu0 0.0
    %1615 = vmatpush.msra.mxu0 0.0
    %1616 = vmatpush.msra.mxu0 0.0
    %1617 = vmatpush.msra.mxu0 0.0
    %1618 = vmatpush.msra.mxu0 %v1598
    %1619 = vmatmul.f32.gmra.mxu0 %v1601
    %v1620 = vpop.f32.mrf.mxu0
    %v1621 = vadd.f32 0.0, %v1620
    %1622 = vdwg.mxu0
    %v1624 = vsel %vm265, %v1592, 0
    %1626 = vmatpush.msra.mxu0 0.0
    %1627 = vmatpush.msra.mxu0 0.0
    %1628 = vmatpush.msra.mxu0 0.0
    %1629 = vmatpush.msra.mxu0 0.0
    %1630 = vmatpush.msra.mxu0 0.0
    %1631 = vmatpush.msra.mxu0 0.0
    %1632 = vmatpush.msra.mxu0 0.0
    %1633 = vmatpush.msra.mxu0 0.0
    %1634 = vmatpush.msra.mxu0 0.0
    %1635 = vmatpush.msra.mxu0 0.0
    %1636 = vmatpush.msra.mxu0 0.0
    %1637 = vmatpush.msra.mxu0 0.0
    %1638 = vmatpush.msra.mxu0 %v1597
    %1639 = vmatpush.msra.mxu0 %v1596
    %1640 = vmatpush.msra.mxu0 %v1595
    %1641 = vmatpush.msra.mxu0 %v1594
    %1642 = vmatmul.f32.gmra.mxu0 %v1624
    %v1643 = vpop.f32.mrf.mxu0
    %v1644 = vadd.f32 %v1621, %v1643
    %1645 = vdwg.mxu0
    %v1646 = vld [vmem:[%s14] sm:$0x1]
    %v1648 = vperm.slane %v1646, 0
    %v1650 = vadd.f32 %v1644, %v1648
    %v1651 = vmax.f32 %v1650, 0.0
    %v1652 = vld [vmem:[#allocation17] sm:$0xff]
    %v1653 = vld [vmem:[#allocation17 + $0x8] sm:$0xff]
    %v1654 = vld [vmem:[#allocation17 + $0x10] sm:$0xff]
    %v1655 = vld [vmem:[#allocation17 + $0x18] sm:$0xff]
    %v1656 = vld [vmem:[#allocation17 + $0x20] sm:$0xff]
    %v1657 = vld [vmem:[#allocation17 + $0x28] sm:$0xff]
    %v1658 = vld [vmem:[#allocation17 + $0x30] sm:$0xff]
    %v1659 = vld [vmem:[#allocation17 + $0x38] sm:$0xff]
    %v1660 = vld [vmem:[%s16] sm:$0x1]
    %v1662 = vperm.slane %v1660, 0
    %v1665 = vsel %vm199, %v1651, 0
    %1667 = vmatpush.msra.mxu0 0.0
    %1668 = vmatpush.msra.mxu0 0.0
    %1669 = vmatpush.msra.mxu0 0.0
    %1670 = vmatpush.msra.mxu0 0.0
    %1671 = vmatpush.msra.mxu0 0.0
    %1672 = vmatpush.msra.mxu0 0.0
    %1673 = vmatpush.msra.mxu0 0.0
    %1674 = vmatpush.msra.mxu0 0.0
    %1675 = vmatpush.msra.mxu0 %v1659
    %1676 = vmatpush.msra.mxu0 %v1658
    %1677 = vmatpush.msra.mxu0 %v1657
    %1678 = vmatpush.msra.mxu0 %v1656
    %1679 = vmatpush.msra.mxu0 %v1655
    %1680 = vmatpush.msra.mxu0 %v1654
    %1681 = vmatpush.msra.mxu0 %v1653
    %1682 = vmatpush.msra.mxu0 %v1652
    %1683 = vmatmul.f32.gmra.mxu0 %v1665
    %v1684 = vpop.f32.mrf.mxu0
    %v1685 = vadd.f32 %v1662, %v1684
    %1686 = vdwg.mxu0
    %1687 = vst [vmem:[#allocation19] sm:$0xff] %v1685
    %v1688 = vsel %vm265, %v1592, 0.0
    %1689 = vst [vmem:[#allocation20] sm:$0xff] %v1688
    // Predicated region
    $region102: #{tpu_custom_call.1} parent=1 // pred_check
      _
    $region103: #{tpu_custom_call.1} parent=1 // pred_check_branch
      %1691 = sbr.rel (0) target = $region105
    $region104: #{tpu_custom_call.1} parent=1 // pred_region
      %1693 = vsyncadd [#allocation7], 0
      %s1695 = sshll.u32 [#allocation19], 4
      %s1696 = int_to_ptr.vmem [resolvable:$true] %s1695
      %s1697 = sshll.u32 %s17, 4
      %s1698 = int_to_ptr.hbm [resolvable:$true] %s1697
      %1700 = dma.vmem_to_hbm [thread:$0]  %s1696, 128, %s1698, [#allocation7]
    $region105: #{tpu_custom_call.1} parent=1 // pred_fallthru
      _
    // Predicated region
    $region106: #{tpu_custom_call.1} parent=1 // pred_check
      _
    $region107: #{tpu_custom_call.1} parent=1 // pred_check_branch
      %1702 = sbr.rel (0) target = $region109
    $region108: #{tpu_custom_call.1} parent=1 // pred_region
      %1704 = vsyncadd [#allocation21], 0
      %s1706 = sshll.u32 [#allocation20], 4
      %s1707 = int_to_ptr.vmem [resolvable:$true] %s1706
      %s1708 = sshll.u32 %s18, 4
      %s1709 = int_to_ptr.hbm [resolvable:$true] %s1708
      %1711 = dma.vmem_to_hbm [thread:$0]  %s1707, 128, %s1709, [#allocation21]
    $region109: #{tpu_custom_call.1} parent=1 // pred_fallthru
      _
    // Predicated region
    $region110: #{tpu_custom_call.1} parent=1 // pred_check
      _
    $region111: #{tpu_custom_call.1} parent=1 // pred_check_branch
      %1713 = sbr.rel (0) target = $region113
    $region112: #{tpu_custom_call.1} parent=1 // pred_region
      %1715 = dma.done [#allocation7], 128
    $region113: #{tpu_custom_call.1} parent=1 // pred_fallthru
      _
    // Predicated region
    $region114: #{tpu_custom_call.1} parent=1 // pred_check
      _
    $region115: #{tpu_custom_call.1} parent=1 // pred_check_branch
      %1717 = sbr.rel (0) target = $region117
    $region116: #{tpu_custom_call.1} parent=1 // pred_region
      %1719 = dma.done [#allocation21], 128
    $region117: #{tpu_custom_call.1} parent=1 // pred_fallthru
      _
    %1720 = vsyncpa [#allocation6], 1
    %1721 = vsyncpa [#allocation9], 1
    %1722 = vsyncpa [#allocation12], 1
    %1723 = vsyncpa [#allocation15], 1
    %1724 = vsyncpa [#allocation18], 1
    %1725 = vsyncpa [#allocation7], 1
    %1726 = vsyncpa [#allocation21], 1

// kernel: tpu_custom_call.1
$region0: #{tpu_custom_call.1}
  #allocation0 [shape = 'u32[]', space=smem, size = 0x4, offset = 0x4, fixed_abs, tag = 'smem constant byte address 0x4 - core index']
  #allocation1 [shape = 'u32[72,128]{1,0:T(1,128)}', space=vmem, size = 0x9000, scoped, tag = 'internal scratch']
  #allocation2 [shape = 'f32[64,32]{1,0:T(8,128)}', space=vmem, size = 0x8000, scoped, tag = 'scratch operand']
  #allocation3 [shape = 'f32[64,192]{1,0:T(8,128)}', space=vmem, size = 0x10000, scoped, tag = 'scratch operand']
  #allocation4 [shape = 'f32[1,1]{1,0:T(1,128)S(1)}', space=vmem, size = 0x200, scoped, tag = 'scoped memory for tpu_custom_call.1']
  %s0 = inlined_call_operand.vmem [shape: f32[8,8,64], index: 0, kind: input, shape index: {}]
  %s1 = inlined_call_operand.hbm [shape: f32[8,8], index: 1, kind: input, shape index: {}]
  %s2 = inlined_call_operand.vmem [shape: f32[64,32], index: 2, kind: input, shape index: {}]
  %s3 = inlined_call_operand.vmem [shape: f32[1,32], index: 3, kind: input, shape index: {}]
  %s4 = inlined_call_operand.hbm [shape: f32[32,192], index: 4, kind: input, shape index: {}]
  %s5 = inlined_call_operand.hbm [shape: f32[1,192], index: 5, kind: input, shape index: {}]
  %s6 = inlined_call_operand.hbm [shape: f32[64,192], index: 6, kind: input, shape index: {}]
  %s7 = inlined_call_operand.hbm [shape: f32[1,64], index: 7, kind: input, shape index: {}]
  %s8 = inlined_call_operand.hbm [shape: f32[1,32], index: 8, kind: input, shape index: {}]
  %s9 = inlined_call_operand.<no memory space> [shape: f32[1,1], index: 9, kind: input, shape index: {}]
  %s10 = inlined_call_operand.vmem [shape: f32[32,32], index: 10, kind: input, shape index: {}]
  %s11 = inlined_call_operand.vmem [shape: f32[1,32], index: 11, kind: input, shape index: {}]
  %s12 = inlined_call_operand.hbm [shape: f32[32,64], index: 12, kind: input, shape index: {}]
  %s13 = inlined_call_operand.vmem [shape: f32[8,64], index: 13, kind: input, shape index: {}]
  %s14 = inlined_call_operand.vmem [shape: f32[1,64], index: 14, kind: input, shape index: {}]
  %s15 = inlined_call_operand.hbm [shape: f32[64,128], index: 15, kind: input, shape index: {}]
  %s16 = inlined_call_operand.vmem [shape: f32[1,128], index: 16, kind: input, shape index: {}]
  %s17 = inlined_call_operand.hbm [shape: f32[8,128], index: 17, kind: output, shape index: {0}]
  %s18 = inlined_call_operand.hbm [shape: f32[8,128], index: 18, kind: output, shape index: {1}]
  %19 = xla_tuple %s17, %s18
  %s20 = sld [smem:[#allocation0]]
  $region118: #{tpu_custom_call.1} parent=0
    _
  %s22 = ssub.s32 1, %s20
  %s23 = scalar_select 0, %s22, %s20
  %v24 = vstv %s9
  %25 = vst [vmem:[#allocation4] sm:$0x1] %v24
  $region1: #{tpu_custom_call.1} parent=0
    #allocation5 [shape = 'u8[4096]{0}', space=vmem, size = 0x1000, scoped, tag = 'input window, operand 1, single buffered']
    #allocation6 [shape = 's32[1]{0}', space=sflag, size = 0x4, scoped, tag = 'scoped memory for tpu_custom_call.1']
    #allocation7 [shape = 's32[1]{0}', space=sflag, size = 0x4, scoped, tag = 'scoped memory for tpu_custom_call.1']
    #allocation8 [shape = 'u8[32768]{0}', space=vmem, size = 0x8000, scoped, tag = 'input window, operand 4, single buffered']
    #allocation9 [shape = 's32[1]{0}', space=sflag, size = 0x4, scoped, tag = 'scoped memory for tpu_custom_call.1']
    #allocation10 [shape = 'u8[1024]{0}', space=vmem, size = 0x400, scoped, tag = 'input window, operand 5, single buffered']
    #allocation11 [shape = 'u8[65536]{0}', space=vmem, size = 0x10000, scoped, tag = 'input window, operand 6, single buffered']
    #allocation12 [shape = 's32[1]{0}', space=sflag, size = 0x4, scoped, tag = 'scoped memory for tpu_custom_call.1']
    #allocation13 [shape = 'u8[512]{0}', space=vmem, size = 0x400, scoped, tag = 'input window, operand 7, single buffered']
    #allocation14 [shape = 'u8[512]{0}', space=vmem, size = 0x400, scoped, tag = 'input window, operand 8, single buffered']
    #allocation15 [shape = 's32[1]{0}', space=sflag, size = 0x4, scoped, tag = 'scoped memory for tpu_custom_call.1']
    #allocation16 [shape = 'u8[16384]{0}', space=vmem, size = 0x4000, scoped, tag = 'input window, operand 12, single buffered']
    #allocation17 [shape = 'u8[32768]{0}', space=vmem, size = 0x8000, scoped, tag = 'input window, operand 15, single buffered']
    #allocation18 [shape = 's32[1]{0}', space=sflag, size = 0x4, scoped, tag = 'scoped memory for tpu_custom_call.1']
    #allocation19 [shape = 'u8[4096]{0}', space=vmem, size = 0x1000, scoped, tag = 'output window, operand 0, single buffered']
    #allocation20 [shape = 'u8[4096]{0}', space=vmem, size = 0x1000, scoped, tag = 'output window, operand 1, single buffered']
    #allocation21 [shape = 's32[1]{0}', space=sflag, size = 0x4, scoped, tag = 'scoped memory for tpu_custom_call.1']
    %26 = vsyncpa [#allocation6], 0
    %27 = vsyncpa [#allocation9], 0
    %28 = vsyncpa [#allocation12], 0
    %29 = vsyncpa [#allocation15], 0
    %30 = vsyncpa [#allocation18], 0
    %31 = vsyncpa [#allocation7], 0
    %32 = vsyncpa [#allocation21], 0
    // Predicated region
    $region2: #{tpu_custom_call.1} parent=1 // pred_check
      _
    $region3: #{tpu_custom_call.1} parent=1 // pred_check_branch
      %34 = sbr.rel (0) target = $region5
    $region4: #{tpu_custom_call.1} parent=1 // pred_region
      _
    $region5: #{tpu_custom_call.1} parent=1 // pred_fallthru
      _
    // Predicated region
    $region6: #{tpu_custom_call.1} parent=1 // pred_check
      _
    $region7: #{tpu_custom_call.1} parent=1 // pred_check_branch
      %36 = sbr.rel (0) target = $region9
    $region8: #{tpu_custom_call.1} parent=1 // pred_region
      %38 = vsyncadd [#allocation6], 0
      %s40 = sshll.u32 %s1, 4
      %s41 = int_to_ptr.hbm [resolvable:$true] %s40
      %s42 = sshll.u32 [#allocation5], 4
      %s43 = int_to_ptr.vmem [resolvable:$true] %s42
      %45 = dma.hbm_to_vmem [thread:$0]  %s41, 128, %s43, [#allocation6]
    $region9: #{tpu_custom_call.1} parent=1 // pred_fallthru
      _
    // Predicated region
    $region10: #{tpu_custom_call.1} parent=1 // pred_check
      _
    $region11: #{tpu_custom_call.1} parent=1 // pred_check_branch
      %47 = sbr.rel (0) target = $region13
    $region12: #{tpu_custom_call.1} parent=1 // pred_region
      _
    $region13: #{tpu_custom_call.1} parent=1 // pred_fallthru
      _
    // Predicated region
    $region14: #{tpu_custom_call.1} parent=1 // pred_check
      _
    $region15: #{tpu_custom_call.1} parent=1 // pred_check_branch
      %49 = sbr.rel (0) target = $region17
    $region16: #{tpu_custom_call.1} parent=1 // pred_region
      _
    $region17: #{tpu_custom_call.1} parent=1 // pred_fallthru
      _
    // Predicated region
    $region18: #{tpu_custom_call.1} parent=1 // pred_check
      _
    $region19: #{tpu_custom_call.1} parent=1 // pred_check_branch
      %51 = sbr.rel (0) target = $region21
    $region20: #{tpu_custom_call.1} parent=1 // pred_region
      %53 = vsyncadd [#allocation9], 0
      %s54 = sshll.u32 %s4, 4
      %s55 = int_to_ptr.hbm [resolvable:$true] %s54
      %s56 = sshll.u32 [#allocation8], 4
      %s57 = int_to_ptr.vmem [resolvable:$true] %s56
      %62 = dma.hbm_to_vmem [thread:$0]  %s55, 1024, %s57, [#allocation9], 256, 256, 16
    $region21: #{tpu_custom_call.1} parent=1 // pred_fallthru
      _
    // Predicated region
    $region22: #{tpu_custom_call.1} parent=1 // pred_check
      _
    $region23: #{tpu_custom_call.1} parent=1 // pred_check_branch
      %64 = sbr.rel (0) target = $region25
    $region24: #{tpu_custom_call.1} parent=1 // pred_region
      %66 = vsyncadd [#allocation9], 0
      %s68 = sshll.u32 %s5, 4
      %s69 = int_to_ptr.hbm [resolvable:$true] %s68
      %s70 = sshll.u32 [#allocation10], 4
      %s71 = int_to_ptr.vmem [resolvable:$true] %s70
      %73 = dma.hbm_to_vmem [thread:$0]  %s69, 32, %s71, [#allocation9]
    $region25: #{tpu_custom_call.1} parent=1 // pred_fallthru
      _
    // Predicated region
    $region26: #{tpu_custom_call.1} parent=1 // pred_check
      _
    $region27: #{tpu_custom_call.1} parent=1 // pred_check_branch
      %75 = sbr.rel (0) target = $region29
    $region28: #{tpu_custom_call.1} parent=1 // pred_region
      %77 = vsyncadd [#allocation12], 0
      %s78 = sshll.u32 %s6, 4
      %s79 = int_to_ptr.hbm [resolvable:$true] %s78
      %s80 = sshll.u32 [#allocation11], 4
      %s81 = int_to_ptr.vmem [resolvable:$true] %s80
      %86 = dma.hbm_to_vmem [thread:$0]  %s79, 2048, %s81, [#allocation12], 256, 256, 16
    $region29: #{tpu_custom_call.1} parent=1 // pred_fallthru
      _
    // Predicated region
    $region30: #{tpu_custom_call.1} parent=1 // pred_check
      _
    $region31: #{tpu_custom_call.1} parent=1 // pred_check_branch
      %88 = sbr.rel (0) target = $region33
    $region32: #{tpu_custom_call.1} parent=1 // pred_region
      %90 = vsyncadd [#allocation12], 0
      %s92 = sshll.u32 %s7, 4
      %s93 = int_to_ptr.hbm [resolvable:$true] %s92
      %s94 = sshll.u32 [#allocation13], 4
      %s95 = int_to_ptr.vmem [resolvable:$true] %s94
      %97 = dma.hbm_to_vmem [thread:$0]  %s93, 16, %s95, [#allocation12]
    $region33: #{tpu_custom_call.1} parent=1 // pred_fallthru
      _
    // Predicated region
    $region34: #{tpu_custom_call.1} parent=1 // pred_check
      _
    $region35: #{tpu_custom_call.1} parent=1 // pred_check_branch
      %99 = sbr.rel (0) target = $region37
    $region36: #{tpu_custom_call.1} parent=1 // pred_region
      %101 = vsyncadd [#allocation15], 0
      %s103 = sshll.u32 %s8, 4
      %s104 = int_to_ptr.hbm [resolvable:$true] %s103
      %s105 = sshll.u32 [#allocation14], 4
      %s106 = int_to_ptr.vmem [resolvable:$true] %s105
      %108 = dma.hbm_to_vmem [thread:$0]  %s104, 16, %s106, [#allocation15]
    $region37: #{tpu_custom_call.1} parent=1 // pred_fallthru
      _
    // Predicated region
    $region38: #{tpu_custom_call.1} parent=1 // pred_check
      _
    $region39: #{tpu_custom_call.1} parent=1 // pred_check_branch
      %110 = sbr.rel (0) target = $region41
    $region40: #{tpu_custom_call.1} parent=1 // pred_region
      _
    $region41: #{tpu_custom_call.1} parent=1 // pred_fallthru
      _
    // Predicated region
    $region42: #{tpu_custom_call.1} parent=1 // pred_check
      _
    $region43: #{tpu_custom_call.1} parent=1 // pred_check_branch
      %112 = sbr.rel (0) target = $region45
    $region44: #{tpu_custom_call.1} parent=1 // pred_region
      _
    $region45: #{tpu_custom_call.1} parent=1 // pred_fallthru
      _
    // Predicated region
    $region46: #{tpu_custom_call.1} parent=1 // pred_check
      _
    $region47: #{tpu_custom_call.1} parent=1 // pred_check_branch
      %114 = sbr.rel (0) target = $region49
    $region48: #{tpu_custom_call.1} parent=1 // pred_region
      _
    $region49: #{tpu_custom_call.1} parent=1 // pred_fallthru
      _
    // Predicated region
    $region50: #{tpu_custom_call.1} parent=1 // pred_check
      _
    $region51: #{tpu_custom_call.1} parent=1 // pred_check_branch
      %116 = sbr.rel (0) target = $region53
    $region52: #{tpu_custom_call.1} parent=1 // pred_region
      %118 = vsyncadd [#allocation15], 0
      %s119 = sshll.u32 %s12, 4
      %s120 = int_to_ptr.hbm [resolvable:$true] %s119
      %s121 = sshll.u32 [#allocation16], 4
      %s122 = int_to_ptr.vmem [resolvable:$true] %s121
      %127 = dma.hbm_to_vmem [thread:$0]  %s120, 512, %s122, [#allocation15], 128, 128, 8
    $region53: #{tpu_custom_call.1} parent=1 // pred_fallthru
      _
    // Predicated region
    $region54: #{tpu_custom_call.1} parent=1 // pred_check
      _
    $region55: #{tpu_custom_call.1} parent=1 // pred_check_branch
      %129 = sbr.rel (0) target = $region57
    $region56: #{tpu_custom_call.1} parent=1 // pred_region
      _
    $region57: #{tpu_custom_call.1} parent=1 // pred_fallthru
      _
    // Predicated region
    $region58: #{tpu_custom_call.1} parent=1 // pred_check
      _
    $region59: #{tpu_custom_call.1} parent=1 // pred_check_branch
      %131 = sbr.rel (0) target = $region61
    $region60: #{tpu_custom_call.1} parent=1 // pred_region
      _
    $region61: #{tpu_custom_call.1} parent=1 // pred_fallthru
      _
    // Predicated region
    $region62: #{tpu_custom_call.1} parent=1 // pred_check
      _
    $region63: #{tpu_custom_call.1} parent=1 // pred_check_branch
      %133 = sbr.rel (0) target = $region65
    $region64: #{tpu_custom_call.1} parent=1 // pred_region
      %135 = vsyncadd [#allocation18], 0
      %s136 = sshll.u32 %s15, 4
      %s137 = int_to_ptr.hbm [resolvable:$true] %s136
      %s138 = sshll.u32 [#allocation17], 4
      %s139 = int_to_ptr.vmem [resolvable:$true] %s138
      %144 = dma.hbm_to_vmem [thread:$0]  %s137, 1024, %s139, [#allocation18], 128, 128, 8
    $region65: #{tpu_custom_call.1} parent=1 // pred_fallthru
      _
    // Predicated region
    $region66: #{tpu_custom_call.1} parent=1 // pred_check
      _
    $region67: #{tpu_custom_call.1} parent=1 // pred_check_branch
      %146 = sbr.rel (0) target = $region69
    $region68: #{tpu_custom_call.1} parent=1 // pred_region
      _
    $region69: #{tpu_custom_call.1} parent=1 // pred_fallthru
      _
    // Predicated region
    $region70: #{tpu_custom_call.1} parent=1 // pred_check
      _
    $region71: #{tpu_custom_call.1} parent=1 // pred_check_branch
      %148 = sbr.rel (0) target = $region73
    $region72: #{tpu_custom_call.1} parent=1 // pred_region
      %150 = dma.done [#allocation6], 128
    $region73: #{tpu_custom_call.1} parent=1 // pred_fallthru
      _
    // Predicated region
    $region74: #{tpu_custom_call.1} parent=1 // pred_check
      _
    $region75: #{tpu_custom_call.1} parent=1 // pred_check_branch
      %152 = sbr.rel (0) target = $region77
    $region76: #{tpu_custom_call.1} parent=1 // pred_region
      %154 = dma.done [#allocation9], 1024
    $region77: #{tpu_custom_call.1} parent=1 // pred_fallthru
      _
    // Predicated region
    $region78: #{tpu_custom_call.1} parent=1 // pred_check
      _
    $region79: #{tpu_custom_call.1} parent=1 // pred_check_branch
      %156 = sbr.rel (0) target = $region81
    $region80: #{tpu_custom_call.1} parent=1 // pred_region
      %158 = dma.done [#allocation9], 32
    $region81: #{tpu_custom_call.1} parent=1 // pred_fallthru
      _
    // Predicated region
    $region82: #{tpu_custom_call.1} parent=1 // pred_check
      _
    $region83: #{tpu_custom_call.1} parent=1 // pred_check_branch
      %160 = sbr.rel (0) target = $region85
    $region84: #{tpu_custom_call.1} parent=1 // pred_region
      %162 = dma.done [#allocation12], 2048
    $region85: #{tpu_custom_call.1} parent=1 // pred_fallthru
      _
    // Predicated region
    $region86: #{tpu_custom_call.1} parent=1 // pred_check
      _
    $region87: #{tpu_custom_call.1} parent=1 // pred_check_branch
      %164 = sbr.rel (0) target = $region89
    $region88: #{tpu_custom_call.1} parent=1 // pred_region
      %166 = dma.done [#allocation12], 16
    $region89: #{tpu_custom_call.1} parent=1 // pred_fallthru
      _
    // Predicated region
    $region90: #{tpu_custom_call.1} parent=1 // pred_check
      _
    $region91: #{tpu_custom_call.1} parent=1 // pred_check_branch
      %168 = sbr.rel (0) target = $region93
    $region92: #{tpu_custom_call.1} parent=1 // pred_region
      %170 = dma.done [#allocation15], 16
    $region93: #{tpu_custom_call.1} parent=1 // pred_fallthru
      _
    // Predicated region
    $region94: #{tpu_custom_call.1} parent=1 // pred_check
      _
    $region95: #{tpu_custom_call.1} parent=1 // pred_check_branch
      %172 = sbr.rel (0) target = $region97
    $region96: #{tpu_custom_call.1} parent=1 // pred_region
      %174 = dma.done [#allocation15], 512
    $region97: #{tpu_custom_call.1} parent=1 // pred_fallthru
      _
    // Predicated region
    $region98: #{tpu_custom_call.1} parent=1 // pred_check
      _
    $region99: #{tpu_custom_call.1} parent=1 // pred_check_branch
      %176 = sbr.rel (0) target = $region101
    $region100: #{tpu_custom_call.1} parent=1 // pred_region
      %178 = dma.done [#allocation18], 1024
    $region101: #{tpu_custom_call.1} parent=1 // pred_fallthru
      _
    %v179 = vld [vmem:[%s0] sm:$0xff]
    %v180 = vld [vmem:[%s0 + $0x8] sm:$0xff]
    %v181 = vld [vmem:[%s0 + $0x10] sm:$0xff]
    %v182 = vld [vmem:[%s0 + $0x18] sm:$0xff]
    %v183 = vld [vmem:[%s0 + $0x20] sm:$0xff]
    %v184 = vld [vmem:[%s0 + $0x28] sm:$0xff]
    %v185 = vld [vmem:[%s0 + $0x30] sm:$0xff]
    %v186 = vld [vmem:[%s0 + $0x38] sm:$0xff]
    %v187 = vld [vmem:[%s2] sm:$0xff]
    %v188 = vld [vmem:[%s2 + $0x8] sm:$0xff]
    %v189 = vld [vmem:[%s2 + $0x10] sm:$0xff]
    %v190 = vld [vmem:[%s2 + $0x18] sm:$0xff]
    %v191 = vld [vmem:[%s2 + $0x20] sm:$0xff]
    %v192 = vld [vmem:[%s2 + $0x28] sm:$0xff]
    %v193 = vld [vmem:[%s2 + $0x30] sm:$0xff]
    %v194 = vld [vmem:[%s2 + $0x38] sm:$0xff]
    %v195 = vld [vmem:[%s3] sm:$0x1]
    %v197 = vperm.slane %v195, 0
    %vm199 = vcmask 523264
    %v201 = vsel %vm199, %v179, 0
    %v204 = vsel %vm199, %v180, 0
    %v207 = vsel %vm199, %v181, 0
    %v210 = vsel %vm199, %v182, 0
    %v213 = vsel %vm199, %v183, 0
    %v216 = vsel %vm199, %v184, 0
    %v219 = vsel %vm199, %v185, 0
    %v222 = vsel %vm199, %v186, 0
    %224 = vmatpush.msra.mxu0 0.0
    %225 = vmatpush.msra.mxu0 0.0
    %226 = vmatpush.msra.mxu0 0.0
    %227 = vmatpush.msra.mxu0 0.0
    %228 = vmatpush.msra.mxu0 0.0
    %229 = vmatpush.msra.mxu0 0.0
    %230 = vmatpush.msra.mxu0 0.0
    %231 = vmatpush.msra.mxu0 0.0
    %232 = vmatpush.msra.mxu0 %v194
    %233 = vmatpush.msra.mxu0 %v193
    %234 = vmatpush.msra.mxu0 %v192
    %235 = vmatpush.msra.mxu0 %v191
    %236 = vmatpush.msra.mxu0 %v190
    %237 = vmatpush.msra.mxu0 %v189
    %238 = vmatpush.msra.mxu0 %v188
    %239 = vmatpush.msra.mxu0 %v187
    %240 = vmatmul.f32.gmra.mxu0 %v201
    %v241 = vpop.f32.mrf.mxu0
    %v242 = vadd.f32 %v197, %v241
    %243 = vmatmul.f32.gmra.mxu0 %v204
    %v244 = vpop.f32.mrf.mxu0
    %v245 = vadd.f32 %v197, %v244
    %246 = vmatmul.f32.gmra.mxu0 %v207
    %v247 = vpop.f32.mrf.mxu0
    %v248 = vadd.f32 %v197, %v247
    %249 = vmatmul.f32.gmra.mxu0 %v210
    %v250 = vpop.f32.mrf.mxu0
    %v251 = vadd.f32 %v197, %v250
    %252 = vmatmul.f32.gmra.mxu0 %v213
    %v253 = vpop.f32.mrf.mxu0
    %v254 = vadd.f32 %v197, %v253
    %255 = vmatmul.f32.gmra.mxu0 %v216
    %v256 = vpop.f32.mrf.mxu0
    %v257 = vadd.f32 %v197, %v256
    %258 = vmatmul.f32.gmra.mxu0 %v219
    %v259 = vpop.f32.mrf.mxu0
    %v260 = vadd.f32 %v197, %v259
    %261 = vmatmul.f32.gmra.mxu0 %v222
    %v262 = vpop.f32.mrf.mxu0
    %v263 = vadd.f32 %v197, %v262
    %264 = vdwg.mxu0
    %vm265 = vcmask 261120
    %266 = vst.msk [vmem:[#allocation2] sm:$0xff] %vm265, %v242
    %267 = vst.msk [vmem:[#allocation2 + $0x8] sm:$0xff] %vm265, %v245
    %268 = vst.msk [vmem:[#allocation2 + $0x10] sm:$0xff] %vm265, %v248
    %269 = vst.msk [vmem:[#allocation2 + $0x18] sm:$0xff] %vm265, %v251
    %270 = vst.msk [vmem:[#allocation2 + $0x20] sm:$0xff] %vm265, %v254
    %271 = vst.msk [vmem:[#allocation2 + $0x28] sm:$0xff] %vm265, %v257
    %272 = vst.msk [vmem:[#allocation2 + $0x30] sm:$0xff] %vm265, %v260
    %273 = vst.msk [vmem:[#allocation2 + $0x38] sm:$0xff] %vm265, %v263
    %v274 = vld [vmem:[#allocation8] sm:$0xff]
    %v275 = vld [vmem:[#allocation8 + $0x8] sm:$0xff]
    %v276 = vld [vmem:[#allocation8 + $0x10] sm:$0xff]
    %v277 = vld [vmem:[#allocation8 + $0x18] sm:$0xff]
    %v278 = vld [vmem:[#allocation8 + $0x20] sm:$0xff]
    %v279 = vld [vmem:[#allocation8 + $0x28] sm:$0xff]
    %v280 = vld [vmem:[#allocation8 + $0x30] sm:$0xff]
    %v281 = vld [vmem:[#allocation8 + $0x38] sm:$0xff]
    %v282 = vld [vmem:[#allocation10] sm:$0x3]
    %v284 = vperm.slane %v282, 0
    %v285 = vperm.slane %v282, 1
    %v289 = vsel %vm265, %v242, 0
    %v292 = vsel %vm265, %v245, 0
    %v295 = vsel %vm265, %v248, 0
    %v298 = vsel %vm265, %v251, 0
    %v301 = vsel %vm265, %v254, 0
    %v304 = vsel %vm265, %v257, 0
    %v307 = vsel %vm265, %v260, 0
    %v310 = vsel %vm265, %v263, 0
    %312 = vmatpush.msra.mxu0 0.0
    %313 = vmatpush.msra.mxu0 0.0
    %314 = vmatpush.msra.mxu0 0.0
    %315 = vmatpush.msra.mxu0 0.0
    %316 = vmatpush.msra.mxu0 0.0
    %317 = vmatpush.msra.mxu0 0.0
    %318 = vmatpush.msra.mxu0 0.0
    %319 = vmatpush.msra.mxu0 0.0
    %320 = vmatpush.msra.mxu0 0.0
    %321 = vmatpush.msra.mxu0 0.0
    %322 = vmatpush.msra.mxu0 0.0
    %323 = vmatpush.msra.mxu0 0.0
    %324 = vmatpush.msra.mxu0 %v280
    %325 = vmatpush.msra.mxu0 %v278
    %326 = vmatpush.msra.mxu0 %v276
    %327 = vmatpush.msra.mxu0 %v274
    %328 = vmatmul.f32.gmra.mxu0 %v289
    %v329 = vpop.f32.mrf.mxu0
    %v330 = vadd.f32 %v284, %v329
    %331 = vmatmul.f32.gmra.mxu0 %v292
    %v332 = vpop.f32.mrf.mxu0
    %v333 = vadd.f32 %v284, %v332
    %334 = vmatmul.f32.gmra.mxu0 %v295
    %v335 = vpop.f32.mrf.mxu0
    %v336 = vadd.f32 %v284, %v335
    %337 = vmatmul.f32.gmra.mxu0 %v298
    %v338 = vpop.f32.mrf.mxu0
    %v339 = vadd.f32 %v284, %v338
    %340 = vmatmul.f32.gmra.mxu0 %v301
    %v341 = vpop.f32.mrf.mxu0
    %v342 = vadd.f32 %v284, %v341
    %343 = vmatmul.f32.gmra.mxu0 %v304
    %v344 = vpop.f32.mrf.mxu0
    %v345 = vadd.f32 %v284, %v344
    %346 = vmatmul.f32.gmra.mxu0 %v307
    %v347 = vpop.f32.mrf.mxu0
    %v348 = vadd.f32 %v284, %v347
    %349 = vmatmul.f32.gmra.mxu0 %v310
    %v350 = vpop.f32.mrf.mxu0
    %v351 = vadd.f32 %v284, %v350
    %352 = vdwg.mxu0
    %353 = vmatpush.msra.mxu0 0.0
    %354 = vmatpush.msra.mxu0 0.0
    %355 = vmatpush.msra.mxu0 0.0
    %356 = vmatpush.msra.mxu0 0.0
    %357 = vmatpush.msra.mxu0 0.0
    %358 = vmatpush.msra.mxu0 0.0
    %359 = vmatpush.msra.mxu0 0.0
    %360 = vmatpush.msra.mxu0 0.0
    %361 = vmatpush.msra.mxu0 0.0
    %362 = vmatpush.msra.mxu0 0.0
    %363 = vmatpush.msra.mxu0 0.0
    %364 = vmatpush.msra.mxu0 0.0
    %365 = vmatpush.msra.mxu0 %v281
    %366 = vmatpush.msra.mxu0 %v279
    %367 = vmatpush.msra.mxu0 %v277
    %368 = vmatpush.msra.mxu0 %v275
    %369 = vmatmul.f32.gmra.mxu0 %v289
    %v370 = vpop.f32.mrf.mxu0
    %v371 = vadd.f32 %v285, %v370
    %372 = vmatmul.f32.gmra.mxu0 %v292
    %v373 = vpop.f32.mrf.mxu0
    %v374 = vadd.f32 %v285, %v373
    %375 = vmatmul.f32.gmra.mxu0 %v295
    %v376 = vpop.f32.mrf.mxu0
    %v377 = vadd.f32 %v285, %v376
    %378 = vmatmul.f32.gmra.mxu0 %v298
    %v379 = vpop.f32.mrf.mxu0
    %v380 = vadd.f32 %v285, %v379
    %381 = vmatmul.f32.gmra.mxu0 %v301
    %v382 = vpop.f32.mrf.mxu0
    %v383 = vadd.f32 %v285, %v382
    %384 = vmatmul.f32.gmra.mxu0 %v304
    %v385 = vpop.f32.mrf.mxu0
    %v386 = vadd.f32 %v285, %v385
    %387 = vmatmul.f32.gmra.mxu0 %v307
    %v388 = vpop.f32.mrf.mxu0
    %v389 = vadd.f32 %v285, %v388
    %390 = vmatmul.f32.gmra.mxu0 %v310
    %v391 = vpop.f32.mrf.mxu0
    %v392 = vadd.f32 %v285, %v391
    %393 = vdwg.mxu0
    %394 = vst [vmem:[#allocation3] sm:$0xff] %v330
    %395 = vst.msk [vmem:[#allocation3 + $0x8] sm:$0xff] %vm199, %v371
    %396 = vst [vmem:[#allocation3 + $0x10] sm:$0xff] %v333
    %397 = vst.msk [vmem:[#allocation3 + $0x18] sm:$0xff] %vm199, %v374
    %398 = vst [vmem:[#allocation3 + $0x20] sm:$0xff] %v336
    %399 = vst.msk [vmem:[#allocation3 + $0x28] sm:$0xff] %vm199, %v377
    %400 = vst [vmem:[#allocation3 + $0x30] sm:$0xff] %v339
    %401 = vst.msk [vmem:[#allocation3 + $0x38] sm:$0xff] %vm199, %v380
    %402 = vst [vmem:[#allocation3 + $0x40] sm:$0xff] %v342
    %403 = vst.msk [vmem:[#allocation3 + $0x48] sm:$0xff] %vm199, %v383
    %404 = vst [vmem:[#allocation3 + $0x50] sm:$0xff] %v345
    %405 = vst.msk [vmem:[#allocation3 + $0x58] sm:$0xff] %vm199, %v386
    %406 = vst [vmem:[#allocation3 + $0x60] sm:$0xff] %v348
    %407 = vst.msk [vmem:[#allocation3 + $0x68] sm:$0xff] %vm199, %v389
    %408 = vst [vmem:[#allocation3 + $0x70] sm:$0xff] %v351
    %409 = vst.msk [vmem:[#allocation3 + $0x78] sm:$0xff] %vm199, %v392
    %s410 = smul.u32 0, 2
    %s411 = smul.addr %s410, 8
    %s412 = scalar_lea.vmem [#allocation3], %s411
    %v413 = vld [vmem:[%s412] sm:$0xff]
    %v414 = vld [vmem:[%s412 + $0x8] sm:$0xff]
    %v415 = vld [vmem:[#allocation2] sm:$0xff]
    %v416 = vld [vmem:[#allocation11] sm:$0xff]
    %v417 = vld [vmem:[#allocation11 + $0x8] sm:$0xff]
    %v418 = vld [vmem:[#allocation11 + $0x10] sm:$0xff]
    %v419 = vld [vmem:[#allocation11 + $0x18] sm:$0xff]
    %v420 = vld [vmem:[#allocation11 + $0x20] sm:$0xff]
    %v421 = vld [vmem:[#allocation11 + $0x28] sm:$0xff]
    %v422 = vld [vmem:[#allocation11 + $0x30] sm:$0xff]
    %v423 = vld [vmem:[#allocation11 + $0x38] sm:$0xff]
    %v424 = vld [vmem:[#allocation11 + $0x40] sm:$0xff]
    %v425 = vld [vmem:[#allocation11 + $0x48] sm:$0xff]
    %v426 = vld [vmem:[#allocation11 + $0x50] sm:$0xff]
    %v427 = vld [vmem:[#allocation11 + $0x58] sm:$0xff]
    %v428 = vld [vmem:[#allocation11 + $0x60] sm:$0xff]
    %v429 = vld [vmem:[#allocation11 + $0x68] sm:$0xff]
    %v430 = vld [vmem:[#allocation11 + $0x70] sm:$0xff]
    %v431 = vld [vmem:[#allocation11 + $0x78] sm:$0xff]
    %v433 = vsel %vm199, 0.0, 0
    %435 = vmatpush.msra.mxu0 0.0
    %436 = vmatpush.msra.mxu0 0.0
    %437 = vmatpush.msra.mxu0 0.0
    %438 = vmatpush.msra.mxu0 0.0
    %439 = vmatpush.msra.mxu0 0.0
    %440 = vmatpush.msra.mxu0 0.0
    %441 = vmatpush.msra.mxu0 0.0
    %442 = vmatpush.msra.mxu0 0.0
    %443 = vmatpush.msra.mxu0 %v430
    %444 = vmatpush.msra.mxu0 %v428
    %445 = vmatpush.msra.mxu0 %v426
    %446 = vmatpush.msra.mxu0 %v424
    %447 = vmatpush.msra.mxu0 %v422
    %448 = vmatpush.msra.mxu0 %v420
    %449 = vmatpush.msra.mxu0 %v418
    %450 = vmatpush.msra.mxu0 %v416
    %451 = vmatmul.f32.gmra.mxu0 %v433
    %v452 = vpop.f32.mrf.mxu0
    %v453 = vadd.f32 0.0, %v452
    %454 = vdwg.mxu0
    %455 = vmatpush.msra.mxu0 0.0
    %456 = vmatpush.msra.mxu0 0.0
    %457 = vmatpush.msra.mxu0 0.0
    %458 = vmatpush.msra.mxu0 0.0
    %459 = vmatpush.msra.mxu0 0.0
    %460 = vmatpush.msra.mxu0 0.0
    %461 = vmatpush.msra.mxu0 0.0
    %462 = vmatpush.msra.mxu0 0.0
    %463 = vmatpush.msra.mxu0 %v431
    %464 = vmatpush.msra.mxu0 %v429
    %465 = vmatpush.msra.mxu0 %v427
    %466 = vmatpush.msra.mxu0 %v425
    %467 = vmatpush.msra.mxu0 %v423
    %468 = vmatpush.msra.mxu0 %v421
    %469 = vmatpush.msra.mxu0 %v419
    %470 = vmatpush.msra.mxu0 %v417
    %471 = vmatmul.f32.gmra.mxu0 %v433
    %v472 = vpop.f32.mrf.mxu0
    %v473 = vadd.f32 0.0, %v472
    %474 = vdwg.mxu0
    %v475 = vadd.f32 %v413, %v453
    %v476 = vxor.u32 %v475, 2147483648
    %v477 = vmul.f32 %v476, 1.442695
    %v478 = vpow.pop %v477
    %v479 = vadd.f32 %v478, 1.0
    %v480 = vrcp.pop %v479
    %v481 = vmul.f32 %v479, %v480
    %v482 = vsub.f32 1.0, %v481
    %v483 = vmul.f32 %v480, %v482
    %v484 = vadd.f32 %v480, %v483
    %vm485 = vweird.f32 %v479
    %vm486 = vweird.f32 %v480
    %vm487 = vmor %vm485, %vm486
    %v488 = vsel %vm487, %v480, %v484
    %v489 = vand.u32 2147483647, %v479
    %vm490 = vcmp.eq.f32.partialorder %v489, 8.507059e+37
    %v491 = vand.u32 %v479, 2147483648
    %v492 = vor.u32 1.1754944e-38, %v491
    %v493 = vsel %vm490, %v492, %v488
    %v494 = vmul.f32 1.0, %v493
    %v495 = vld [vmem:[#allocation13] sm:$0x1]
    %v497 = vperm.slane %v495, 0
    %v499 = vadd.f32 %v473, %v497
    %v500 = vmul.f32 %v494, %v499
    %v501 = vadd.f32 %v414, %v500
    %v502 = vtanh.pop %v501
    %v503 = vsub.f32 1.0, %v494
    %505 = vrot.lane.b32.xlu0 %v502, 64
    %v506 = vpop.permute.xlu0 %505
    %v508 = vmul.f32 %v503, %v506
    %v509 = vmul.f32 %v494, 0.0
    %v510 = vadd.f32 %v508, %v509
    %v511 = vld [vmem:[#allocation14] sm:$0x1]
    %v513 = vperm.slane %v511, 0
    %514 = vrot.lane.b32.xlu0 %v513, 64
    %v515 = vpop.permute.xlu0 %514
    %v517 = vmul.f32 %v510, %v515
    %519 = vrot.lane.b32.xlu0 %v517, 64
    %v520 = vpop.permute.xlu0 %519
    %v522 = vsel %vm265, %v520, 0.0
    %523 = vadd.xlane.f32.xlu0 %v522
    %v524 = vpop.xlane.xlu0 %523
    %v525 = vld [vmem:[#allocation4] sm:$0x1]
    %v527 = vperm.slane %v525, 0
    %v529 = vadd.f32 %v524, %v527
    %v530 = vld [vmem:[%s10] sm:$0xff]
    %v531 = vld [vmem:[%s10 + $0x8] sm:$0xff]
    %v532 = vld [vmem:[%s10 + $0x10] sm:$0xff]
    %v533 = vld [vmem:[%s10 + $0x18] sm:$0xff]
    %v534 = vld [vmem:[%s11] sm:$0x1]
    %v536 = vperm.slane %v534, 0
    %539 = vrot.lane.b32.xlu0 %v510, 32
    %v540 = vpop.permute.xlu0 %539
    %v541 = vsel %vm265, %v540, 0
    %543 = vmatpush.msra.mxu0 0.0
    %544 = vmatpush.msra.mxu0 0.0
    %545 = vmatpush.msra.mxu0 0.0
    %546 = vmatpush.msra.mxu0 0.0
    %547 = vmatpush.msra.mxu0 0.0
    %548 = vmatpush.msra.mxu0 0.0
    %549 = vmatpush.msra.mxu0 0.0
    %550 = vmatpush.msra.mxu0 0.0
    %551 = vmatpush.msra.mxu0 0.0
    %552 = vmatpush.msra.mxu0 0.0
    %553 = vmatpush.msra.mxu0 0.0
    %554 = vmatpush.msra.mxu0 0.0
    %555 = vmatpush.msra.mxu0 %v533
    %556 = vmatpush.msra.mxu0 %v532
    %557 = vmatpush.msra.mxu0 %v531
    %558 = vmatpush.msra.mxu0 %v530
    %559 = vmatmul.f32.gmra.mxu0 %v541
    %v560 = vpop.f32.mrf.mxu0
    %v561 = vadd.f32 %v536, %v560
    %562 = vdwg.mxu0
    %v563 = vtanh.pop %v561
    %v564 = vmul.f32 %v415, %v563
    %v565 = vsub.f32 -inf, %v529
    %v566 = vmul.f32 %v565, 1.442695
    %v567 = vpow.pop %v566
    %v568 = vsub.f32 %v529, %v529
    %v569 = vmul.f32 %v568, 1.442695
    %v570 = vpow.pop %v569
    %v571 = vmul.f32 %v567, 0.0
    %v572 = vadd.f32 %v571, %v570
    %574 = vset.pattern.permute.xlu0 0
    %575 = vperm.xlu0 %574, %v567
    %v576 = vpop.permute.xlu0 %575
    %v578 = vmul.f32 %v576, 0.0
    %580 = vset.pattern.permute.xlu0 0
    %581 = vperm.xlu0 %580, %v570
    %v582 = vpop.permute.xlu0 %581
    %v584 = vmul.f32 %v582, %v564
    %v585 = vadd.f32 %v578, %v584
    %s586 = smul.u32 1, 2
    %s587 = smul.addr %s586, 8
    %s588 = scalar_lea.vmem [#allocation3], %s587
    %v589 = vld [vmem:[%s588] sm:$0xff]
    %v590 = vld [vmem:[%s588 + $0x8] sm:$0xff]
    %s591 = scalar_lea.vmem [#allocation2], 8
    %v592 = vld [vmem:[%s591] sm:$0xff]
    %593 = vrot.lane.b32.xlu0 %v510, 64
    %v594 = vpop.permute.xlu0 %593
    %v595 = vsel %vm199, %v594, 0
    %597 = vmatpush.msra.mxu0 0.0
    %598 = vmatpush.msra.mxu0 0.0
    %599 = vmatpush.msra.mxu0 0.0
    %600 = vmatpush.msra.mxu0 0.0
    %601 = vmatpush.msra.mxu0 0.0
    %602 = vmatpush.msra.mxu0 0.0
    %603 = vmatpush.msra.mxu0 0.0
    %604 = vmatpush.msra.mxu0 0.0
    %605 = vmatpush.msra.mxu0 %v430
    %606 = vmatpush.msra.mxu0 %v428
    %607 = vmatpush.msra.mxu0 %v426
    %608 = vmatpush.msra.mxu0 %v424
    %609 = vmatpush.msra.mxu0 %v422
    %610 = vmatpush.msra.mxu0 %v420
    %611 = vmatpush.msra.mxu0 %v418
    %612 = vmatpush.msra.mxu0 %v416
    %613 = vmatmul.f32.gmra.mxu0 %v595
    %v614 = vpop.f32.mrf.mxu0
    %v615 = vadd.f32 0.0, %v614
    %616 = vdwg.mxu0
    %617 = vmatpush.msra.mxu0 0.0
    %618 = vmatpush.msra.mxu0 0.0
    %619 = vmatpush.msra.mxu0 0.0
    %620 = vmatpush.msra.mxu0 0.0
    %621 = vmatpush.msra.mxu0 0.0
    %622 = vmatpush.msra.mxu0 0.0
    %623 = vmatpush.msra.mxu0 0.0
    %624 = vmatpush.msra.mxu0 0.0
    %625 = vmatpush.msra.mxu0 %v431
    %626 = vmatpush.msra.mxu0 %v429
    %627 = vmatpush.msra.mxu0 %v427
    %628 = vmatpush.msra.mxu0 %v425
    %629 = vmatpush.msra.mxu0 %v423
    %630 = vmatpush.msra.mxu0 %v421
    %631 = vmatpush.msra.mxu0 %v419
    %632 = vmatpush.msra.mxu0 %v417
    %633 = vmatmul.f32.gmra.mxu0 %v595
    %v634 = vpop.f32.mrf.mxu0
    %v635 = vadd.f32 0.0, %v634
    %636 = vdwg.mxu0
    %v637 = vadd.f32 %v589, %v615
    %v638 = vxor.u32 %v637, 2147483648
    %v639 = vmul.f32 %v638, 1.442695
    %v640 = vpow.pop %v639
    %v641 = vadd.f32 %v640, 1.0
    %v642 = vrcp.pop %v641
    %v643 = vmul.f32 %v641, %v642
    %v644 = vsub.f32 1.0, %v643
    %v645 = vmul.f32 %v642, %v644
    %v646 = vadd.f32 %v642, %v645
    %vm647 = vweird.f32 %v641
    %vm648 = vweird.f32 %v642
    %vm649 = vmor %vm647, %vm648
    %v650 = vsel %vm649, %v642, %v646
    %v651 = vand.u32 2147483647, %v641
    %vm652 = vcmp.eq.f32.partialorder %v651, 8.507059e+37
    %v653 = vand.u32 %v641, 2147483648
    %v654 = vor.u32 1.1754944e-38, %v653
    %v655 = vsel %vm652, %v654, %v650
    %v656 = vmul.f32 1.0, %v655
    %v657 = vadd.f32 %v635, %v497
    %v658 = vmul.f32 %v656, %v657
    %v659 = vadd.f32 %v590, %v658
    %v660 = vtanh.pop %v659
    %v661 = vsub.f32 1.0, %v656
    %663 = vrot.lane.b32.xlu0 %v660, 64
    %v664 = vpop.permute.xlu0 %663
    %v666 = vmul.f32 %v661, %v664
    %v667 = vmul.f32 %v656, %v510
    %v668 = vadd.f32 %v666, %v667
    %v669 = vmul.f32 %v668, %v515
    %671 = vrot.lane.b32.xlu0 %v669, 64
    %v672 = vpop.permute.xlu0 %671
    %v674 = vsel %vm265, %v672, 0.0
    %675 = vadd.xlane.f32.xlu0 %v674
    %v676 = vpop.xlane.xlu0 %675
    %v677 = vadd.f32 %v676, %v527
    %679 = vrot.lane.b32.xlu0 %v668, 32
    %v680 = vpop.permute.xlu0 %679
    %v681 = vsel %vm265, %v680, 0
    %683 = vmatpush.msra.mxu0 0.0
    %684 = vmatpush.msra.mxu0 0.0
    %685 = vmatpush.msra.mxu0 0.0
    %686 = vmatpush.msra.mxu0 0.0
    %687 = vmatpush.msra.mxu0 0.0
    %688 = vmatpush.msra.mxu0 0.0
    %689 = vmatpush.msra.mxu0 0.0
    %690 = vmatpush.msra.mxu0 0.0
    %691 = vmatpush.msra.mxu0 0.0
    %692 = vmatpush.msra.mxu0 0.0
    %693 = vmatpush.msra.mxu0 0.0
    %694 = vmatpush.msra.mxu0 0.0
    %695 = vmatpush.msra.mxu0 %v533
    %696 = vmatpush.msra.mxu0 %v532
    %697 = vmatpush.msra.mxu0 %v531
    %698 = vmatpush.msra.mxu0 %v530
    %699 = vmatmul.f32.gmra.mxu0 %v681
    %v700 = vpop.f32.mrf.mxu0
    %v701 = vadd.f32 %v536, %v700
    %702 = vdwg.mxu0
    %v703 = vtanh.pop %v701
    %v704 = vmul.f32 %v592, %v703
    %v705 = vmax.f32 %v529, %v677
    %v706 = vsub.f32 %v529, %v705
    %v707 = vmul.f32 %v706, 1.442695
    %v708 = vpow.pop %v707
    %v709 = vsub.f32 %v677, %v705
    %v710 = vmul.f32 %v709, 1.442695
    %v711 = vpow.pop %v710
    %v712 = vmul.f32 %v572, %v708
    %v713 = vadd.f32 %v712, %v711
    %715 = vset.pattern.permute.xlu0 0
    %716 = vperm.xlu0 %715, %v708
    %v717 = vpop.permute.xlu0 %716
    %v719 = vmul.f32 %v585, %v717
    %721 = vset.pattern.permute.xlu0 0
    %722 = vperm.xlu0 %721, %v711
    %v723 = vpop.permute.xlu0 %722
    %v725 = vmul.f32 %v723, %v704
    %v726 = vadd.f32 %v719, %v725
    %s727 = smul.u32 2, 2
    %s728 = smul.addr %s727, 8
    %s729 = scalar_lea.vmem [#allocation3], %s728
    %v730 = vld [vmem:[%s729] sm:$0xff]
    %v731 = vld [vmem:[%s729 + $0x8] sm:$0xff]
    %s732 = scalar_lea.vmem [#allocation2], 16
    %v733 = vld [vmem:[%s732] sm:$0xff]
    %734 = vrot.lane.b32.xlu0 %v668, 64
    %v735 = vpop.permute.xlu0 %734
    %v736 = vsel %vm199, %v735, 0
    %738 = vmatpush.msra.mxu0 0.0
    %739 = vmatpush.msra.mxu0 0.0
    %740 = vmatpush.msra.mxu0 0.0
    %741 = vmatpush.msra.mxu0 0.0
    %742 = vmatpush.msra.mxu0 0.0
    %743 = vmatpush.msra.mxu0 0.0
    %744 = vmatpush.msra.mxu0 0.0
    %745 = vmatpush.msra.mxu0 0.0
    %746 = vmatpush.msra.mxu0 %v430
    %747 = vmatpush.msra.mxu0 %v428
    %748 = vmatpush.msra.mxu0 %v426
    %749 = vmatpush.msra.mxu0 %v424
    %750 = vmatpush.msra.mxu0 %v422
    %751 = vmatpush.msra.mxu0 %v420
    %752 = vmatpush.msra.mxu0 %v418
    %753 = vmatpush.msra.mxu0 %v416
    %754 = vmatmul.f32.gmra.mxu0 %v736
    %v755 = vpop.f32.mrf.mxu0
    %v756 = vadd.f32 0.0, %v755
    %757 = vdwg.mxu0
    %758 = vmatpush.msra.mxu0 0.0
    %759 = vmatpush.msra.mxu0 0.0
    %760 = vmatpush.msra.mxu0 0.0
    %761 = vmatpush.msra.mxu0 0.0
    %762 = vmatpush.msra.mxu0 0.0
    %763 = vmatpush.msra.mxu0 0.0
    %764 = vmatpush.msra.mxu0 0.0
    %765 = vmatpush.msra.mxu0 0.0
    %766 = vmatpush.msra.mxu0 %v431
    %767 = vmatpush.msra.mxu0 %v429
    %768 = vmatpush.msra.mxu0 %v427
    %769 = vmatpush.msra.mxu0 %v425
    %770 = vmatpush.msra.mxu0 %v423
    %771 = vmatpush.msra.mxu0 %v421
    %772 = vmatpush.msra.mxu0 %v419
    %773 = vmatpush.msra.mxu0 %v417
    %774 = vmatmul.f32.gmra.mxu0 %v736
    %v775 = vpop.f32.mrf.mxu0
    %v776 = vadd.f32 0.0, %v775
    %777 = vdwg.mxu0
    %v778 = vadd.f32 %v730, %v756
    %v779 = vxor.u32 %v778, 2147483648
    %v780 = vmul.f32 %v779, 1.442695
    %v781 = vpow.pop %v780
    %v782 = vadd.f32 %v781, 1.0
    %v783 = vrcp.pop %v782
    %v784 = vmul.f32 %v782, %v783
    %v785 = vsub.f32 1.0, %v784
    %v786 = vmul.f32 %v783, %v785
    %v787 = vadd.f32 %v783, %v786
    %vm788 = vweird.f32 %v782
    %vm789 = vweird.f32 %v783
    %vm790 = vmor %vm788, %vm789
    %v791 = vsel %vm790, %v783, %v787
    %v792 = vand.u32 2147483647, %v782
    %vm793 = vcmp.eq.f32.partialorder %v792, 8.507059e+37
    %v794 = vand.u32 %v782, 2147483648
    %v795 = vor.u32 1.1754944e-38, %v794
    %v796 = vsel %vm793, %v795, %v791
    %v797 = vmul.f32 1.0, %v796
    %v798 = vadd.f32 %v776, %v497
    %v799 = vmul.f32 %v797, %v798
    %v800 = vadd.f32 %v731, %v799
    %v801 = vtanh.pop %v800
    %v802 = vsub.f32 1.0, %v797
    %804 = vrot.lane.b32.xlu0 %v801, 64
    %v805 = vpop.permute.xlu0 %804
    %v807 = vmul.f32 %v802, %v805
    %v808 = vmul.f32 %v797, %v668
    %v809 = vadd.f32 %v807, %v808
    %v810 = vmul.f32 %v809, %v515
    %812 = vrot.lane.b32.xlu0 %v810, 64
    %v813 = vpop.permute.xlu0 %812
    %v815 = vsel %vm265, %v813, 0.0
    %816 = vadd.xlane.f32.xlu0 %v815
    %v817 = vpop.xlane.xlu0 %816
    %v818 = vadd.f32 %v817, %v527
    %820 = vrot.lane.b32.xlu0 %v809, 32
    %v821 = vpop.permute.xlu0 %820
    %v822 = vsel %vm265, %v821, 0
    %824 = vmatpush.msra.mxu0 0.0
    %825 = vmatpush.msra.mxu0 0.0
    %826 = vmatpush.msra.mxu0 0.0
    %827 = vmatpush.msra.mxu0 0.0
    %828 = vmatpush.msra.mxu0 0.0
    %829 = vmatpush.msra.mxu0 0.0
    %830 = vmatpush.msra.mxu0 0.0
    %831 = vmatpush.msra.mxu0 0.0
    %832 = vmatpush.msra.mxu0 0.0
    %833 = vmatpush.msra.mxu0 0.0
    %834 = vmatpush.msra.mxu0 0.0
    %835 = vmatpush.msra.mxu0 0.0
    %836 = vmatpush.msra.mxu0 %v533
    %837 = vmatpush.msra.mxu0 %v532
    %838 = vmatpush.msra.mxu0 %v531
    %839 = vmatpush.msra.mxu0 %v530
    %840 = vmatmul.f32.gmra.mxu0 %v822
    %v841 = vpop.f32.mrf.mxu0
    %v842 = vadd.f32 %v536, %v841
    %843 = vdwg.mxu0
    %v844 = vtanh.pop %v842
    %v845 = vmul.f32 %v733, %v844
    %v846 = vmax.f32 %v705, %v818
    %v847 = vsub.f32 %v705, %v846
    %v848 = vmul.f32 %v847, 1.442695
    %v849 = vpow.pop %v848
    %v850 = vsub.f32 %v818, %v846
    %v851 = vmul.f32 %v850, 1.442695
    %v852 = vpow.pop %v851
    %v853 = vmul.f32 %v713, %v849
    %v854 = vadd.f32 %v853, %v852
    %856 = vset.pattern.permute.xlu0 0
    %857 = vperm.xlu0 %856, %v849
    %v858 = vpop.permute.xlu0 %857
    %v860 = vmul.f32 %v726, %v858
    %862 = vset.pattern.permute.xlu0 0
    %863 = vperm.xlu0 %862, %v852
    %v864 = vpop.permute.xlu0 %863
    %v866 = vmul.f32 %v864, %v845
    %v867 = vadd.f32 %v860, %v866
    %s868 = smul.u32 3, 2
    %s869 = smul.addr %s868, 8
    %s870 = scalar_lea.vmem [#allocation3], %s869
    %v871 = vld [vmem:[%s870] sm:$0xff]
    %v872 = vld [vmem:[%s870 + $0x8] sm:$0xff]
    %s873 = scalar_lea.vmem [#allocation2], 24
    %v874 = vld [vmem:[%s873] sm:$0xff]
    %875 = vrot.lane.b32.xlu0 %v809, 64
    %v876 = vpop.permute.xlu0 %875
    %v877 = vsel %vm199, %v876, 0
    %879 = vmatpush.msra.mxu0 0.0
    %880 = vmatpush.msra.mxu0 0.0
    %881 = vmatpush.msra.mxu0 0.0
    %882 = vmatpush.msra.mxu0 0.0
    %883 = vmatpush.msra.mxu0 0.0
    %884 = vmatpush.msra.mxu0 0.0
    %885 = vmatpush.msra.mxu0 0.0
    %886 = vmatpush.msra.mxu0 0.0
    %887 = vmatpush.msra.mxu0 %v430
    %888 = vmatpush.msra.mxu0 %v428
    %889 = vmatpush.msra.mxu0 %v426
    %890 = vmatpush.msra.mxu0 %v424
    %891 = vmatpush.msra.mxu0 %v422
    %892 = vmatpush.msra.mxu0 %v420
    %893 = vmatpush.msra.mxu0 %v418
    %894 = vmatpush.msra.mxu0 %v416
    %895 = vmatmul.f32.gmra.mxu0 %v877
    %v896 = vpop.f32.mrf.mxu0
    %v897 = vadd.f32 0.0, %v896
    %898 = vdwg.mxu0
    %899 = vmatpush.msra.mxu0 0.0
    %900 = vmatpush.msra.mxu0 0.0
    %901 = vmatpush.msra.mxu0 0.0
    %902 = vmatpush.msra.mxu0 0.0
    %903 = vmatpush.msra.mxu0 0.0
    %904 = vmatpush.msra.mxu0 0.0
    %905 = vmatpush.msra.mxu0 0.0
    %906 = vmatpush.msra.mxu0 0.0
    %907 = vmatpush.msra.mxu0 %v431
    %908 = vmatpush.msra.mxu0 %v429
    %909 = vmatpush.msra.mxu0 %v427
    %910 = vmatpush.msra.mxu0 %v425
    %911 = vmatpush.msra.mxu0 %v423
    %912 = vmatpush.msra.mxu0 %v421
    %913 = vmatpush.msra.mxu0 %v419
    %914 = vmatpush.msra.mxu0 %v417
    %915 = vmatmul.f32.gmra.mxu0 %v877
    %v916 = vpop.f32.mrf.mxu0
    %v917 = vadd.f32 0.0, %v916
    %918 = vdwg.mxu0
    %v919 = vadd.f32 %v871, %v897
    %v920 = vxor.u32 %v919, 2147483648
    %v921 = vmul.f32 %v920, 1.442695
    %v922 = vpow.pop %v921
    %v923 = vadd.f32 %v922, 1.0
    %v924 = vrcp.pop %v923
    %v925 = vmul.f32 %v923, %v924
    %v926 = vsub.f32 1.0, %v925
    %v927 = vmul.f32 %v924, %v926
    %v928 = vadd.f32 %v924, %v927
    %vm929 = vweird.f32 %v923
    %vm930 = vweird.f32 %v924
    %vm931 = vmor %vm929, %vm930
    %v932 = vsel %vm931, %v924, %v928
    %v933 = vand.u32 2147483647, %v923
    %vm934 = vcmp.eq.f32.partialorder %v933, 8.507059e+37
    %v935 = vand.u32 %v923, 2147483648
    %v936 = vor.u32 1.1754944e-38, %v935
    %v937 = vsel %vm934, %v936, %v932
    %v938 = vmul.f32 1.0, %v937
    %v939 = vadd.f32 %v917, %v497
    %v940 = vmul.f32 %v938, %v939
    %v941 = vadd.f32 %v872, %v940
    %v942 = vtanh.pop %v941
    %v943 = vsub.f32 1.0, %v938
    %945 = vrot.lane.b32.xlu0 %v942, 64
    %v946 = vpop.permute.xlu0 %945
    %v948 = vmul.f32 %v943, %v946
    %v949 = vmul.f32 %v938, %v809
    %v950 = vadd.f32 %v948, %v949
    %v951 = vmul.f32 %v950, %v515
    %953 = vrot.lane.b32.xlu0 %v951, 64
    %v954 = vpop.permute.xlu0 %953
    %v956 = vsel %vm265, %v954, 0.0
    %957 = vadd.xlane.f32.xlu0 %v956
    %v958 = vpop.xlane.xlu0 %957
    %v959 = vadd.f32 %v958, %v527
    %961 = vrot.lane.b32.xlu0 %v950, 32
    %v962 = vpop.permute.xlu0 %961
    %v963 = vsel %vm265, %v962, 0
    %965 = vmatpush.msra.mxu0 0.0
    %966 = vmatpush.msra.mxu0 0.0
    %967 = vmatpush.msra.mxu0 0.0
    %968 = vmatpush.msra.mxu0 0.0
    %969 = vmatpush.msra.mxu0 0.0
    %970 = vmatpush.msra.mxu0 0.0
    %971 = vmatpush.msra.mxu0 0.0
    %972 = vmatpush.msra.mxu0 0.0
    %973 = vmatpush.msra.mxu0 0.0
    %974 = vmatpush.msra.mxu0 0.0
    %975 = vmatpush.msra.mxu0 0.0
    %976 = vmatpush.msra.mxu0 0.0
    %977 = vmatpush.msra.mxu0 %v533
    %978 = vmatpush.msra.mxu0 %v532
    %979 = vmatpush.msra.mxu0 %v531
    %980 = vmatpush.msra.mxu0 %v530
    %981 = vmatmul.f32.gmra.mxu0 %v963
    %v982 = vpop.f32.mrf.mxu0
    %v983 = vadd.f32 %v536, %v982
    %984 = vdwg.mxu0
    %v985 = vtanh.pop %v983
    %v986 = vmul.f32 %v874, %v985
    %v987 = vmax.f32 %v846, %v959
    %v988 = vsub.f32 %v846, %v987
    %v989 = vmul.f32 %v988, 1.442695
    %v990 = vpow.pop %v989
    %v991 = vsub.f32 %v959, %v987
    %v992 = vmul.f32 %v991, 1.442695
    %v993 = vpow.pop %v992
    %v994 = vmul.f32 %v854, %v990
    %v995 = vadd.f32 %v994, %v993
    %997 = vset.pattern.permute.xlu0 0
    %998 = vperm.xlu0 %997, %v990
    %v999 = vpop.permute.xlu0 %998
    %v1001 = vmul.f32 %v867, %v999
    %1003 = vset.pattern.permute.xlu0 0
    %1004 = vperm.xlu0 %1003, %v993
    %v1005 = vpop.permute.xlu0 %1004
    %v1007 = vmul.f32 %v1005, %v986
    %v1008 = vadd.f32 %v1001, %v1007
    %s1009 = smul.u32 4, 2
    %s1010 = smul.addr %s1009, 8
    %s1011 = scalar_lea.vmem [#allocation3], %s1010
    %v1012 = vld [vmem:[%s1011] sm:$0xff]
    %v1013 = vld [vmem:[%s1011 + $0x8] sm:$0xff]
    %s1014 = scalar_lea.vmem [#allocation2], 32
    %v1015 = vld [vmem:[%s1014] sm:$0xff]
    %1016 = vrot.lane.b32.xlu0 %v950, 64
    %v1017 = vpop.permute.xlu0 %1016
    %v1018 = vsel %vm199, %v1017, 0
    %1020 = vmatpush.msra.mxu0 0.0
    %1021 = vmatpush.msra.mxu0 0.0
    %1022 = vmatpush.msra.mxu0 0.0
    %1023 = vmatpush.msra.mxu0 0.0
    %1024 = vmatpush.msra.mxu0 0.0
    %1025 = vmatpush.msra.mxu0 0.0
    %1026 = vmatpush.msra.mxu0 0.0
    %1027 = vmatpush.msra.mxu0 0.0
    %1028 = vmatpush.msra.mxu0 %v430
    %1029 = vmatpush.msra.mxu0 %v428
    %1030 = vmatpush.msra.mxu0 %v426
    %1031 = vmatpush.msra.mxu0 %v424
    %1032 = vmatpush.msra.mxu0 %v422
    %1033 = vmatpush.msra.mxu0 %v420
    %1034 = vmatpush.msra.mxu0 %v418
    %1035 = vmatpush.msra.mxu0 %v416
    %1036 = vmatmul.f32.gmra.mxu0 %v1018
    %v1037 = vpop.f32.mrf.mxu0
    %v1038 = vadd.f32 0.0, %v1037
    %1039 = vdwg.mxu0
    %1040 = vmatpush.msra.mxu0 0.0
    %1041 = vmatpush.msra.mxu0 0.0
    %1042 = vmatpush.msra.mxu0 0.0
    %1043 = vmatpush.msra.mxu0 0.0
    %1044 = vmatpush.msra.mxu0 0.0
    %1045 = vmatpush.msra.mxu0 0.0
    %1046 = vmatpush.msra.mxu0 0.0
    %1047 = vmatpush.msra.mxu0 0.0
    %1048 = vmatpush.msra.mxu0 %v431
    %1049 = vmatpush.msra.mxu0 %v429
    %1050 = vmatpush.msra.mxu0 %v427
    %1051 = vmatpush.msra.mxu0 %v425
    %1052 = vmatpush.msra.mxu0 %v423
    %1053 = vmatpush.msra.mxu0 %v421
    %1054 = vmatpush.msra.mxu0 %v419
    %1055 = vmatpush.msra.mxu0 %v417
    %1056 = vmatmul.f32.gmra.mxu0 %v1018
    %v1057 = vpop.f32.mrf.mxu0
    %v1058 = vadd.f32 0.0, %v1057
    %1059 = vdwg.mxu0
    %v1060 = vadd.f32 %v1012, %v1038
    %v1061 = vxor.u32 %v1060, 2147483648
    %v1062 = vmul.f32 %v1061, 1.442695
    %v1063 = vpow.pop %v1062
    %v1064 = vadd.f32 %v1063, 1.0
    %v1065 = vrcp.pop %v1064
    %v1066 = vmul.f32 %v1064, %v1065
    %v1067 = vsub.f32 1.0, %v1066
    %v1068 = vmul.f32 %v1065, %v1067
    %v1069 = vadd.f32 %v1065, %v1068
    %vm1070 = vweird.f32 %v1064
    %vm1071 = vweird.f32 %v1065
    %vm1072 = vmor %vm1070, %vm1071
    %v1073 = vsel %vm1072, %v1065, %v1069
    %v1074 = vand.u32 2147483647, %v1064
    %vm1075 = vcmp.eq.f32.partialorder %v1074, 8.507059e+37
    %v1076 = vand.u32 %v1064, 2147483648
    %v1077 = vor.u32 1.1754944e-38, %v1076
    %v1078 = vsel %vm1075, %v1077, %v1073
    %v1079 = vmul.f32 1.0, %v1078
    %v1080 = vadd.f32 %v1058, %v497
    %v1081 = vmul.f32 %v1079, %v1080
    %v1082 = vadd.f32 %v1013, %v1081
    %v1083 = vtanh.pop %v1082
    %v1084 = vsub.f32 1.0, %v1079
    %1086 = vrot.lane.b32.xlu0 %v1083, 64
    %v1087 = vpop.permute.xlu0 %1086
    %v1089 = vmul.f32 %v1084, %v1087
    %v1090 = vmul.f32 %v1079, %v950
    %v1091 = vadd.f32 %v1089, %v1090
    %v1092 = vmul.f32 %v1091, %v515
    %1094 = vrot.lane.b32.xlu0 %v1092, 64
    %v1095 = vpop.permute.xlu0 %1094
    %v1097 = vsel %vm265, %v1095, 0.0
    %1098 = vadd.xlane.f32.xlu0 %v1097
    %v1099 = vpop.xlane.xlu0 %1098
    %v1100 = vadd.f32 %v1099, %v527
    %1102 = vrot.lane.b32.xlu0 %v1091, 32
    %v1103 = vpop.permute.xlu0 %1102
    %v1104 = vsel %vm265, %v1103, 0
    %1106 = vmatpush.msra.mxu0 0.0
    %1107 = vmatpush.msra.mxu0 0.0
    %1108 = vmatpush.msra.mxu0 0.0
    %1109 = vmatpush.msra.mxu0 0.0
    %1110 = vmatpush.msra.mxu0 0.0
    %1111 = vmatpush.msra.mxu0 0.0
    %1112 = vmatpush.msra.mxu0 0.0
    %1113 = vmatpush.msra.mxu0 0.0
    %1114 = vmatpush.msra.mxu0 0.0
    %1115 = vmatpush.msra.mxu0 0.0
    %1116 = vmatpush.msra.mxu0 0.0
    %1117 = vmatpush.msra.mxu0 0.0
    %1118 = vmatpush.msra.mxu0 %v533
    %1119 = vmatpush.msra.mxu0 %v532
    %1120 = vmatpush.msra.mxu0 %v531
    %1121 = vmatpush.msra.mxu0 %v530
    %1122 = vmatmul.f32.gmra.mxu0 %v1104
    %v1123 = vpop.f32.mrf.mxu0
    %v1124 = vadd.f32 %v536, %v1123
    %1125 = vdwg.mxu0
    %v1126 = vtanh.pop %v1124
    %v1127 = vmul.f32 %v1015, %v1126
    %v1128 = vmax.f32 %v987, %v1100
    %v1129 = vsub.f32 %v987, %v1128
    %v1130 = vmul.f32 %v1129, 1.442695
    %v1131 = vpow.pop %v1130
    %v1132 = vsub.f32 %v1100, %v1128
    %v1133 = vmul.f32 %v1132, 1.442695
    %v1134 = vpow.pop %v1133
    %v1135 = vmul.f32 %v995, %v1131
    %v1136 = vadd.f32 %v1135, %v1134
    %1138 = vset.pattern.permute.xlu0 0
    %1139 = vperm.xlu0 %1138, %v1131
    %v1140 = vpop.permute.xlu0 %1139
    %v1142 = vmul.f32 %v1008, %v1140
    %1144 = vset.pattern.permute.xlu0 0
    %1145 = vperm.xlu0 %1144, %v1134
    %v1146 = vpop.permute.xlu0 %1145
    %v1148 = vmul.f32 %v1146, %v1127
    %v1149 = vadd.f32 %v1142, %v1148
    %s1150 = smul.u32 5, 2
    %s1151 = smul.addr %s1150, 8
    %s1152 = scalar_lea.vmem [#allocation3], %s1151
    %v1153 = vld [vmem:[%s1152] sm:$0xff]
    %v1154 = vld [vmem:[%s1152 + $0x8] sm:$0xff]
    %s1155 = scalar_lea.vmem [#allocation2], 40
    %v1156 = vld [vmem:[%s1155] sm:$0xff]
    %1157 = vrot.lane.b32.xlu0 %v1091, 64
    %v1158 = vpop.permute.xlu0 %1157
    %v1159 = vsel %vm199, %v1158, 0
    %1161 = vmatpush.msra.mxu0 0.0
    %1162 = vmatpush.msra.mxu0 0.0
    %1163 = vmatpush.msra.mxu0 0.0
    %1164 = vmatpush.msra.mxu0 0.0
    %1165 = vmatpush.msra.mxu0 0.0
    %1166 = vmatpush.msra.mxu0 0.0
    %1167 = vmatpush.msra.mxu0 0.0
    %1168 = vmatpush.msra.mxu0 0.0
    %1169 = vmatpush.msra.mxu0 %v430
    %1170 = vmatpush.msra.mxu0 %v428
    %1171 = vmatpush.msra.mxu0 %v426
    %1172 = vmatpush.msra.mxu0 %v424
    %1173 = vmatpush.msra.mxu0 %v422
    %1174 = vmatpush.msra.mxu0 %v420
    %1175 = vmatpush.msra.mxu0 %v418
    %1176 = vmatpush.msra.mxu0 %v416
    %1177 = vmatmul.f32.gmra.mxu0 %v1159
    %v1178 = vpop.f32.mrf.mxu0
    %v1179 = vadd.f32 0.0, %v1178
    %1180 = vdwg.mxu0
    %1181 = vmatpush.msra.mxu0 0.0
    %1182 = vmatpush.msra.mxu0 0.0
    %1183 = vmatpush.msra.mxu0 0.0
    %1184 = vmatpush.msra.mxu0 0.0
    %1185 = vmatpush.msra.mxu0 0.0
    %1186 = vmatpush.msra.mxu0 0.0
    %1187 = vmatpush.msra.mxu0 0.0
    %1188 = vmatpush.msra.mxu0 0.0
    %1189 = vmatpush.msra.mxu0 %v431
    %1190 = vmatpush.msra.mxu0 %v429
    %1191 = vmatpush.msra.mxu0 %v427
    %1192 = vmatpush.msra.mxu0 %v425
    %1193 = vmatpush.msra.mxu0 %v423
    %1194 = vmatpush.msra.mxu0 %v421
    %1195 = vmatpush.msra.mxu0 %v419
    %1196 = vmatpush.msra.mxu0 %v417
    %1197 = vmatmul.f32.gmra.mxu0 %v1159
    %v1198 = vpop.f32.mrf.mxu0
    %v1199 = vadd.f32 0.0, %v1198
    %1200 = vdwg.mxu0
    %v1201 = vadd.f32 %v1153, %v1179
    %v1202 = vxor.u32 %v1201, 2147483648
    %v1203 = vmul.f32 %v1202, 1.442695
    %v1204 = vpow.pop %v1203
    %v1205 = vadd.f32 %v1204, 1.0
    %v1206 = vrcp.pop %v1205
    %v1207 = vmul.f32 %v1205, %v1206
    %v1208 = vsub.f32 1.0, %v1207
    %v1209 = vmul.f32 %v1206, %v1208
    %v1210 = vadd.f32 %v1206, %v1209
    %vm1211 = vweird.f32 %v1205
    %vm1212 = vweird.f32 %v1206
    %vm1213 = vmor %vm1211, %vm1212
    %v1214 = vsel %vm1213, %v1206, %v1210
    %v1215 = vand.u32 2147483647, %v1205
    %vm1216 = vcmp.eq.f32.partialorder %v1215, 8.507059e+37
    %v1217 = vand.u32 %v1205, 2147483648
    %v1218 = vor.u32 1.1754944e-38, %v1217
    %v1219 = vsel %vm1216, %v1218, %v1214
    %v1220 = vmul.f32 1.0, %v1219
    %v1221 = vadd.f32 %v1199, %v497
    %v1222 = vmul.f32 %v1220, %v1221
    %v1223 = vadd.f32 %v1154, %v1222
    %v1224 = vtanh.pop %v1223
    %v1225 = vsub.f32 1.0, %v1220
    %1227 = vrot.lane.b32.xlu0 %v1224, 64
    %v1228 = vpop.permute.xlu0 %1227
    %v1230 = vmul.f32 %v1225, %v1228
    %v1231 = vmul.f32 %v1220, %v1091
    %v1232 = vadd.f32 %v1230, %v1231
    %v1233 = vmul.f32 %v1232, %v515
    %1235 = vrot.lane.b32.xlu0 %v1233, 64
    %v1236 = vpop.permute.xlu0 %1235
    %v1238 = vsel %vm265, %v1236, 0.0
    %1239 = vadd.xlane.f32.xlu0 %v1238
    %v1240 = vpop.xlane.xlu0 %1239
    %v1241 = vadd.f32 %v1240, %v527
    %1243 = vrot.lane.b32.xlu0 %v1232, 32
    %v1244 = vpop.permute.xlu0 %1243
    %v1245 = vsel %vm265, %v1244, 0
    %1247 = vmatpush.msra.mxu0 0.0
    %1248 = vmatpush.msra.mxu0 0.0
    %1249 = vmatpush.msra.mxu0 0.0
    %1250 = vmatpush.msra.mxu0 0.0
    %1251 = vmatpush.msra.mxu0 0.0
    %1252 = vmatpush.msra.mxu0 0.0
    %1253 = vmatpush.msra.mxu0 0.0
    %1254 = vmatpush.msra.mxu0 0.0
    %1255 = vmatpush.msra.mxu0 0.0
    %1256 = vmatpush.msra.mxu0 0.0
    %1257 = vmatpush.msra.mxu0 0.0
    %1258 = vmatpush.msra.mxu0 0.0
    %1259 = vmatpush.msra.mxu0 %v533
    %1260 = vmatpush.msra.mxu0 %v532
    %1261 = vmatpush.msra.mxu0 %v531
    %1262 = vmatpush.msra.mxu0 %v530
    %1263 = vmatmul.f32.gmra.mxu0 %v1245
    %v1264 = vpop.f32.mrf.mxu0
    %v1265 = vadd.f32 %v536, %v1264
    %1266 = vdwg.mxu0
    %v1267 = vtanh.pop %v1265
    %v1268 = vmul.f32 %v1156, %v1267
    %v1269 = vmax.f32 %v1128, %v1241
    %v1270 = vsub.f32 %v1128, %v1269
    %v1271 = vmul.f32 %v1270, 1.442695
    %v1272 = vpow.pop %v1271
    %v1273 = vsub.f32 %v1241, %v1269
    %v1274 = vmul.f32 %v1273, 1.442695
    %v1275 = vpow.pop %v1274
    %v1276 = vmul.f32 %v1136, %v1272
    %v1277 = vadd.f32 %v1276, %v1275
    %1279 = vset.pattern.permute.xlu0 0
    %1280 = vperm.xlu0 %1279, %v1272
    %v1281 = vpop.permute.xlu0 %1280
    %v1283 = vmul.f32 %v1149, %v1281
    %1285 = vset.pattern.permute.xlu0 0
    %1286 = vperm.xlu0 %1285, %v1275
    %v1287 = vpop.permute.xlu0 %1286
    %v1289 = vmul.f32 %v1287, %v1268
    %v1290 = vadd.f32 %v1283, %v1289
    %s1291 = smul.u32 6, 2
    %s1292 = smul.addr %s1291, 8
    %s1293 = scalar_lea.vmem [#allocation3], %s1292
    %v1294 = vld [vmem:[%s1293] sm:$0xff]
    %v1295 = vld [vmem:[%s1293 + $0x8] sm:$0xff]
    %s1296 = scalar_lea.vmem [#allocation2], 48
    %v1297 = vld [vmem:[%s1296] sm:$0xff]
    %1298 = vrot.lane.b32.xlu0 %v1232, 64
    %v1299 = vpop.permute.xlu0 %1298
    %v1300 = vsel %vm199, %v1299, 0
    %1302 = vmatpush.msra.mxu0 0.0
    %1303 = vmatpush.msra.mxu0 0.0
    %1304 = vmatpush.msra.mxu0 0.0
    %1305 = vmatpush.msra.mxu0 0.0
    %1306 = vmatpush.msra.mxu0 0.0
    %1307 = vmatpush.msra.mxu0 0.0
    %1308 = vmatpush.msra.mxu0 0.0
    %1309 = vmatpush.msra.mxu0 0.0
    %1310 = vmatpush.msra.mxu0 %v430
    %1311 = vmatpush.msra.mxu0 %v428
    %1312 = vmatpush.msra.mxu0 %v426
    %1313 = vmatpush.msra.mxu0 %v424
    %1314 = vmatpush.msra.mxu0 %v422
    %1315 = vmatpush.msra.mxu0 %v420
    %1316 = vmatpush.msra.mxu0 %v418
    %1317 = vmatpush.msra.mxu0 %v416
    %1318 = vmatmul.f32.gmra.mxu0 %v1300
    %v1319 = vpop.f32.mrf.mxu0
    %v1320 = vadd.f32 0.0, %v1319
    %1321 = vdwg.mxu0
    %1322 = vmatpush.msra.mxu0 0.0
    %1323 = vmatpush.msra.mxu0 0.0
    %1324 = vmatpush.msra.mxu0 0.0
    %1325 = vmatpush.msra.mxu0 0.0
    %1326 = vmatpush.msra.mxu0 0.0
    %1327 = vmatpush.msra.mxu0 0.0
    %1328 = vmatpush.msra.mxu0 0.0
    %1329 = vmatpush.msra.mxu0 0.0
    %1330 = vmatpush.msra.mxu0 %v431
    %1331 = vmatpush.msra.mxu0 %v429
    %1332 = vmatpush.msra.mxu0 %v427
    %1333 = vmatpush.msra.mxu0 %v425
    %1334 = vmatpush.msra.mxu0 %v423
    %1335 = vmatpush.msra.mxu0 %v421
    %1336 = vmatpush.msra.mxu0 %v419
    %1337 = vmatpush.msra.mxu0 %v417
    %1338 = vmatmul.f32.gmra.mxu0 %v1300
    %v1339 = vpop.f32.mrf.mxu0
    %v1340 = vadd.f32 0.0, %v1339
    %1341 = vdwg.mxu0
    %v1342 = vadd.f32 %v1294, %v1320
    %v1343 = vxor.u32 %v1342, 2147483648
    %v1344 = vmul.f32 %v1343, 1.442695
    %v1345 = vpow.pop %v1344
    %v1346 = vadd.f32 %v1345, 1.0
    %v1347 = vrcp.pop %v1346
    %v1348 = vmul.f32 %v1346, %v1347
    %v1349 = vsub.f32 1.0, %v1348
    %v1350 = vmul.f32 %v1347, %v1349
    %v1351 = vadd.f32 %v1347, %v1350
    %vm1352 = vweird.f32 %v1346
    %vm1353 = vweird.f32 %v1347
    %vm1354 = vmor %vm1352, %vm1353
    %v1355 = vsel %vm1354, %v1347, %v1351
    %v1356 = vand.u32 2147483647, %v1346
    %vm1357 = vcmp.eq.f32.partialorder %v1356, 8.507059e+37
    %v1358 = vand.u32 %v1346, 2147483648
    %v1359 = vor.u32 1.1754944e-38, %v1358
    %v1360 = vsel %vm1357, %v1359, %v1355
    %v1361 = vmul.f32 1.0, %v1360
    %v1362 = vadd.f32 %v1340, %v497
    %v1363 = vmul.f32 %v1361, %v1362
    %v1364 = vadd.f32 %v1295, %v1363
    %v1365 = vtanh.pop %v1364
    %v1366 = vsub.f32 1.0, %v1361
    %1368 = vrot.lane.b32.xlu0 %v1365, 64
    %v1369 = vpop.permute.xlu0 %1368
    %v1371 = vmul.f32 %v1366, %v1369
    %v1372 = vmul.f32 %v1361, %v1232
    %v1373 = vadd.f32 %v1371, %v1372
    %v1374 = vmul.f32 %v1373, %v515
    %1376 = vrot.lane.b32.xlu0 %v1374, 64
    %v1377 = vpop.permute.xlu0 %1376
    %v1379 = vsel %vm265, %v1377, 0.0
    %1380 = vadd.xlane.f32.xlu0 %v1379
    %v1381 = vpop.xlane.xlu0 %1380
    %v1382 = vadd.f32 %v1381, %v527
    %1384 = vrot.lane.b32.xlu0 %v1373, 32
    %v1385 = vpop.permute.xlu0 %1384
    %v1386 = vsel %vm265, %v1385, 0
    %1388 = vmatpush.msra.mxu0 0.0
    %1389 = vmatpush.msra.mxu0 0.0
    %1390 = vmatpush.msra.mxu0 0.0
    %1391 = vmatpush.msra.mxu0 0.0
    %1392 = vmatpush.msra.mxu0 0.0
    %1393 = vmatpush.msra.mxu0 0.0
    %1394 = vmatpush.msra.mxu0 0.0
    %1395 = vmatpush.msra.mxu0 0.0
    %1396 = vmatpush.msra.mxu0 0.0
    %1397 = vmatpush.msra.mxu0 0.0
    %1398 = vmatpush.msra.mxu0 0.0
    %1399 = vmatpush.msra.mxu0 0.0
    %1400 = vmatpush.msra.mxu0 %v533
    %1401 = vmatpush.msra.mxu0 %v532
    %1402 = vmatpush.msra.mxu0 %v531
    %1403 = vmatpush.msra.mxu0 %v530
    %1404 = vmatmul.f32.gmra.mxu0 %v1386
    %v1405 = vpop.f32.mrf.mxu0
    %v1406 = vadd.f32 %v536, %v1405
    %1407 = vdwg.mxu0
    %v1408 = vtanh.pop %v1406
    %v1409 = vmul.f32 %v1297, %v1408
    %v1410 = vmax.f32 %v1269, %v1382
    %v1411 = vsub.f32 %v1269, %v1410
    %v1412 = vmul.f32 %v1411, 1.442695
    %v1413 = vpow.pop %v1412
    %v1414 = vsub.f32 %v1382, %v1410
    %v1415 = vmul.f32 %v1414, 1.442695
    %v1416 = vpow.pop %v1415
    %v1417 = vmul.f32 %v1277, %v1413
    %v1418 = vadd.f32 %v1417, %v1416
    %1420 = vset.pattern.permute.xlu0 0
    %1421 = vperm.xlu0 %1420, %v1413
    %v1422 = vpop.permute.xlu0 %1421
    %v1424 = vmul.f32 %v1290, %v1422
    %1426 = vset.pattern.permute.xlu0 0
    %1427 = vperm.xlu0 %1426, %v1416
    %v1428 = vpop.permute.xlu0 %1427
    %v1430 = vmul.f32 %v1428, %v1409
    %v1431 = vadd.f32 %v1424, %v1430
    %s1432 = smul.u32 7, 2
    %s1433 = smul.addr %s1432, 8
    %s1434 = scalar_lea.vmem [#allocation3], %s1433
    %v1435 = vld [vmem:[%s1434] sm:$0xff]
    %v1436 = vld [vmem:[%s1434 + $0x8] sm:$0xff]
    %s1437 = scalar_lea.vmem [#allocation2], 56
    %v1438 = vld [vmem:[%s1437] sm:$0xff]
    %1439 = vrot.lane.b32.xlu0 %v1373, 64
    %v1440 = vpop.permute.xlu0 %1439
    %v1441 = vsel %vm199, %v1440, 0
    %1443 = vmatpush.msra.mxu0 0.0
    %1444 = vmatpush.msra.mxu0 0.0
    %1445 = vmatpush.msra.mxu0 0.0
    %1446 = vmatpush.msra.mxu0 0.0
    %1447 = vmatpush.msra.mxu0 0.0
    %1448 = vmatpush.msra.mxu0 0.0
    %1449 = vmatpush.msra.mxu0 0.0
    %1450 = vmatpush.msra.mxu0 0.0
    %1451 = vmatpush.msra.mxu0 %v430
    %1452 = vmatpush.msra.mxu0 %v428
    %1453 = vmatpush.msra.mxu0 %v426
    %1454 = vmatpush.msra.mxu0 %v424
    %1455 = vmatpush.msra.mxu0 %v422
    %1456 = vmatpush.msra.mxu0 %v420
    %1457 = vmatpush.msra.mxu0 %v418
    %1458 = vmatpush.msra.mxu0 %v416
    %1459 = vmatmul.f32.gmra.mxu0 %v1441
    %v1460 = vpop.f32.mrf.mxu0
    %v1461 = vadd.f32 0.0, %v1460
    %1462 = vdwg.mxu0
    %1463 = vmatpush.msra.mxu0 0.0
    %1464 = vmatpush.msra.mxu0 0.0
    %1465 = vmatpush.msra.mxu0 0.0
    %1466 = vmatpush.msra.mxu0 0.0
    %1467 = vmatpush.msra.mxu0 0.0
    %1468 = vmatpush.msra.mxu0 0.0
    %1469 = vmatpush.msra.mxu0 0.0
    %1470 = vmatpush.msra.mxu0 0.0
    %1471 = vmatpush.msra.mxu0 %v431
    %1472 = vmatpush.msra.mxu0 %v429
    %1473 = vmatpush.msra.mxu0 %v427
    %1474 = vmatpush.msra.mxu0 %v425
    %1475 = vmatpush.msra.mxu0 %v423
    %1476 = vmatpush.msra.mxu0 %v421
    %1477 = vmatpush.msra.mxu0 %v419
    %1478 = vmatpush.msra.mxu0 %v417
    %1479 = vmatmul.f32.gmra.mxu0 %v1441
    %v1480 = vpop.f32.mrf.mxu0
    %v1481 = vadd.f32 0.0, %v1480
    %1482 = vdwg.mxu0
    %v1483 = vadd.f32 %v1435, %v1461
    %v1484 = vxor.u32 %v1483, 2147483648
    %v1485 = vmul.f32 %v1484, 1.442695
    %v1486 = vpow.pop %v1485
    %v1487 = vadd.f32 %v1486, 1.0
    %v1488 = vrcp.pop %v1487
    %v1489 = vmul.f32 %v1487, %v1488
    %v1490 = vsub.f32 1.0, %v1489
    %v1491 = vmul.f32 %v1488, %v1490
    %v1492 = vadd.f32 %v1488, %v1491
    %vm1493 = vweird.f32 %v1487
    %vm1494 = vweird.f32 %v1488
    %vm1495 = vmor %vm1493, %vm1494
    %v1496 = vsel %vm1495, %v1488, %v1492
    %v1497 = vand.u32 2147483647, %v1487
    %vm1498 = vcmp.eq.f32.partialorder %v1497, 8.507059e+37
    %v1499 = vand.u32 %v1487, 2147483648
    %v1500 = vor.u32 1.1754944e-38, %v1499
    %v1501 = vsel %vm1498, %v1500, %v1496
    %v1502 = vmul.f32 1.0, %v1501
    %v1503 = vadd.f32 %v1481, %v497
    %v1504 = vmul.f32 %v1502, %v1503
    %v1505 = vadd.f32 %v1436, %v1504
    %v1506 = vtanh.pop %v1505
    %v1507 = vsub.f32 1.0, %v1502
    %1509 = vrot.lane.b32.xlu0 %v1506, 64
    %v1510 = vpop.permute.xlu0 %1509
    %v1512 = vmul.f32 %v1507, %v1510
    %v1513 = vmul.f32 %v1502, %v1373
    %v1514 = vadd.f32 %v1512, %v1513
    %v1515 = vmul.f32 %v1514, %v515
    %1517 = vrot.lane.b32.xlu0 %v1515, 64
    %v1518 = vpop.permute.xlu0 %1517
    %v1520 = vsel %vm265, %v1518, 0.0
    %1521 = vadd.xlane.f32.xlu0 %v1520
    %v1522 = vpop.xlane.xlu0 %1521
    %v1523 = vadd.f32 %v1522, %v527
    %1525 = vrot.lane.b32.xlu0 %v1514, 32
    %v1526 = vpop.permute.xlu0 %1525
    %v1527 = vsel %vm265, %v1526, 0
    %1529 = vmatpush.msra.mxu0 0.0
    %1530 = vmatpush.msra.mxu0 0.0
    %1531 = vmatpush.msra.mxu0 0.0
    %1532 = vmatpush.msra.mxu0 0.0
    %1533 = vmatpush.msra.mxu0 0.0
    %1534 = vmatpush.msra.mxu0 0.0
    %1535 = vmatpush.msra.mxu0 0.0
    %1536 = vmatpush.msra.mxu0 0.0
    %1537 = vmatpush.msra.mxu0 0.0
    %1538 = vmatpush.msra.mxu0 0.0
    %1539 = vmatpush.msra.mxu0 0.0
    %1540 = vmatpush.msra.mxu0 0.0
    %1541 = vmatpush.msra.mxu0 %v533
    %1542 = vmatpush.msra.mxu0 %v532
    %1543 = vmatpush.msra.mxu0 %v531
    %1544 = vmatpush.msra.mxu0 %v530
    %1545 = vmatmul.f32.gmra.mxu0 %v1527
    %v1546 = vpop.f32.mrf.mxu0
    %v1547 = vadd.f32 %v536, %v1546
    %1548 = vdwg.mxu0
    %v1549 = vtanh.pop %v1547
    %v1550 = vmul.f32 %v1438, %v1549
    %v1551 = vmax.f32 %v1410, %v1523
    %v1552 = vsub.f32 %v1410, %v1551
    %v1553 = vmul.f32 %v1552, 1.442695
    %v1554 = vpow.pop %v1553
    %v1555 = vsub.f32 %v1523, %v1551
    %v1556 = vmul.f32 %v1555, 1.442695
    %v1557 = vpow.pop %v1556
    %v1558 = vmul.f32 %v1418, %v1554
    %v1559 = vadd.f32 %v1558, %v1557
    %1561 = vset.pattern.permute.xlu0 0
    %1562 = vperm.xlu0 %1561, %v1554
    %v1563 = vpop.permute.xlu0 %1562
    %v1565 = vmul.f32 %v1431, %v1563
    %1567 = vset.pattern.permute.xlu0 0
    %1568 = vperm.xlu0 %1567, %v1557
    %v1569 = vpop.permute.xlu0 %1568
    %v1571 = vmul.f32 %v1569, %v1550
    %v1572 = vadd.f32 %v1565, %v1571
    %1574 = vset.pattern.permute.xlu0 0
    %1575 = vperm.xlu0 %1574, %v1559
    %v1576 = vpop.permute.xlu0 %1575
    %v1578 = vrcp.pop %v1576
    %v1579 = vmul.f32 %v1576, %v1578
    %v1580 = vsub.f32 1.0, %v1579
    %v1581 = vmul.f32 %v1578, %v1580
    %v1582 = vadd.f32 %v1578, %v1581
    %vm1583 = vweird.f32 %v1576
    %vm1584 = vweird.f32 %v1578
    %vm1585 = vmor %vm1583, %vm1584
    %v1586 = vsel %vm1585, %v1578, %v1582
    %v1587 = vand.u32 2147483647, %v1576
    %vm1588 = vcmp.eq.f32.partialorder %v1587, 8.507059e+37
    %v1589 = vand.u32 %v1576, 2147483648
    %v1590 = vor.u32 1.1754944e-38, %v1589
    %v1591 = vsel %vm1588, %v1590, %v1586
    %v1592 = vmul.f32 %v1572, %v1591
    %v1593 = vld [vmem:[#allocation5] sm:$0xff]
    %v1594 = vld [vmem:[#allocation16] sm:$0xff]
    %v1595 = vld [vmem:[#allocation16 + $0x8] sm:$0xff]
    %v1596 = vld [vmem:[#allocation16 + $0x10] sm:$0xff]
    %v1597 = vld [vmem:[#allocation16 + $0x18] sm:$0xff]
    %v1598 = vld [vmem:[%s13] sm:$0xff]
    %vm1599 = vcmask 64512
    %v1601 = vsel %vm1599, %v1593, 0
    %1603 = vmatpush.msra.mxu0 0.0
    %1604 = vmatpush.msra.mxu0 0.0
    %1605 = vmatpush.msra.mxu0 0.0
    %1606 = vmatpush.msra.mxu0 0.0
    %1607 = vmatpush.msra.mxu0 0.0
    %1608 = vmatpush.msra.mxu0 0.0
    %1609 = vmatpush.msra.mxu0 0.0
    %1610 = vmatpush.msra.mxu0 0.0
    %1611 = vmatpush.msra.mxu0 0.0
    %1612 = vmatpush.msra.mxu0 0.0
    %1613 = vmatpush.msra.mxu0 0.0
    %1614 = vmatpush.msra.mxu0 0.0
    %1615 = vmatpush.msra.mxu0 0.0
    %1616 = vmatpush.msra.mxu0 0.0
    %1617 = vmatpush.msra.mxu0 0.0
    %1618 = vmatpush.msra.mxu0 %v1598
    %1619 = vmatmul.f32.gmra.mxu0 %v1601
    %v1620 = vpop.f32.mrf.mxu0
    %v1621 = vadd.f32 0.0, %v1620
    %1622 = vdwg.mxu0
    %v1624 = vsel %vm265, %v1592, 0
    %1626 = vmatpush.msra.mxu0 0.0
    %1627 = vmatpush.msra.mxu0 0.0
    %1628 = vmatpush.msra.mxu0 0.0
    %1629 = vmatpush.msra.mxu0 0.0
    %1630 = vmatpush.msra.mxu0 0.0
    %1631 = vmatpush.msra.mxu0 0.0
    %1632 = vmatpush.msra.mxu0 0.0
    %1633 = vmatpush.msra.mxu0 0.0
    %1634 = vmatpush.msra.mxu0 0.0
    %1635 = vmatpush.msra.mxu0 0.0
    %1636 = vmatpush.msra.mxu0 0.0
    %1637 = vmatpush.msra.mxu0 0.0
    %1638 = vmatpush.msra.mxu0 %v1597
    %1639 = vmatpush.msra.mxu0 %v1596
    %1640 = vmatpush.msra.mxu0 %v1595
    %1641 = vmatpush.msra.mxu0 %v1594
    %1642 = vmatmul.f32.gmra.mxu0 %v1624
    %v1643 = vpop.f32.mrf.mxu0
    %v1644 = vadd.f32 %v1621, %v1643
    %1645 = vdwg.mxu0
    %v1646 = vld [vmem:[%s14] sm:$0x1]
    %v1648 = vperm.slane %v1646, 0
    %v1650 = vadd.f32 %v1644, %v1648
    %v1651 = vmax.f32 %v1650, 0.0
    %v1652 = vld [vmem:[#allocation17] sm:$0xff]
    %v1653 = vld [vmem:[#allocation17 + $0x8] sm:$0xff]
    %v1654 = vld [vmem:[#allocation17 + $0x10] sm:$0xff]
    %v1655 = vld [vmem:[#allocation17 + $0x18] sm:$0xff]
    %v1656 = vld [vmem:[#allocation17 + $0x20] sm:$0xff]
    %v1657 = vld [vmem:[#allocation17 + $0x28] sm:$0xff]
    %v1658 = vld [vmem:[#allocation17 + $0x30] sm:$0xff]
    %v1659 = vld [vmem:[#allocation17 + $0x38] sm:$0xff]
    %v1660 = vld [vmem:[%s16] sm:$0x1]
    %v1662 = vperm.slane %v1660, 0
    %v1665 = vsel %vm199, %v1651, 0
    %1667 = vmatpush.msra.mxu0 0.0
    %1668 = vmatpush.msra.mxu0 0.0
    %1669 = vmatpush.msra.mxu0 0.0
    %1670 = vmatpush.msra.mxu0 0.0
    %1671 = vmatpush.msra.mxu0 0.0
    %1672 = vmatpush.msra.mxu0 0.0
    %1673 = vmatpush.msra.mxu0 0.0
    %1674 = vmatpush.msra.mxu0 0.0
    %1675 = vmatpush.msra.mxu0 %v1659
    %1676 = vmatpush.msra.mxu0 %v1658
    %1677 = vmatpush.msra.mxu0 %v1657
    %1678 = vmatpush.msra.mxu0 %v1656
    %1679 = vmatpush.msra.mxu0 %v1655
    %1680 = vmatpush.msra.mxu0 %v1654
    %1681 = vmatpush.msra.mxu0 %v1653
    %1682 = vmatpush.msra.mxu0 %v1652
    %1683 = vmatmul.f32.gmra.mxu0 %v1665
    %v1684 = vpop.f32.mrf.mxu0
    %v1685 = vadd.f32 %v1662, %v1684
    %1686 = vdwg.mxu0
    %1687 = vst [vmem:[#allocation19] sm:$0xff] %v1685
    %v1688 = vsel %vm265, %v1592, 0.0
    %1689 = vst [vmem:[#allocation20] sm:$0xff] %v1688
    // Predicated region
    $region102: #{tpu_custom_call.1} parent=1 // pred_check
      _
    $region103: #{tpu_custom_call.1} parent=1 // pred_check_branch
      %1691 = sbr.rel (0) target = $region105
    $region104: #{tpu_custom_call.1} parent=1 // pred_region
      %1693 = vsyncadd [#allocation7], 0
      %s1695 = sshll.u32 [#allocation19], 4
      %s1696 = int_to_ptr.vmem [resolvable:$true] %s1695
      %s1697 = sshll.u32 %s17, 4
      %s1698 = int_to_ptr.hbm [resolvable:$true] %s1697
      %1700 = dma.vmem_to_hbm [thread:$0]  %s1696, 128, %s1698, [#allocation7]
    $region105: #{tpu_custom_call.1} parent=1 // pred_fallthru
      _
    // Predicated region
    $region106: #{tpu_custom_call.1} parent=1 // pred_check
      _
    $region107: #{tpu_custom_call.1} parent=1 // pred_check_branch
      %1702 = sbr.rel (0) target = $region109
    $region108: #{tpu_custom_call.1} parent=1 // pred_region
      %1704 = vsyncadd [#allocation21], 0
      %s1706 = sshll.u32 [#allocation20], 4
      %s1707 = int_to_ptr.vmem [resolvable:$true] %s1706
      %s1708 = sshll.u32 %s18, 4
      %s1709 = int_to_ptr.hbm [resolvable:$true] %s1708
      %1711 = dma.vmem_to_hbm [thread:$0]  %s1707, 128, %s1709, [#allocation21]
    $region109: #{tpu_custom_call.1} parent=1 // pred_fallthru
      _
    // Predicated region
    $region110: #{tpu_custom_call.1} parent=1 // pred_check
      _
    $region111: #{tpu_custom_call.1} parent=1 // pred_check_branch
      %1713 = sbr.rel (0) target = $region113
    $region112: #{tpu_custom_call.1} parent=1 // pred_region
      %1715 = dma.done [#allocation7], 128
    $region113: #{tpu_custom_call.1} parent=1 // pred_fallthru
      _
    // Predicated region
    $region114: #{tpu_custom_call.1} parent=1 // pred_check
      _
    $region115: #{tpu_custom_call.1} parent=1 // pred_check_branch
      %1717 = sbr.rel (0) target = $region117
    $region116: #{tpu_custom_call.1} parent=1 // pred_region
      %1719 = dma.done [#allocation21], 128
    $region117: #{tpu_custom_call.1} parent=1 // pred_fallthru
      _
    %1720 = vsyncpa [#allocation6], 1
    %1721 = vsyncpa [#allocation9], 1
    %1722 = vsyncpa [#allocation12], 1
    %1723 = vsyncpa [#allocation15], 1
    %1724 = vsyncpa [#allocation18], 1
    %1725 = vsyncpa [#allocation7], 1
    %1726 = vsyncpa [#allocation21], 1

</llo_original>
